<compile_context>
chip_gen: v6e
topology: v6e:2x2x1
jax: 0.10.0
libtpu: 0.0.40
codegen_flags: <defaults>
</compile_context>

<pallas_src>
import functools

import numpy as np
import jax
import jax.numpy as jnp
from jax.experimental import pallas as pl
from jax.experimental.pallas import tpu as pltpu  # noqa: F401  (TPU backend)


# ---------------------------------------------------------------------------
# Fused Pallas kernel: whole forward pass, 2-D matmuls + adds only.
#   refs layout: x_ref, then (S, M, brow) for each of the 7 live convs in
#   dataflow order, then the output ref.
# ---------------------------------------------------------------------------
def _fused_forward_kernel(x_ref, *refs):
    out_ref = refs[-1]
    const_refs = refs[:-1]

    def conv(a, idx):
        s_ref = const_refs[3 * idx]
        m_ref = const_refs[3 * idx + 1]
        b_ref = const_refs[3 * idx + 2]
        kh = s_ref.shape[0]
        acc = None
        for dy in range(kh):                       # unrolled (kh <= 3)
            rows = jnp.dot(s_ref[dy], a, preferred_element_type=jnp.float32)
            part = jnp.dot(rows, m_ref[dy], preferred_element_type=jnp.float32)
            acc = part if acc is None else acc + part
        return acc + b_ref[...]                    # (1, K) bias row broadcasts

    a = x_ref[...]
    v1 = conv(a, 0)     # conv01
    v4 = conv(v1, 1)    # conv04
    v5 = conv(v4, 2)    # conv05
    v6 = conv(v5, 3)    # conv06
    v7 = conv(v5, 4)    # conv07
    v8 = conv(v6, 5)    # conv08
    v9 = conv(v7, 6)    # conv09
    out_ref[...] = v8 + v9


# ---------------------------------------------------------------------------
# Host-side (init-time) expansion of a Conv2d into (S_dy, M_dy, bias_row).
# ---------------------------------------------------------------------------
def _expand_conv_to_matmuls(w_hwio, bias, stride, padding, hin, win, n):
    """Returns S (kh, N*Hout, N*Hin), M (kh, Win*Cin, Wout*Cout), brow, hout, wout."""
    kh, kw, cin, cout = w_hwio.shape
    hout = (hin + 2 * padding - kh) // stride + 1
    wout = (win + 2 * padding - kw) // stride + 1

    s = np.zeros((kh, n * hout, n * hin), np.float32)
    m = np.zeros((kh, win * cin, wout * cout), np.float32)
    for dy in range(kh):
        for bi in range(n):
            for oy in range(hout):
                y = stride * oy + dy - padding
                if 0 <= y < hin:                       # padding rows stay zero
                    s[dy, bi * hout + oy, bi * hin + y] = 1.0
        for ox in range(wout):
            for dx in range(kw):
                x = stride * ox + dx - padding
                if 0 <= x < win:                       # padding cols stay zero
                    m[dy, x * cin:(x + 1) * cin,
                      ox * cout:(ox + 1) * cout] = w_hwio[dy, dx]
    brow = np.tile(np.asarray(bias, np.float32), wout).reshape(1, wout * cout)
    return s, m, brow, hout, wout


# ---------------------------------------------------------------------------
# Jitted forward: 1 transpose + 1 (free) reshape in, ONE pallas_call,
# 1 (free) reshape + 1 transpose out.
# ---------------------------------------------------------------------------
@functools.partial(jax.jit, static_argnums=(2,))
def _fused_forward(x_nchw, consts, out_dims):
    n, c, h, w = x_nchw.shape
    hout, wout, cout = out_dims
    xmat = jnp.transpose(x_nchw, (0, 2, 3, 1)).reshape(n * h, w * c)
    out2 = pl.pallas_call(
        _fused_forward_kernel,
        out_shape=jax.ShapeDtypeStruct((n * hout, wout * cout), jnp.float32),
    )(xmat, *consts)
    return jnp.transpose(out2.reshape(n, hout, wout, cout), (0, 3, 1, 2))


# ---------------------------------------------------------------------------
# Model (parameters initialized deterministically, PyTorch-style uniform)
# ---------------------------------------------------------------------------
def _init_conv(key, kh, kw, cin, cout):
    k1, k2 = jax.random.split(key)
    fan_in = cin * kh * kw
    bound = 1.0 / float(fan_in) ** 0.5
    w = jax.random.uniform(k1, (kh, kw, cin, cout), jnp.float32, -bound, bound)
    b = jax.random.uniform(k2, (cout,), jnp.float32, -bound, bound)
    return w, b


class PallasModel:
    # (name, KH, KW, Cin, Cout, stride, padding)  -- see TODO(synk) at top
    _SPECS = [
        ("conv01", 1, 1, 3, 32, 2, 1),
        ("conv02", 1, 1, 32, 16, 2, 1),   # dead in forward (kept for parity)
        ("conv03", 1, 1, 16, 32, 1, 1),   # dead in forward (kept for parity)
        ("conv04", 1, 1, 32, 16, 1, 1),
        ("conv05", 3, 3, 16, 16, 2, 1),
        ("conv06", 1, 1, 16, 4, 2, 1),
        ("conv07", 2, 2, 16, 16, 2, 1),
        ("conv08", 3, 3, 4, 16, 1, 1),
        ("conv09", 3, 3, 16, 16, 1, 1),
    ]
    # Live dataflow: conv01(x)->v1, conv04(v1)->v4, conv05(v4)->v5,
    #                conv06(v5)->v6, conv07(v5)->v7, conv08(v6)->v8,
    #                conv09(v7)->v9, out = v8 + v9.
    _FLOW = [("conv01", "x"), ("conv04", "v1"), ("conv05", "v4"),
             ("conv06", "v5"), ("conv07", "v5"), ("conv08", "v6"),
             ("conv09", "v7")]
    _OUT_NAMES = ["v1", "v4", "v5", "v6", "v7", "v8", "v9"]

    def __init__(self, key):
        self.params = {}
        self.cfg = {}
        for name, kh, kw, cin, cout, st, pd in self._SPECS:
            key, sub = jax.random.split(key)
            self.params[name] = _init_conv(sub, kh, kw, cin, cout)
            self.cfg[name] = (st, pd)
        self._plans = {}          # (N, H, W) -> (consts tuple, out_dims)

    def _build_plan(self, n, h, w):
        consts = []
        dims = {"x": (h, w)}
        for (name, src), out_name in zip(self._FLOW, self._OUT_NAMES):
            w_np = np.asarray(self.params[name][0], np.float32)
            b_np = np.asarray(self.params[name][1], np.float32)
            st, pd = self.cfg[name]
            hin, win = dims[src]
            s, m, brow, hout, wout = _expand_conv_to_matmuls(
                w_np, b_np, st, pd, hin, win, n)
            consts += [jnp.asarray(s), jnp.asarray(m), jnp.asarray(brow)]
            dims[out_name] = (hout, wout)
        hout, wout = dims["v8"]
        cout = int(self.params["conv08"][0].shape[-1])
        return tuple(consts), (hout, wout, cout)

    def __call__(self, x_nchw):
        n, _, h, w = x_nchw.shape
        cache_key = (n, h, w)
        if cache_key not in self._plans:
            self._plans[cache_key] = self._build_plan(n, h, w)
        consts, out_dims = self._plans[cache_key]
        return _fused_forward(x_nchw, consts, out_dims)


# ---------------------------------------------------------------------------
# Plain-XLA reference (for the in-script correctness check)
# ---------------------------------------------------------------------------
def _reference_forward(params, cfg, x_nchw):
    x = jnp.transpose(x_nchw, (0, 2, 3, 1))

    def conv(name, inp):
        w, b = params[name]
        s, p = cfg[name]
        y = jax.lax.conv_general_dilated(
            inp, w, window_strides=(s, s), padding=[(p, p), (p, p)],
            dimension_numbers=("NHWC", "HWIO", "NHWC"),
            precision=jax.lax.Precision.HIGHEST)
        return y + b

    v1 = conv("conv01", x)
    v4 = conv("conv04", v1)
    v5 = conv("conv05", v4)
    v6 = conv("conv06", v5)
    v7 = conv("conv07", v5)
    v8 = conv("conv08", v6)
    v9 = conv("conv09", v7)
    return jnp.transpose(v8 + v9, (0, 3, 1, 2))


# ---------------------------------------------------------------------------
if __name__ == "__main__":
    key = jax.random.PRNGKey(0)
    k_params, k_data = jax.random.split(key)

    model = PallasModel(k_params)

    # Small input consistent with the module's 4D NCHW conv stack.
    x1 = jax.random.normal(k_data, (2, 3, 32, 32), dtype=jnp.float32)

    out = jax.block_until_ready(model(x1))
    assert out.shape == (2, 16, 6, 6), out.shape
    assert out.dtype == jnp.float32

    ref = jax.block_until_ready(_reference_forward(model.params, model.cfg, x1))
    # Tolerance tightened per review (was 5e-2); 5e-3 still leaves headroom for
    # possible MXU multi-pass f32 rounding while catching any tap/padding bug.
    max_err = float(jnp.max(jnp.abs(out - ref)))
    assert jnp.allclose(out, ref, rtol=5e-3, atol=5e-3), max_err

    # Second call hits the jit + plan caches.
    out2 = jax.block_until_ready(model(x1))
    assert jnp.allclose(out, out2)

    print("KERNEL_OK")
</pallas_src>

<mosaic_0001>
module attributes {stable_mosaic.version = 11 : i64} {
  func.func @_fused_forward_kernel(%arg0: memref<64x96xf32, #tpu.memory_space<vmem>>, %arg1: memref<1x34x64xf32, #tpu.memory_space<vmem>>, %arg2: memref<1x96x544xf32, #tpu.memory_space<vmem>>, %arg3: memref<1x544xf32, #tpu.memory_space<vmem>>, %arg4: memref<1x38x34xf32, #tpu.memory_space<vmem>>, %arg5: memref<1x544x304xf32, #tpu.memory_space<vmem>>, %arg6: memref<1x304xf32, #tpu.memory_space<vmem>>, %arg7: memref<3x20x38xf32, #tpu.memory_space<vmem>>, %arg8: memref<3x304x160xf32, #tpu.memory_space<vmem>>, %arg9: memref<1x160xf32, #tpu.memory_space<vmem>>, %arg10: memref<1x12x20xf32, #tpu.memory_space<vmem>>, %arg11: memref<1x160x24xf32, #tpu.memory_space<vmem>>, %arg12: memref<1x24xf32, #tpu.memory_space<vmem>>, %arg13: memref<2x12x20xf32, #tpu.memory_space<vmem>>, %arg14: memref<2x160x96xf32, #tpu.memory_space<vmem>>, %arg15: memref<1x96xf32, #tpu.memory_space<vmem>>, %arg16: memref<3x12x12xf32, #tpu.memory_space<vmem>>, %arg17: memref<3x24x96xf32, #tpu.memory_space<vmem>>, %arg18: memref<1x96xf32, #tpu.memory_space<vmem>>, %arg19: memref<3x12x12xf32, #tpu.memory_space<vmem>>, %arg20: memref<3x96x96xf32, #tpu.memory_space<vmem>>, %arg21: memref<1x96xf32, #tpu.memory_space<vmem>>, %arg22: memref<12x96xf32, #tpu.memory_space<vmem>>) attributes {dimension_semantics = [], scalar_prefetch = 0 : i64, scratch_operands = 0 : i64, tpu.core_type = #tpu.core_type<tc>} {
    %c0 = arith.constant 0 : index
    %c0_0 = arith.constant 0 : index
    %0 = vector.load %arg0[%c0, %c0_0] : memref<64x96xf32, #tpu.memory_space<vmem>>, vector<64x96xf32>
    %c0_1 = arith.constant 0 : index
    %c0_2 = arith.constant 0 : index
    %c0_3 = arith.constant 0 : index
    %1 = vector.load %arg1[%c0_1, %c0_2, %c0_3] : memref<1x34x64xf32, #tpu.memory_space<vmem>>, vector<1x34x64xf32>
    %2 = vector.shape_cast %1 : vector<1x34x64xf32> to vector<34x64xf32>
    %cst = arith.constant dense<0.000000e+00> : vector<34x96xf32>
    %3 = tpu.matmul %2, %0, %cst {dimension_numbers = #tpu.dot_dimension_numbers<[1], [0], [0], [1], [0, 0, 1, 1], [], []>} : vector<34x64xf32>, vector<64x96xf32>, vector<34x96xf32> -> vector<34x96xf32>
    %c0_4 = arith.constant 0 : index
    %c0_5 = arith.constant 0 : index
    %c0_6 = arith.constant 0 : index
    %4 = vector.load %arg2[%c0_4, %c0_5, %c0_6] : memref<1x96x544xf32, #tpu.memory_space<vmem>>, vector<1x96x544xf32>
    %5 = vector.shape_cast %4 : vector<1x96x544xf32> to vector<96x544xf32>
    %cst_7 = arith.constant dense<0.000000e+00> : vector<34x544xf32>
    %6 = tpu.matmul %3, %5, %cst_7 {dimension_numbers = #tpu.dot_dimension_numbers<[1], [0], [0], [1], [0, 0, 1, 1], [], []>} : vector<34x96xf32>, vector<96x544xf32>, vector<34x544xf32> -> vector<34x544xf32>
    %c0_8 = arith.constant 0 : index
    %c0_9 = arith.constant 0 : index
    %7 = vector.load %arg3[%c0_8, %c0_9] : memref<1x544xf32, #tpu.memory_space<vmem>>, vector<1x544xf32>
    %8 = vector.broadcast %7 : vector<1x544xf32> to vector<34x544xf32>
    %9 = arith.addf %6, %8 : vector<34x544xf32>
    %c0_10 = arith.constant 0 : index
    %c0_11 = arith.constant 0 : index
    %c0_12 = arith.constant 0 : index
    %10 = vector.load %arg4[%c0_10, %c0_11, %c0_12] : memref<1x38x34xf32, #tpu.memory_space<vmem>>, vector<1x38x34xf32>
    %11 = vector.shape_cast %10 : vector<1x38x34xf32> to vector<38x34xf32>
    %cst_13 = arith.constant dense<0.000000e+00> : vector<38x544xf32>
    %12 = tpu.matmul %11, %9, %cst_13 {dimension_numbers = #tpu.dot_dimension_numbers<[1], [0], [0], [1], [0, 0, 1, 1], [], []>} : vector<38x34xf32>, vector<34x544xf32>, vector<38x544xf32> -> vector<38x544xf32>
    %c0_14 = arith.constant 0 : index
    %c0_15 = arith.constant 0 : index
    %c0_16 = arith.constant 0 : index
    %13 = vector.load %arg5[%c0_14, %c0_15, %c0_16] : memref<1x544x304xf32, #tpu.memory_space<vmem>>, vector<1x544x304xf32>
    %14 = vector.shape_cast %13 : vector<1x544x304xf32> to vector<544x304xf32>
    %cst_17 = arith.constant dense<0.000000e+00> : vector<38x304xf32>
    %15 = tpu.matmul %12, %14, %cst_17 {dimension_numbers = #tpu.dot_dimension_numbers<[1], [0], [0], [1], [0, 0, 1, 1], [], []>} : vector<38x544xf32>, vector<544x304xf32>, vector<38x304xf32> -> vector<38x304xf32>
    %c0_18 = arith.constant 0 : index
    %c0_19 = arith.constant 0 : index
    %16 = vector.load %arg6[%c0_18, %c0_19] : memref<1x304xf32, #tpu.memory_space<vmem>>, vector<1x304xf32>
    %17 = vector.broadcast %16 : vector<1x304xf32> to vector<38x304xf32>
    %18 = arith.addf %15, %17 : vector<38x304xf32>
    %c0_20 = arith.constant 0 : index
    %c0_21 = arith.constant 0 : index
    %c0_22 = arith.constant 0 : index
    %19 = vector.load %arg7[%c0_20, %c0_21, %c0_22] : memref<3x20x38xf32, #tpu.memory_space<vmem>>, vector<1x20x38xf32>
    %20 = vector.shape_cast %19 : vector<1x20x38xf32> to vector<20x38xf32>
    %cst_23 = arith.constant dense<0.000000e+00> : vector<20x304xf32>
    %21 = tpu.matmul %20, %18, %cst_23 {dimension_numbers = #tpu.dot_dimension_numbers<[1], [0], [0], [1], [0, 0, 1, 1], [], []>} : vector<20x38xf32>, vector<38x304xf32>, vector<20x304xf32> -> vector<20x304xf32>
    %c0_24 = arith.constant 0 : index
    %c0_25 = arith.constant 0 : index
    %c0_26 = arith.constant 0 : index
    %22 = vector.load %arg8[%c0_24, %c0_25, %c0_26] : memref<3x304x160xf32, #tpu.memory_space<vmem>>, vector<1x304x160xf32>
    %23 = vector.shape_cast %22 : vector<1x304x160xf32> to vector<304x160xf32>
    %cst_27 = arith.constant dense<0.000000e+00> : vector<20x160xf32>
    %24 = tpu.matmul %21, %23, %cst_27 {dimension_numbers = #tpu.dot_dimension_numbers<[1], [0], [0], [1], [0, 0, 1, 1], [], []>} : vector<20x304xf32>, vector<304x160xf32>, vector<20x160xf32> -> vector<20x160xf32>
    %c1 = arith.constant 1 : index
    %c0_28 = arith.constant 0 : index
    %c0_29 = arith.constant 0 : index
    %25 = vector.load %arg7[%c1, %c0_28, %c0_29] : memref<3x20x38xf32, #tpu.memory_space<vmem>>, vector<1x20x38xf32>
    %26 = vector.shape_cast %25 : vector<1x20x38xf32> to vector<20x38xf32>
    %cst_30 = arith.constant dense<0.000000e+00> : vector<20x304xf32>
    %27 = tpu.matmul %26, %18, %cst_30 {dimension_numbers = #tpu.dot_dimension_numbers<[1], [0], [0], [1], [0, 0, 1, 1], [], []>} : vector<20x38xf32>, vector<38x304xf32>, vector<20x304xf32> -> vector<20x304xf32>
    %c1_31 = arith.constant 1 : index
    %c0_32 = arith.constant 0 : index
    %c0_33 = arith.constant 0 : index
    %28 = vector.load %arg8[%c1_31, %c0_32, %c0_33] : memref<3x304x160xf32, #tpu.memory_space<vmem>>, vector<1x304x160xf32>
    %29 = vector.shape_cast %28 : vector<1x304x160xf32> to vector<304x160xf32>
    %cst_34 = arith.constant dense<0.000000e+00> : vector<20x160xf32>
    %30 = tpu.matmul %27, %29, %cst_34 {dimension_numbers = #tpu.dot_dimension_numbers<[1], [0], [0], [1], [0, 0, 1, 1], [], []>} : vector<20x304xf32>, vector<304x160xf32>, vector<20x160xf32> -> vector<20x160xf32>
    %31 = arith.addf %24, %30 : vector<20x160xf32>
    %c2 = arith.constant 2 : index
    %c0_35 = arith.constant 0 : index
    %c0_36 = arith.constant 0 : index
    %32 = vector.load %arg7[%c2, %c0_35, %c0_36] : memref<3x20x38xf32, #tpu.memory_space<vmem>>, vector<1x20x38xf32>
    %33 = vector.shape_cast %32 : vector<1x20x38xf32> to vector<20x38xf32>
    %cst_37 = arith.constant dense<0.000000e+00> : vector<20x304xf32>
    %34 = tpu.matmul %33, %18, %cst_37 {dimension_numbers = #tpu.dot_dimension_numbers<[1], [0], [0], [1], [0, 0, 1, 1], [], []>} : vector<20x38xf32>, vector<38x304xf32>, vector<20x304xf32> -> vector<20x304xf32>
    %c2_38 = arith.constant 2 : index
    %c0_39 = arith.constant 0 : index
    %c0_40 = arith.constant 0 : index
    %35 = vector.load %arg8[%c2_38, %c0_39, %c0_40] : memref<3x304x160xf32, #tpu.memory_space<vmem>>, vector<1x304x160xf32>
    %36 = vector.shape_cast %35 : vector<1x304x160xf32> to vector<304x160xf32>
    %cst_41 = arith.constant dense<0.000000e+00> : vector<20x160xf32>
    %37 = tpu.matmul %34, %36, %cst_41 {dimension_numbers = #tpu.dot_dimension_numbers<[1], [0], [0], [1], [0, 0, 1, 1], [], []>} : vector<20x304xf32>, vector<304x160xf32>, vector<20x160xf32> -> vector<20x160xf32>
    %38 = arith.addf %31, %37 : vector<20x160xf32>
    %c0_42 = arith.constant 0 : index
    %c0_43 = arith.constant 0 : index
    %39 = vector.load %arg9[%c0_42, %c0_43] : memref<1x160xf32, #tpu.memory_space<vmem>>, vector<1x160xf32>
    %40 = vector.broadcast %39 : vector<1x160xf32> to vector<20x160xf32>
    %41 = arith.addf %38, %40 : vector<20x160xf32>
    %c0_44 = arith.constant 0 : index
    %c0_45 = arith.constant 0 : index
    %c0_46 = arith.constant 0 : index
    %42 = vector.load %arg10[%c0_44, %c0_45, %c0_46] : memref<1x12x20xf32, #tpu.memory_space<vmem>>, vector<1x12x20xf32>
    %43 = vector.shape_cast %42 : vector<1x12x20xf32> to vector<12x20xf32>
    %cst_47 = arith.constant dense<0.000000e+00> : vector<12x160xf32>
    %44 = tpu.matmul %43, %41, %cst_47 {dimension_numbers = #tpu.dot_dimension_numbers<[1], [0], [0], [1], [0, 0, 1, 1], [], []>} : vector<12x20xf32>, vector<20x160xf32>, vector<12x160xf32> -> vector<12x160xf32>
    %c0_48 = arith.constant 0 : index
    %c0_49 = arith.constant 0 : index
    %c0_50 = arith.constant 0 : index
    %45 = vector.load %arg11[%c0_48, %c0_49, %c0_50] : memref<1x160x24xf32, #tpu.memory_space<vmem>>, vector<1x160x24xf32>
    %46 = vector.shape_cast %45 : vector<1x160x24xf32> to vector<160x24xf32>
    %cst_51 = arith.constant dense<0.000000e+00> : vector<12x24xf32>
    %47 = tpu.matmul %44, %46, %cst_51 {dimension_numbers = #tpu.dot_dimension_numbers<[1], [0], [0], [1], [0, 0, 1, 1], [], []>} : vector<12x160xf32>, vector<160x24xf32>, vector<12x24xf32> -> vector<12x24xf32>
    %c0_52 = arith.constant 0 : index
    %c0_53 = arith.constant 0 : index
    %48 = vector.load %arg12[%c0_52, %c0_53] : memref<1x24xf32, #tpu.memory_space<vmem>>, vector<1x24xf32>
    %49 = vector.broadcast %48 : vector<1x24xf32> to vector<12x24xf32>
    %50 = arith.addf %47, %49 : vector<12x24xf32>
    %c0_54 = arith.constant 0 : index
    %c0_55 = arith.constant 0 : index
    %c0_56 = arith.constant 0 : index
    %51 = vector.load %arg13[%c0_54, %c0_55, %c0_56] : memref<2x12x20xf32, #tpu.memory_space<vmem>>, vector<1x12x20xf32>
    %52 = vector.shape_cast %51 : vector<1x12x20xf32> to vector<12x20xf32>
    %cst_57 = arith.constant dense<0.000000e+00> : vector<12x160xf32>
    %53 = tpu.matmul %52, %41, %cst_57 {dimension_numbers = #tpu.dot_dimension_numbers<[1], [0], [0], [1], [0, 0, 1, 1], [], []>} : vector<12x20xf32>, vector<20x160xf32>, vector<12x160xf32> -> vector<12x160xf32>
    %c0_58 = arith.constant 0 : index
    %c0_59 = arith.constant 0 : index
    %c0_60 = arith.constant 0 : index
    %54 = vector.load %arg14[%c0_58, %c0_59, %c0_60] : memref<2x160x96xf32, #tpu.memory_space<vmem>>, vector<1x160x96xf32>
    %55 = vector.shape_cast %54 : vector<1x160x96xf32> to vector<160x96xf32>
    %cst_61 = arith.constant dense<0.000000e+00> : vector<12x96xf32>
    %56 = tpu.matmul %53, %55, %cst_61 {dimension_numbers = #tpu.dot_dimension_numbers<[1], [0], [0], [1], [0, 0, 1, 1], [], []>} : vector<12x160xf32>, vector<160x96xf32>, vector<12x96xf32> -> vector<12x96xf32>
    %c1_62 = arith.constant 1 : index
    %c0_63 = arith.constant 0 : index
    %c0_64 = arith.constant 0 : index
    %57 = vector.load %arg13[%c1_62, %c0_63, %c0_64] : memref<2x12x20xf32, #tpu.memory_space<vmem>>, vector<1x12x20xf32>
    %58 = vector.shape_cast %57 : vector<1x12x20xf32> to vector<12x20xf32>
    %cst_65 = arith.constant dense<0.000000e+00> : vector<12x160xf32>
    %59 = tpu.matmul %58, %41, %cst_65 {dimension_numbers = #tpu.dot_dimension_numbers<[1], [0], [0], [1], [0, 0, 1, 1], [], []>} : vector<12x20xf32>, vector<20x160xf32>, vector<12x160xf32> -> vector<12x160xf32>
    %c1_66 = arith.constant 1 : index
    %c0_67 = arith.constant 0 : index
    %c0_68 = arith.constant 0 : index
    %60 = vector.load %arg14[%c1_66, %c0_67, %c0_68] : memref<2x160x96xf32, #tpu.memory_space<vmem>>, vector<1x160x96xf32>
    %61 = vector.shape_cast %60 : vector<1x160x96xf32> to vector<160x96xf32>
    %cst_69 = arith.constant dense<0.000000e+00> : vector<12x96xf32>
    %62 = tpu.matmul %59, %61, %cst_69 {dimension_numbers = #tpu.dot_dimension_numbers<[1], [0], [0], [1], [0, 0, 1, 1], [], []>} : vector<12x160xf32>, vector<160x96xf32>, vector<12x96xf32> -> vector<12x96xf32>
    %63 = arith.addf %56, %62 : vector<12x96xf32>
    %c0_70 = arith.constant 0 : index
    %c0_71 = arith.constant 0 : index
    %64 = vector.load %arg15[%c0_70, %c0_71] : memref<1x96xf32, #tpu.memory_space<vmem>>, vector<1x96xf32>
    %65 = vector.broadcast %64 : vector<1x96xf32> to vector<12x96xf32>
    %66 = arith.addf %63, %65 : vector<12x96xf32>
    %c0_72 = arith.constant 0 : index
    %c0_73 = arith.constant 0 : index
    %c0_74 = arith.constant 0 : index
    %67 = vector.load %arg16[%c0_72, %c0_73, %c0_74] : memref<3x12x12xf32, #tpu.memory_space<vmem>>, vector<1x12x12xf32>
    %68 = vector.shape_cast %67 : vector<1x12x12xf32> to vector<12x12xf32>
    %cst_75 = arith.constant dense<0.000000e+00> : vector<12x24xf32>
    %69 = tpu.matmul %68, %50, %cst_75 {dimension_numbers = #tpu.dot_dimension_numbers<[1], [0], [0], [1], [0, 0, 1, 1], [], []>} : vector<12x12xf32>, vector<12x24xf32>, vector<12x24xf32> -> vector<12x24xf32>
    %c0_76 = arith.constant 0 : index
    %c0_77 = arith.constant 0 : index
    %c0_78 = arith.constant 0 : index
    %70 = vector.load %arg17[%c0_76, %c0_77, %c0_78] : memref<3x24x96xf32, #tpu.memory_space<vmem>>, vector<1x24x96xf32>
    %71 = vector.shape_cast %70 : vector<1x24x96xf32> to vector<24x96xf32>
    %cst_79 = arith.constant dense<0.000000e+00> : vector<12x96xf32>
    %72 = tpu.matmul %69, %71, %cst_79 {dimension_numbers = #tpu.dot_dimension_numbers<[1], [0], [0], [1], [0, 0, 1, 1], [], []>} : vector<12x24xf32>, vector<24x96xf32>, vector<12x96xf32> -> vector<12x96xf32>
    %c1_80 = arith.constant 1 : index
    %c0_81 = arith.constant 0 : index
    %c0_82 = arith.constant 0 : index
    %73 = vector.load %arg16[%c1_80, %c0_81, %c0_82] : memref<3x12x12xf32, #tpu.memory_space<vmem>>, vector<1x12x12xf32>
    %74 = vector.shape_cast %73 : vector<1x12x12xf32> to vector<12x12xf32>
    %cst_83 = arith.constant dense<0.000000e+00> : vector<12x24xf32>
    %75 = tpu.matmul %74, %50, %cst_83 {dimension_numbers = #tpu.dot_dimension_numbers<[1], [0], [0], [1], [0, 0, 1, 1], [], []>} : vector<12x12xf32>, vector<12x24xf32>, vector<12x24xf32> -> vector<12x24xf32>
    %c1_84 = arith.constant 1 : index
    %c0_85 = arith.constant 0 : index
    %c0_86 = arith.constant 0 : index
    %76 = vector.load %arg17[%c1_84, %c0_85, %c0_86] : memref<3x24x96xf32, #tpu.memory_space<vmem>>, vector<1x24x96xf32>
    %77 = vector.shape_cast %76 : vector<1x24x96xf32> to vector<24x96xf32>
    %cst_87 = arith.constant dense<0.000000e+00> : vector<12x96xf32>
    %78 = tpu.matmul %75, %77, %cst_87 {dimension_numbers = #tpu.dot_dimension_numbers<[1], [0], [0], [1], [0, 0, 1, 1], [], []>} : vector<12x24xf32>, vector<24x96xf32>, vector<12x96xf32> -> vector<12x96xf32>
    %79 = arith.addf %72, %78 : vector<12x96xf32>
    %c2_88 = arith.constant 2 : index
    %c0_89 = arith.constant 0 : index
    %c0_90 = arith.constant 0 : index
    %80 = vector.load %arg16[%c2_88, %c0_89, %c0_90] : memref<3x12x12xf32, #tpu.memory_space<vmem>>, vector<1x12x12xf32>
    %81 = vector.shape_cast %80 : vector<1x12x12xf32> to vector<12x12xf32>
    %cst_91 = arith.constant dense<0.000000e+00> : vector<12x24xf32>
    %82 = tpu.matmul %81, %50, %cst_91 {dimension_numbers = #tpu.dot_dimension_numbers<[1], [0], [0], [1], [0, 0, 1, 1], [], []>} : vector<12x12xf32>, vector<12x24xf32>, vector<12x24xf32> -> vector<12x24xf32>
    %c2_92 = arith.constant 2 : index
    %c0_93 = arith.constant 0 : index
    %c0_94 = arith.constant 0 : index
    %83 = vector.load %arg17[%c2_92, %c0_93, %c0_94] : memref<3x24x96xf32, #tpu.memory_space<vmem>>, vector<1x24x96xf32>
    %84 = vector.shape_cast %83 : vector<1x24x96xf32> to vector<24x96xf32>
    %cst_95 = arith.constant dense<0.000000e+00> : vector<12x96xf32>
    %85 = tpu.matmul %82, %84, %cst_95 {dimension_numbers = #tpu.dot_dimension_numbers<[1], [0], [0], [1], [0, 0, 1, 1], [], []>} : vector<12x24xf32>, vector<24x96xf32>, vector<12x96xf32> -> vector<12x96xf32>
    %86 = arith.addf %79, %85 : vector<12x96xf32>
    %c0_96 = arith.constant 0 : index
    %c0_97 = arith.constant 0 : index
    %87 = vector.load %arg18[%c0_96, %c0_97] : memref<1x96xf32, #tpu.memory_space<vmem>>, vector<1x96xf32>
    %88 = vector.broadcast %87 : vector<1x96xf32> to vector<12x96xf32>
    %89 = arith.addf %86, %88 : vector<12x96xf32>
    %c0_98 = arith.constant 0 : index
    %c0_99 = arith.constant 0 : index
    %c0_100 = arith.constant 0 : index
    %90 = vector.load %arg19[%c0_98, %c0_99, %c0_100] : memref<3x12x12xf32, #tpu.memory_space<vmem>>, vector<1x12x12xf32>
    %91 = vector.shape_cast %90 : vector<1x12x12xf32> to vector<12x12xf32>
    %cst_101 = arith.constant dense<0.000000e+00> : vector<12x96xf32>
    %92 = tpu.matmul %91, %66, %cst_101 {dimension_numbers = #tpu.dot_dimension_numbers<[1], [0], [0], [1], [0, 0, 1, 1], [], []>} : vector<12x12xf32>, vector<12x96xf32>, vector<12x96xf32> -> vector<12x96xf32>
    %c0_102 = arith.constant 0 : index
    %c0_103 = arith.constant 0 : index
    %c0_104 = arith.constant 0 : index
    %93 = vector.load %arg20[%c0_102, %c0_103, %c0_104] : memref<3x96x96xf32, #tpu.memory_space<vmem>>, vector<1x96x96xf32>
    %94 = vector.shape_cast %93 : vector<1x96x96xf32> to vector<96x96xf32>
    %cst_105 = arith.constant dense<0.000000e+00> : vector<12x96xf32>
    %95 = tpu.matmul %92, %94, %cst_105 {dimension_numbers = #tpu.dot_dimension_numbers<[1], [0], [0], [1], [0, 0, 1, 1], [], []>} : vector<12x96xf32>, vector<96x96xf32>, vector<12x96xf32> -> vector<12x96xf32>
    %c1_106 = arith.constant 1 : index
    %c0_107 = arith.constant 0 : index
    %c0_108 = arith.constant 0 : index
    %96 = vector.load %arg19[%c1_106, %c0_107, %c0_108] : memref<3x12x12xf32, #tpu.memory_space<vmem>>, vector<1x12x12xf32>
    %97 = vector.shape_cast %96 : vector<1x12x12xf32> to vector<12x12xf32>
    %cst_109 = arith.constant dense<0.000000e+00> : vector<12x96xf32>
    %98 = tpu.matmul %97, %66, %cst_109 {dimension_numbers = #tpu.dot_dimension_numbers<[1], [0], [0], [1], [0, 0, 1, 1], [], []>} : vector<12x12xf32>, vector<12x96xf32>, vector<12x96xf32> -> vector<12x96xf32>
    %c1_110 = arith.constant 1 : index
    %c0_111 = arith.constant 0 : index
    %c0_112 = arith.constant 0 : index
    %99 = vector.load %arg20[%c1_110, %c0_111, %c0_112] : memref<3x96x96xf32, #tpu.memory_space<vmem>>, vector<1x96x96xf32>
    %100 = vector.shape_cast %99 : vector<1x96x96xf32> to vector<96x96xf32>
    %cst_113 = arith.constant dense<0.000000e+00> : vector<12x96xf32>
    %101 = tpu.matmul %98, %100, %cst_113 {dimension_numbers = #tpu.dot_dimension_numbers<[1], [0], [0], [1], [0, 0, 1, 1], [], []>} : vector<12x96xf32>, vector<96x96xf32>, vector<12x96xf32> -> vector<12x96xf32>
    %102 = arith.addf %95, %101 : vector<12x96xf32>
    %c2_114 = arith.constant 2 : index
    %c0_115 = arith.constant 0 : index
    %c0_116 = arith.constant 0 : index
    %103 = vector.load %arg19[%c2_114, %c0_115, %c0_116] : memref<3x12x12xf32, #tpu.memory_space<vmem>>, vector<1x12x12xf32>
    %104 = vector.shape_cast %103 : vector<1x12x12xf32> to vector<12x12xf32>
    %cst_117 = arith.constant dense<0.000000e+00> : vector<12x96xf32>
    %105 = tpu.matmul %104, %66, %cst_117 {dimension_numbers = #tpu.dot_dimension_numbers<[1], [0], [0], [1], [0, 0, 1, 1], [], []>} : vector<12x12xf32>, vector<12x96xf32>, vector<12x96xf32> -> vector<12x96xf32>
    %c2_118 = arith.constant 2 : index
    %c0_119 = arith.constant 0 : index
    %c0_120 = arith.constant 0 : index
    %106 = vector.load %arg20[%c2_118, %c0_119, %c0_120] : memref<3x96x96xf32, #tpu.memory_space<vmem>>, vector<1x96x96xf32>
    %107 = vector.shape_cast %106 : vector<1x96x96xf32> to vector<96x96xf32>
    %cst_121 = arith.constant dense<0.000000e+00> : vector<12x96xf32>
    %108 = tpu.matmul %105, %107, %cst_121 {dimension_numbers = #tpu.dot_dimension_numbers<[1], [0], [0], [1], [0, 0, 1, 1], [], []>} : vector<12x96xf32>, vector<96x96xf32>, vector<12x96xf32> -> vector<12x96xf32>
    %109 = arith.addf %102, %108 : vector<12x96xf32>
    %c0_122 = arith.constant 0 : index
    %c0_123 = arith.constant 0 : index
    %110 = vector.load %arg21[%c0_122, %c0_123] : memref<1x96xf32, #tpu.memory_space<vmem>>, vector<1x96xf32>
    %111 = vector.broadcast %110 : vector<1x96xf32> to vector<12x96xf32>
    %112 = arith.addf %109, %111 : vector<12x96xf32>
    %113 = arith.addf %89, %112 : vector<12x96xf32>
    %c0_124 = arith.constant 0 : index
    %c0_125 = arith.constant 0 : index
    %114 = vector.load %arg22[%c0_124, %c0_125] : memref<12x96xf32, #tpu.memory_space<vmem>>, vector<12x96xf32>
    tpu.vector_store %arg22[%c0_124, %c0_125], %113 {strides = array<i32>} : memref<12x96xf32, #tpu.memory_space<vmem>>, vector<12x96xf32>,
    return
  }
}

</mosaic_0001>

<llo_original>
// kernel: _fused_forward.1
$region0: #{_fused_forward.1}
  #allocation0 [shape = 'u32[]', space=smem, size = 0x4, offset = 0x4, fixed_abs, tag = 'smem constant byte address 0x4 - core index']
  #allocation1 [shape = 'u32[144,128]{1,0:T(1,128)}', space=vmem, size = 0x12000, scoped, tag = 'internal scratch']
  %s0 = inlined_call_operand.vmem [shape: f32[64,96], index: 0, kind: input, shape index: {}]
  %s1 = inlined_call_operand.vmem [shape: f32[1,34,64], index: 1, kind: input, shape index: {}]
  %s2 = inlined_call_operand.vmem [shape: f32[1,96,544], index: 2, kind: input, shape index: {}]
  %s3 = inlined_call_operand.vmem [shape: f32[1,544], index: 3, kind: input, shape index: {}]
  %s4 = inlined_call_operand.vmem [shape: f32[1,38,34], index: 4, kind: input, shape index: {}]
  %s5 = inlined_call_operand.vmem [shape: f32[1,544,304], index: 5, kind: input, shape index: {}]
  %s6 = inlined_call_operand.vmem [shape: f32[1,304], index: 6, kind: input, shape index: {}]
  %s7 = inlined_call_operand.vmem [shape: f32[3,20,38], index: 7, kind: input, shape index: {}]
  %s8 = inlined_call_operand.vmem [shape: f32[3,304,160], index: 8, kind: input, shape index: {}]
  %s9 = inlined_call_operand.vmem [shape: f32[1,160], index: 9, kind: input, shape index: {}]
  %s10 = inlined_call_operand.vmem [shape: f32[1,12,20], index: 10, kind: input, shape index: {}]
  %s11 = inlined_call_operand.vmem [shape: f32[1,160,24], index: 11, kind: input, shape index: {}]
  %s12 = inlined_call_operand.vmem [shape: f32[1,24], index: 12, kind: input, shape index: {}]
  %s13 = inlined_call_operand.vmem [shape: f32[2,12,20], index: 13, kind: input, shape index: {}]
  %s14 = inlined_call_operand.vmem [shape: f32[2,160,96], index: 14, kind: input, shape index: {}]
  %s15 = inlined_call_operand.vmem [shape: f32[1,96], index: 15, kind: input, shape index: {}]
  %s16 = inlined_call_operand.vmem [shape: f32[3,12,12], index: 16, kind: input, shape index: {}]
  %s17 = inlined_call_operand.vmem [shape: f32[3,24,96], index: 17, kind: input, shape index: {}]
  %s18 = inlined_call_operand.vmem [shape: f32[1,96], index: 18, kind: input, shape index: {}]
  %s19 = inlined_call_operand.vmem [shape: f32[3,12,12], index: 19, kind: input, shape index: {}]
  %s20 = inlined_call_operand.vmem [shape: f32[3,96,96], index: 20, kind: input, shape index: {}]
  %s21 = inlined_call_operand.vmem [shape: f32[1,96], index: 21, kind: input, shape index: {}]
  %s22 = inlined_call_operand.vmem [shape: f32[12,96], index: 22, kind: output, shape index: {}]
  %s23 = sld [smem:[#allocation0]]
  $region98: #{_fused_forward.1} parent=0
    _
  %s25 = ssub.s32 1, %s23
  %s26 = scalar_select 0, %s25, %s23
  // Predicated region
  $region2: #{_fused_forward.1} parent=0 // pred_check
    _
  $region3: #{_fused_forward.1} parent=0 // pred_check_branch
    %28 = sbr.rel (0) target = $region5
  $region4: #{_fused_forward.1} parent=0 // pred_region
    _
  $region5: #{_fused_forward.1} parent=0 // pred_fallthru
    _
  // Predicated region
  $region6: #{_fused_forward.1} parent=0 // pred_check
    _
  $region7: #{_fused_forward.1} parent=0 // pred_check_branch
    %30 = sbr.rel (0) target = $region9
  $region8: #{_fused_forward.1} parent=0 // pred_region
    _
  $region9: #{_fused_forward.1} parent=0 // pred_fallthru
    _
  // Predicated region
  $region10: #{_fused_forward.1} parent=0 // pred_check
    _
  $region11: #{_fused_forward.1} parent=0 // pred_check_branch
    %32 = sbr.rel (0) target = $region13
  $region12: #{_fused_forward.1} parent=0 // pred_region
    _
  $region13: #{_fused_forward.1} parent=0 // pred_fallthru
    _
  // Predicated region
  $region14: #{_fused_forward.1} parent=0 // pred_check
    _
  $region15: #{_fused_forward.1} parent=0 // pred_check_branch
    %34 = sbr.rel (0) target = $region17
  $region16: #{_fused_forward.1} parent=0 // pred_region
    _
  $region17: #{_fused_forward.1} parent=0 // pred_fallthru
    _
  // Predicated region
  $region18: #{_fused_forward.1} parent=0 // pred_check
    _
  $region19: #{_fused_forward.1} parent=0 // pred_check_branch
    %36 = sbr.rel (0) target = $region21
  $region20: #{_fused_forward.1} parent=0 // pred_region
    _
  $region21: #{_fused_forward.1} parent=0 // pred_fallthru
    _
  // Predicated region
  $region22: #{_fused_forward.1} parent=0 // pred_check
    _
  $region23: #{_fused_forward.1} parent=0 // pred_check_branch
    %38 = sbr.rel (0) target = $region25
  $region24: #{_fused_forward.1} parent=0 // pred_region
    _
  $region25: #{_fused_forward.1} parent=0 // pred_fallthru
    _
  // Predicated region
  $region26: #{_fused_forward.1} parent=0 // pred_check
    _
  $region27: #{_fused_forward.1} parent=0 // pred_check_branch
    %40 = sbr.rel (0) target = $region29
  $region28: #{_fused_forward.1} parent=0 // pred_region
    _
  $region29: #{_fused_forward.1} parent=0 // pred_fallthru
    _
  // Predicated region
  $region30: #{_fused_forward.1} parent=0 // pred_check
    _
  $region31: #{_fused_forward.1} parent=0 // pred_check_branch
    %42 = sbr.rel (0) target = $region33
  $region32: #{_fused_forward.1} parent=0 // pred_region
    _
  $region33: #{_fused_forward.1} parent=0 // pred_fallthru
    _
  // Predicated region
  $region34: #{_fused_forward.1} parent=0 // pred_check
    _
  $region35: #{_fused_forward.1} parent=0 // pred_check_branch
    %44 = sbr.rel (0) target = $region37
  $region36: #{_fused_forward.1} parent=0 // pred_region
    _
  $region37: #{_fused_forward.1} parent=0 // pred_fallthru
    _
  // Predicated region
  $region38: #{_fused_forward.1} parent=0 // pred_check
    _
  $region39: #{_fused_forward.1} parent=0 // pred_check_branch
    %46 = sbr.rel (0) target = $region41
  $region40: #{_fused_forward.1} parent=0 // pred_region
    _
  $region41: #{_fused_forward.1} parent=0 // pred_fallthru
    _
  // Predicated region
  $region42: #{_fused_forward.1} parent=0 // pred_check
    _
  $region43: #{_fused_forward.1} parent=0 // pred_check_branch
    %48 = sbr.rel (0) target = $region45
  $region44: #{_fused_forward.1} parent=0 // pred_region
    _
  $region45: #{_fused_forward.1} parent=0 // pred_fallthru
    _
  // Predicated region
  $region46: #{_fused_forward.1} parent=0 // pred_check
    _
  $region47: #{_fused_forward.1} parent=0 // pred_check_branch
    %50 = sbr.rel (0) target = $region49
  $region48: #{_fused_forward.1} parent=0 // pred_region
    _
  $region49: #{_fused_forward.1} parent=0 // pred_fallthru
    _
  // Predicated region
  $region50: #{_fused_forward.1} parent=0 // pred_check
    _
  $region51: #{_fused_forward.1} parent=0 // pred_check_branch
    %52 = sbr.rel (0) target = $region53
  $region52: #{_fused_forward.1} parent=0 // pred_region
    _
  $region53: #{_fused_forward.1} parent=0 // pred_fallthru
    _
  // Predicated region
  $region54: #{_fused_forward.1} parent=0 // pred_check
    _
  $region55: #{_fused_forward.1} parent=0 // pred_check_branch
    %54 = sbr.rel (0) target = $region57
  $region56: #{_fused_forward.1} parent=0 // pred_region
    _
  $region57: #{_fused_forward.1} parent=0 // pred_fallthru
    _
  // Predicated region
  $region58: #{_fused_forward.1} parent=0 // pred_check
    _
  $region59: #{_fused_forward.1} parent=0 // pred_check_branch
    %56 = sbr.rel (0) target = $region61
  $region60: #{_fused_forward.1} parent=0 // pred_region
    _
  $region61: #{_fused_forward.1} parent=0 // pred_fallthru
    _
  // Predicated region
  $region62: #{_fused_forward.1} parent=0 // pred_check
    _
  $region63: #{_fused_forward.1} parent=0 // pred_check_branch
    %58 = sbr.rel (0) target = $region65
  $region64: #{_fused_forward.1} parent=0 // pred_region
    _
  $region65: #{_fused_forward.1} parent=0 // pred_fallthru
    _
  // Predicated region
  $region66: #{_fused_forward.1} parent=0 // pred_check
    _
  $region67: #{_fused_forward.1} parent=0 // pred_check_branch
    %60 = sbr.rel (0) target = $region69
  $region68: #{_fused_forward.1} parent=0 // pred_region
    _
  $region69: #{_fused_forward.1} parent=0 // pred_fallthru
    _
  // Predicated region
  $region70: #{_fused_forward.1} parent=0 // pred_check
    _
  $region71: #{_fused_forward.1} parent=0 // pred_check_branch
    %62 = sbr.rel (0) target = $region73
  $region72: #{_fused_forward.1} parent=0 // pred_region
    _
  $region73: #{_fused_forward.1} parent=0 // pred_fallthru
    _
  // Predicated region
  $region74: #{_fused_forward.1} parent=0 // pred_check
    _
  $region75: #{_fused_forward.1} parent=0 // pred_check_branch
    %64 = sbr.rel (0) target = $region77
  $region76: #{_fused_forward.1} parent=0 // pred_region
    _
  $region77: #{_fused_forward.1} parent=0 // pred_fallthru
    _
  // Predicated region
  $region78: #{_fused_forward.1} parent=0 // pred_check
    _
  $region79: #{_fused_forward.1} parent=0 // pred_check_branch
    %66 = sbr.rel (0) target = $region81
  $region80: #{_fused_forward.1} parent=0 // pred_region
    _
  $region81: #{_fused_forward.1} parent=0 // pred_fallthru
    _
  // Predicated region
  $region82: #{_fused_forward.1} parent=0 // pred_check
    _
  $region83: #{_fused_forward.1} parent=0 // pred_check_branch
    %68 = sbr.rel (0) target = $region85
  $region84: #{_fused_forward.1} parent=0 // pred_region
    _
  $region85: #{_fused_forward.1} parent=0 // pred_fallthru
    _
  // Predicated region
  $region86: #{_fused_forward.1} parent=0 // pred_check
    _
  $region87: #{_fused_forward.1} parent=0 // pred_check_branch
    %70 = sbr.rel (0) target = $region89
  $region88: #{_fused_forward.1} parent=0 // pred_region
    _
  $region89: #{_fused_forward.1} parent=0 // pred_fallthru
    _
  %v71 = vld [vmem:[%s0] sm:$0xff]
  %v72 = vld [vmem:[%s0 + $0x8] sm:$0xff]
  %v73 = vld [vmem:[%s0 + $0x10] sm:$0xff]
  %v74 = vld [vmem:[%s0 + $0x18] sm:$0xff]
  %v75 = vld [vmem:[%s0 + $0x20] sm:$0xff]
  %v76 = vld [vmem:[%s0 + $0x28] sm:$0xff]
  %v77 = vld [vmem:[%s0 + $0x30] sm:$0xff]
  %v78 = vld [vmem:[%s0 + $0x38] sm:$0xff]
  %v79 = vld [vmem:[%s1] sm:$0xff]
  %v80 = vld [vmem:[%s1 + $0x8] sm:$0xff]
  %v81 = vld [vmem:[%s1 + $0x10] sm:$0xff]
  %v82 = vld [vmem:[%s1 + $0x18] sm:$0xff]
  %v83 = vld [vmem:[%s1 + $0x20] sm:$0x3]
  %vm84 = vcmask 523264
  %v86 = vsel %vm84, %v79, 0
  %v89 = vsel %vm84, %v80, 0
  %v92 = vsel %vm84, %v81, 0
  %v95 = vsel %vm84, %v82, 0
  %v98 = vsel %vm84, %v83, 0
  %100 = vmatprep.subr.mxu0 0.0
  %101 = vmatpush1.msra.mxu0 0.0
  %102 = vmatprep.subr.mxu0 0.0
  %103 = vmatpush1.msra.mxu0 0.0
  %104 = vmatprep.subr.mxu0 0.0
  %105 = vmatpush1.msra.mxu0 0.0
  %106 = vmatprep.subr.mxu0 0.0
  %107 = vmatpush1.msra.mxu0 0.0
  %108 = vmatprep.subr.mxu0 0.0
  %109 = vmatpush1.msra.mxu0 0.0
  %110 = vmatprep.subr.mxu0 0.0
  %111 = vmatpush1.msra.mxu0 0.0
  %112 = vmatprep.subr.mxu0 0.0
  %113 = vmatpush1.msra.mxu0 0.0
  %114 = vmatprep.subr.mxu0 0.0
  %115 = vmatpush1.msra.mxu0 0.0
  %116 = vmatprep.subr.mxu0 0.0
  %117 = vmatpush1.msra.mxu0 %v78
  %118 = vmatprep.subr.mxu0 0.0
  %119 = vmatpush1.msra.mxu0 %v77
  %120 = vmatprep.subr.mxu0 0.0
  %121 = vmatpush1.msra.mxu0 %v76
  %122 = vmatprep.subr.mxu0 0.0
  %123 = vmatpush1.msra.mxu0 %v75
  %124 = vmatprep.subr.mxu0 0.0
  %125 = vmatpush1.msra.mxu0 %v74
  %126 = vmatprep.subr.mxu0 0.0
  %127 = vmatpush1.msra.mxu0 %v73
  %128 = vmatprep.subr.mxu0 0.0
  %129 = vmatpush1.msra.mxu0 %v72
  %130 = vmatprep.subr.mxu0 0.0
  %131 = vmatpush1.msra.mxu0 %v71
  %132 = vmatprep.subr.mxu0 0.0
  %133 = vmatpush2.msra.mxu0 0.0
  %134 = vmatprep.subr.mxu0 0.0
  %135 = vmatpush2.msra.mxu0 0.0
  %136 = vmatprep.subr.mxu0 0.0
  %137 = vmatpush2.msra.mxu0 0.0
  %138 = vmatprep.subr.mxu0 0.0
  %139 = vmatpush2.msra.mxu0 0.0
  %140 = vmatprep.subr.mxu0 0.0
  %141 = vmatpush2.msra.mxu0 0.0
  %142 = vmatprep.subr.mxu0 0.0
  %143 = vmatpush2.msra.mxu0 0.0
  %144 = vmatprep.subr.mxu0 0.0
  %145 = vmatpush2.msra.mxu0 0.0
  %146 = vmatprep.subr.mxu0 0.0
  %147 = vmatpush2.msra.mxu0 0.0
  %148 = vmatprep.subr.mxu0 0.0
  %149 = vmatpush2.msra.mxu0 0.0
  %150 = vmatprep.subr.mxu0 0.0
  %151 = vmatpush2.msra.mxu0 0.0
  %152 = vmatprep.subr.mxu0 0.0
  %153 = vmatpush2.msra.mxu0 0.0
  %154 = vmatprep.subr.mxu0 0.0
  %155 = vmatpush2.msra.mxu0 0.0
  %156 = vmatprep.subr.mxu0 0.0
  %157 = vmatpush2.msra.mxu0 0.0
  %158 = vmatprep.subr.mxu0 0.0
  %159 = vmatpush2.msra.mxu0 0.0
  %160 = vmatprep.subr.mxu0 0.0
  %161 = vmatpush2.msra.mxu0 0.0
  %162 = vmatprep.subr.mxu0 0.0
  %163 = vmatpush2.msra.mxu0 0.0
  %164 = vmatprep.mubr.f32.mxu0 0.0
  %165 = vmatmul.mubr.f32.gmra.mxu0 %v86
  %v166 = vpop.f32.mrf.mxu0
  %v167 = vadd.f32 0.0, %v166
  %v168 = vpop.f32.mrf.mxu0
  %169 = vmatprep.mubr.f32.mxu0 0.0
  %170 = vmatmul.mubr.f32.gmra.mxu0 %v89
  %v171 = vpop.f32.mrf.mxu0
  %v172 = vadd.f32 0.0, %v171
  %v173 = vpop.f32.mrf.mxu0
  %174 = vmatprep.mubr.f32.mxu0 0.0
  %175 = vmatmul.mubr.f32.gmra.mxu0 %v92
  %v176 = vpop.f32.mrf.mxu0
  %v177 = vadd.f32 0.0, %v176
  %v178 = vpop.f32.mrf.mxu0
  %179 = vmatprep.mubr.f32.mxu0 0.0
  %180 = vmatmul.mubr.f32.gmra.mxu0 %v95
  %v181 = vpop.f32.mrf.mxu0
  %v182 = vadd.f32 0.0, %v181
  %v183 = vpop.f32.mrf.mxu0
  %184 = vmatprep.mubr.f32.mxu0 0.0
  %185 = vmatmul.mubr.f32.gmra.mxu0 %v98
  %v186 = vpop.f32.mrf.mxu0
  %v187 = vadd.f32 0.0, %v186
  %v188 = vpop.f32.mrf.mxu0
  %189 = vdwg.mxu0
  %v190 = vld [vmem:[%s2] sm:$0xff]
  %v191 = vld [vmem:[%s2 + $0x8] sm:$0xff]
  %v192 = vld [vmem:[%s2 + $0x10] sm:$0xff]
  %v193 = vld [vmem:[%s2 + $0x18] sm:$0xff]
  %v194 = vld [vmem:[%s2 + $0x20] sm:$0xff]
  %v195 = vld [vmem:[%s2 + $0x28] sm:$0xff]
  %v196 = vld [vmem:[%s2 + $0x30] sm:$0xff]
  %v197 = vld [vmem:[%s2 + $0x38] sm:$0xff]
  %v198 = vld [vmem:[%s2 + $0x40] sm:$0xff]
  %v199 = vld [vmem:[%s2 + $0x48] sm:$0xff]
  %v200 = vld [vmem:[%s2 + $0x50] sm:$0xff]
  %v201 = vld [vmem:[%s2 + $0x58] sm:$0xff]
  %v202 = vld [vmem:[%s2 + $0x60] sm:$0xff]
  %v203 = vld [vmem:[%s2 + $0x68] sm:$0xff]
  %v204 = vld [vmem:[%s2 + $0x70] sm:$0xff]
  %v205 = vld [vmem:[%s2 + $0x78] sm:$0xff]
  %v206 = vld [vmem:[%s2 + $0x80] sm:$0xff]
  %v207 = vld [vmem:[%s2 + $0x88] sm:$0xff]
  %v208 = vld [vmem:[%s2 + $0x90] sm:$0xff]
  %v209 = vld [vmem:[%s2 + $0x98] sm:$0xff]
  %v210 = vld [vmem:[%s2 + $0xa0] sm:$0xff]
  %v211 = vld [vmem:[%s2 + $0xa8] sm:$0xff]
  %v212 = vld [vmem:[%s2 + $0xb0] sm:$0xff]
  %v213 = vld [vmem:[%s2 + $0xb8] sm:$0xff]
  %v214 = vld [vmem:[%s2 + $0xc0] sm:$0xff]
  %v215 = vld [vmem:[%s2 + $0xc8] sm:$0xff]
  %v216 = vld [vmem:[%s2 + $0xd0] sm:$0xff]
  %v217 = vld [vmem:[%s2 + $0xd8] sm:$0xff]
  %v218 = vld [vmem:[%s2 + $0xe0] sm:$0xff]
  %v219 = vld [vmem:[%s2 + $0xe8] sm:$0xff]
  %v220 = vld [vmem:[%s2 + $0xf0] sm:$0xff]
  %v221 = vld [vmem:[%s2 + $0xf8] sm:$0xff]
  %v222 = vld [vmem:[%s2 + $0x100] sm:$0xff]
  %v223 = vld [vmem:[%s2 + $0x108] sm:$0xff]
  %v224 = vld [vmem:[%s2 + $0x110] sm:$0xff]
  %v225 = vld [vmem:[%s2 + $0x118] sm:$0xff]
  %v226 = vld [vmem:[%s2 + $0x120] sm:$0xff]
  %v227 = vld [vmem:[%s2 + $0x128] sm:$0xff]
  %v228 = vld [vmem:[%s2 + $0x130] sm:$0xff]
  %v229 = vld [vmem:[%s2 + $0x138] sm:$0xff]
  %v230 = vld [vmem:[%s2 + $0x140] sm:$0xff]
  %v231 = vld [vmem:[%s2 + $0x148] sm:$0xff]
  %v232 = vld [vmem:[%s2 + $0x150] sm:$0xff]
  %v233 = vld [vmem:[%s2 + $0x158] sm:$0xff]
  %v234 = vld [vmem:[%s2 + $0x160] sm:$0xff]
  %v235 = vld [vmem:[%s2 + $0x168] sm:$0xff]
  %v236 = vld [vmem:[%s2 + $0x170] sm:$0xff]
  %v237 = vld [vmem:[%s2 + $0x178] sm:$0xff]
  %v238 = vld [vmem:[%s2 + $0x180] sm:$0xff]
  %v239 = vld [vmem:[%s2 + $0x188] sm:$0xff]
  %v240 = vld [vmem:[%s2 + $0x190] sm:$0xff]
  %v241 = vld [vmem:[%s2 + $0x198] sm:$0xff]
  %v242 = vld [vmem:[%s2 + $0x1a0] sm:$0xff]
  %v243 = vld [vmem:[%s2 + $0x1a8] sm:$0xff]
  %v244 = vld [vmem:[%s2 + $0x1b0] sm:$0xff]
  %v245 = vld [vmem:[%s2 + $0x1b8] sm:$0xff]
  %v246 = vld [vmem:[%s2 + $0x1c0] sm:$0xff]
  %v247 = vld [vmem:[%s2 + $0x1c8] sm:$0xff]
  %v248 = vld [vmem:[%s2 + $0x1d0] sm:$0xff]
  %v249 = vld [vmem:[%s2 + $0x1d8] sm:$0xff]
  %v250 = vld [vmem:[%s3] sm:$0x1f]
  %v252 = vlaneseq
  %v253 = vshrl.u32 %v252, 7
  %v254 = vsub.s32 0, %v253
  %v255 = vrot.slane %v250, %v254
  %v256 = vlaneseq
  %v257 = vshrl.u32 %v256, 7
  %v258 = vsub.s32 1, %v257
  %v259 = vrot.slane %v250, %v258
  %v260 = vlaneseq
  %v261 = vshrl.u32 %v260, 7
  %v262 = vsub.s32 2, %v261
  %v263 = vrot.slane %v250, %v262
  %v264 = vlaneseq
  %v265 = vshrl.u32 %v264, 7
  %v266 = vsub.s32 3, %v265
  %v267 = vrot.slane %v250, %v266
  %v268 = vlaneseq
  %v269 = vshrl.u32 %v268, 7
  %v270 = vsub.s32 4, %v269
  %v271 = vrot.slane %v250, %v270
  %vm277 = vcmask 785408
  %v279 = vsel %vm277, %v167, 0
  %v282 = vsel %vm277, %v172, 0
  %v285 = vsel %vm277, %v177, 0
  %v288 = vsel %vm277, %v182, 0
  %v291 = vsel %vm277, %v187, 0
  %293 = vmatprep.subr.mxu0 0.0
  %294 = vmatpush1.msra.mxu0 0.0
  %295 = vmatprep.subr.mxu0 0.0
  %296 = vmatpush1.msra.mxu0 0.0
  %297 = vmatprep.subr.mxu0 0.0
  %298 = vmatpush1.msra.mxu0 0.0
  %299 = vmatprep.subr.mxu0 0.0
  %300 = vmatpush1.msra.mxu0 0.0
  %301 = vmatprep.subr.mxu0 %v246
  %302 = vmatpush1.msra.mxu0 %v245
  %303 = vmatprep.subr.mxu0 %v241
  %304 = vmatpush1.msra.mxu0 %v240
  %305 = vmatprep.subr.mxu0 %v236
  %306 = vmatpush1.msra.mxu0 %v235
  %307 = vmatprep.subr.mxu0 %v231
  %308 = vmatpush1.msra.mxu0 %v230
  %309 = vmatprep.subr.mxu0 %v226
  %310 = vmatpush1.msra.mxu0 %v225
  %311 = vmatprep.subr.mxu0 %v221
  %312 = vmatpush1.msra.mxu0 %v220
  %313 = vmatprep.subr.mxu0 %v216
  %314 = vmatpush1.msra.mxu0 %v215
  %315 = vmatprep.subr.mxu0 %v211
  %316 = vmatpush1.msra.mxu0 %v210
  %317 = vmatprep.subr.mxu0 %v206
  %318 = vmatpush1.msra.mxu0 %v205
  %319 = vmatprep.subr.mxu0 %v201
  %320 = vmatpush1.msra.mxu0 %v200
  %321 = vmatprep.subr.mxu0 %v196
  %322 = vmatpush1.msra.mxu0 %v195
  %323 = vmatprep.subr.mxu0 %v191
  %324 = vmatpush1.msra.mxu0 %v190
  %325 = vmatprep.subr.mxu0 0.0
  %326 = vmatpush2.msra.mxu0 0.0
  %327 = vmatprep.subr.mxu0 0.0
  %328 = vmatpush2.msra.mxu0 0.0
  %329 = vmatprep.subr.mxu0 0.0
  %330 = vmatpush2.msra.mxu0 0.0
  %331 = vmatprep.subr.mxu0 0.0
  %332 = vmatpush2.msra.mxu0 0.0
  %333 = vmatprep.subr.mxu0 0.0
  %334 = vmatpush2.msra.mxu0 0.0
  %335 = vmatprep.subr.mxu0 0.0
  %336 = vmatpush2.msra.mxu0 0.0
  %337 = vmatprep.subr.mxu0 0.0
  %338 = vmatpush2.msra.mxu0 0.0
  %339 = vmatprep.subr.mxu0 0.0
  %340 = vmatpush2.msra.mxu0 0.0
  %341 = vmatprep.subr.mxu0 0.0
  %342 = vmatpush2.msra.mxu0 0.0
  %343 = vmatprep.subr.mxu0 0.0
  %344 = vmatpush2.msra.mxu0 0.0
  %345 = vmatprep.subr.mxu0 0.0
  %346 = vmatpush2.msra.mxu0 0.0
  %347 = vmatprep.subr.mxu0 0.0
  %348 = vmatpush2.msra.mxu0 0.0
  %349 = vmatprep.subr.mxu0 0.0
  %350 = vmatpush2.msra.mxu0 0.0
  %351 = vmatprep.subr.mxu0 0.0
  %352 = vmatpush2.msra.mxu0 0.0
  %353 = vmatprep.subr.mxu0 0.0
  %354 = vmatpush2.msra.mxu0 0.0
  %355 = vmatprep.subr.mxu0 0.0
  %356 = vmatpush2.msra.mxu0 0.0
  %357 = vmatprep.mubr.f32.mxu0 0.0
  %358 = vmatmul.mubr.f32.gmra.mxu0 %v279
  %v359 = vpop.f32.mrf.mxu0
  %v360 = vadd.f32 %v255, %v359
  %v361 = vpop.f32.mrf.mxu0
  %v362 = vadd.f32 %v259, %v361
  %363 = vmatprep.mubr.f32.mxu0 0.0
  %364 = vmatmul.mubr.f32.gmra.mxu0 %v282
  %v365 = vpop.f32.mrf.mxu0
  %v366 = vadd.f32 %v255, %v365
  %v367 = vpop.f32.mrf.mxu0
  %v368 = vadd.f32 %v259, %v367
  %369 = vmatprep.mubr.f32.mxu0 0.0
  %370 = vmatmul.mubr.f32.gmra.mxu0 %v285
  %v371 = vpop.f32.mrf.mxu0
  %v372 = vadd.f32 %v255, %v371
  %v373 = vpop.f32.mrf.mxu0
  %v374 = vadd.f32 %v259, %v373
  %375 = vmatprep.mubr.f32.mxu0 0.0
  %376 = vmatmul.mubr.f32.gmra.mxu0 %v288
  %v377 = vpop.f32.mrf.mxu0
  %v378 = vadd.f32 %v255, %v377
  %v379 = vpop.f32.mrf.mxu0
  %v380 = vadd.f32 %v259, %v379
  %381 = vmatprep.mubr.f32.mxu0 0.0
  %382 = vmatmul.mubr.f32.gmra.mxu0 %v291
  %v383 = vpop.f32.mrf.mxu0
  %v384 = vadd.f32 %v255, %v383
  %v385 = vpop.f32.mrf.mxu0
  %v386 = vadd.f32 %v259, %v385
  %387 = vdwg.mxu0
  %388 = vmatprep.subr.mxu0 0.0
  %389 = vmatpush1.msra.mxu0 0.0
  %390 = vmatprep.subr.mxu0 0.0
  %391 = vmatpush1.msra.mxu0 0.0
  %392 = vmatprep.subr.mxu0 0.0
  %393 = vmatpush1.msra.mxu0 0.0
  %394 = vmatprep.subr.mxu0 0.0
  %395 = vmatpush1.msra.mxu0 0.0
  %396 = vmatprep.subr.mxu0 %v248
  %397 = vmatpush1.msra.mxu0 %v247
  %398 = vmatprep.subr.mxu0 %v243
  %399 = vmatpush1.msra.mxu0 %v242
  %400 = vmatprep.subr.mxu0 %v238
  %401 = vmatpush1.msra.mxu0 %v237
  %402 = vmatprep.subr.mxu0 %v233
  %403 = vmatpush1.msra.mxu0 %v232
  %404 = vmatprep.subr.mxu0 %v228
  %405 = vmatpush1.msra.mxu0 %v227
  %406 = vmatprep.subr.mxu0 %v223
  %407 = vmatpush1.msra.mxu0 %v222
  %408 = vmatprep.subr.mxu0 %v218
  %409 = vmatpush1.msra.mxu0 %v217
  %410 = vmatprep.subr.mxu0 %v213
  %411 = vmatpush1.msra.mxu0 %v212
  %412 = vmatprep.subr.mxu0 %v208
  %413 = vmatpush1.msra.mxu0 %v207
  %414 = vmatprep.subr.mxu0 %v203
  %415 = vmatpush1.msra.mxu0 %v202
  %416 = vmatprep.subr.mxu0 %v198
  %417 = vmatpush1.msra.mxu0 %v197
  %418 = vmatprep.subr.mxu0 %v193
  %419 = vmatpush1.msra.mxu0 %v192
  %420 = vmatprep.subr.mxu0 0.0
  %421 = vmatpush2.msra.mxu0 0.0
  %422 = vmatprep.subr.mxu0 0.0
  %423 = vmatpush2.msra.mxu0 0.0
  %424 = vmatprep.subr.mxu0 0.0
  %425 = vmatpush2.msra.mxu0 0.0
  %426 = vmatprep.subr.mxu0 0.0
  %427 = vmatpush2.msra.mxu0 0.0
  %428 = vmatprep.subr.mxu0 0.0
  %429 = vmatpush2.msra.mxu0 0.0
  %430 = vmatprep.subr.mxu0 0.0
  %431 = vmatpush2.msra.mxu0 0.0
  %432 = vmatprep.subr.mxu0 0.0
  %433 = vmatpush2.msra.mxu0 0.0
  %434 = vmatprep.subr.mxu0 0.0
  %435 = vmatpush2.msra.mxu0 0.0
  %436 = vmatprep.subr.mxu0 0.0
  %437 = vmatpush2.msra.mxu0 0.0
  %438 = vmatprep.subr.mxu0 0.0
  %439 = vmatpush2.msra.mxu0 0.0
  %440 = vmatprep.subr.mxu0 0.0
  %441 = vmatpush2.msra.mxu0 0.0
  %442 = vmatprep.subr.mxu0 0.0
  %443 = vmatpush2.msra.mxu0 0.0
  %444 = vmatprep.subr.mxu0 0.0
  %445 = vmatpush2.msra.mxu0 0.0
  %446 = vmatprep.subr.mxu0 0.0
  %447 = vmatpush2.msra.mxu0 0.0
  %448 = vmatprep.subr.mxu0 0.0
  %449 = vmatpush2.msra.mxu0 0.0
  %450 = vmatprep.subr.mxu0 0.0
  %451 = vmatpush2.msra.mxu0 0.0
  %452 = vmatprep.mubr.f32.mxu0 0.0
  %453 = vmatmul.mubr.f32.gmra.mxu0 %v279
  %v454 = vpop.f32.mrf.mxu0
  %v455 = vadd.f32 %v263, %v454
  %v456 = vpop.f32.mrf.mxu0
  %v457 = vadd.f32 %v267, %v456
  %458 = vmatprep.mubr.f32.mxu0 0.0
  %459 = vmatmul.mubr.f32.gmra.mxu0 %v282
  %v460 = vpop.f32.mrf.mxu0
  %v461 = vadd.f32 %v263, %v460
  %v462 = vpop.f32.mrf.mxu0
  %v463 = vadd.f32 %v267, %v462
  %464 = vmatprep.mubr.f32.mxu0 0.0
  %465 = vmatmul.mubr.f32.gmra.mxu0 %v285
  %v466 = vpop.f32.mrf.mxu0
  %v467 = vadd.f32 %v263, %v466
  %v468 = vpop.f32.mrf.mxu0
  %v469 = vadd.f32 %v267, %v468
  %470 = vmatprep.mubr.f32.mxu0 0.0
  %471 = vmatmul.mubr.f32.gmra.mxu0 %v288
  %v472 = vpop.f32.mrf.mxu0
  %v473 = vadd.f32 %v263, %v472
  %v474 = vpop.f32.mrf.mxu0
  %v475 = vadd.f32 %v267, %v474
  %476 = vmatprep.mubr.f32.mxu0 0.0
  %477 = vmatmul.mubr.f32.gmra.mxu0 %v291
  %v478 = vpop.f32.mrf.mxu0
  %v479 = vadd.f32 %v263, %v478
  %v480 = vpop.f32.mrf.mxu0
  %v481 = vadd.f32 %v267, %v480
  %482 = vdwg.mxu0
  %483 = vmatprep.subr.mxu0 0.0
  %484 = vmatpush1.msra.mxu0 0.0
  %485 = vmatprep.subr.mxu0 0.0
  %486 = vmatpush1.msra.mxu0 0.0
  %487 = vmatprep.subr.mxu0 0.0
  %488 = vmatpush1.msra.mxu0 0.0
  %489 = vmatprep.subr.mxu0 0.0
  %490 = vmatpush1.msra.mxu0 0.0
  %491 = vmatprep.subr.mxu0 0.0
  %492 = vmatpush1.msra.mxu0 %v249
  %493 = vmatprep.subr.mxu0 0.0
  %494 = vmatpush1.msra.mxu0 %v244
  %495 = vmatprep.subr.mxu0 0.0
  %496 = vmatpush1.msra.mxu0 %v239
  %497 = vmatprep.subr.mxu0 0.0
  %498 = vmatpush1.msra.mxu0 %v234
  %499 = vmatprep.subr.mxu0 0.0
  %500 = vmatpush1.msra.mxu0 %v229
  %501 = vmatprep.subr.mxu0 0.0
  %502 = vmatpush1.msra.mxu0 %v224
  %503 = vmatprep.subr.mxu0 0.0
  %504 = vmatpush1.msra.mxu0 %v219
  %505 = vmatprep.subr.mxu0 0.0
  %506 = vmatpush1.msra.mxu0 %v214
  %507 = vmatprep.subr.mxu0 0.0
  %508 = vmatpush1.msra.mxu0 %v209
  %509 = vmatprep.subr.mxu0 0.0
  %510 = vmatpush1.msra.mxu0 %v204
  %511 = vmatprep.subr.mxu0 0.0
  %512 = vmatpush1.msra.mxu0 %v199
  %513 = vmatprep.subr.mxu0 0.0
  %514 = vmatpush1.msra.mxu0 %v194
  %515 = vmatprep.subr.mxu0 0.0
  %516 = vmatpush2.msra.mxu0 0.0
  %517 = vmatprep.subr.mxu0 0.0
  %518 = vmatpush2.msra.mxu0 0.0
  %519 = vmatprep.subr.mxu0 0.0
  %520 = vmatpush2.msra.mxu0 0.0
  %521 = vmatprep.subr.mxu0 0.0
  %522 = vmatpush2.msra.mxu0 0.0
  %523 = vmatprep.subr.mxu0 0.0
  %524 = vmatpush2.msra.mxu0 0.0
  %525 = vmatprep.subr.mxu0 0.0
  %526 = vmatpush2.msra.mxu0 0.0
  %527 = vmatprep.subr.mxu0 0.0
  %528 = vmatpush2.msra.mxu0 0.0
  %529 = vmatprep.subr.mxu0 0.0
  %530 = vmatpush2.msra.mxu0 0.0
  %531 = vmatprep.subr.mxu0 0.0
  %532 = vmatpush2.msra.mxu0 0.0
  %533 = vmatprep.subr.mxu0 0.0
  %534 = vmatpush2.msra.mxu0 0.0
  %535 = vmatprep.subr.mxu0 0.0
  %536 = vmatpush2.msra.mxu0 0.0
  %537 = vmatprep.subr.mxu0 0.0
  %538 = vmatpush2.msra.mxu0 0.0
  %539 = vmatprep.subr.mxu0 0.0
  %540 = vmatpush2.msra.mxu0 0.0
  %541 = vmatprep.subr.mxu0 0.0
  %542 = vmatpush2.msra.mxu0 0.0
  %543 = vmatprep.subr.mxu0 0.0
  %544 = vmatpush2.msra.mxu0 0.0
  %545 = vmatprep.subr.mxu0 0.0
  %546 = vmatpush2.msra.mxu0 0.0
  %547 = vmatprep.mubr.f32.mxu0 0.0
  %548 = vmatmul.mubr.f32.gmra.mxu0 %v279
  %v549 = vpop.f32.mrf.mxu0
  %v550 = vadd.f32 %v271, %v549
  %v551 = vpop.f32.mrf.mxu0
  %552 = vmatprep.mubr.f32.mxu0 0.0
  %553 = vmatmul.mubr.f32.gmra.mxu0 %v282
  %v554 = vpop.f32.mrf.mxu0
  %v555 = vadd.f32 %v271, %v554
  %v556 = vpop.f32.mrf.mxu0
  %557 = vmatprep.mubr.f32.mxu0 0.0
  %558 = vmatmul.mubr.f32.gmra.mxu0 %v285
  %v559 = vpop.f32.mrf.mxu0
  %v560 = vadd.f32 %v271, %v559
  %v561 = vpop.f32.mrf.mxu0
  %562 = vmatprep.mubr.f32.mxu0 0.0
  %563 = vmatmul.mubr.f32.gmra.mxu0 %v288
  %v564 = vpop.f32.mrf.mxu0
  %v565 = vadd.f32 %v271, %v564
  %v566 = vpop.f32.mrf.mxu0
  %567 = vmatprep.mubr.f32.mxu0 0.0
  %568 = vmatmul.mubr.f32.gmra.mxu0 %v291
  %v569 = vpop.f32.mrf.mxu0
  %v570 = vadd.f32 %v271, %v569
  %v571 = vpop.f32.mrf.mxu0
  %572 = vdwg.mxu0
  %v573 = vld [vmem:[%s4] sm:$0xff]
  %v574 = vld [vmem:[%s4 + $0x8] sm:$0xff]
  %v575 = vld [vmem:[%s4 + $0x10] sm:$0xff]
  %v576 = vld [vmem:[%s4 + $0x18] sm:$0xff]
  %v577 = vld [vmem:[%s4 + $0x20] sm:$0x3f]
  %vm578 = vcmask 277504
  %v580 = vsel %vm578, %v573, 0
  %v583 = vsel %vm578, %v574, 0
  %v586 = vsel %vm578, %v575, 0
  %v589 = vsel %vm578, %v576, 0
  %v592 = vsel %vm578, %v577, 0
  %vm594 = vcmask 1041408
  %v596 = vsel %vm594, %v384, 0
  %v599 = vsel %vm594, %v386, 0
  %v602 = vsel %vm594, %v479, 0
  %v605 = vsel %vm594, %v481, 0
  %v608 = vsel %vm594, %v570, 0
  %610 = vmatprep.subr.mxu0 0.0
  %611 = vmatpush1.msra.mxu0 0.0
  %612 = vmatprep.subr.mxu0 0.0
  %613 = vmatpush1.msra.mxu0 0.0
  %614 = vmatprep.subr.mxu0 0.0
  %615 = vmatpush1.msra.mxu0 0.0
  %616 = vmatprep.subr.mxu0 0.0
  %617 = vmatpush1.msra.mxu0 0.0
  %618 = vmatprep.subr.mxu0 0.0
  %619 = vmatpush1.msra.mxu0 0.0
  %620 = vmatprep.subr.mxu0 0.0
  %621 = vmatpush1.msra.mxu0 0.0
  %622 = vmatprep.subr.mxu0 0.0
  %623 = vmatpush1.msra.mxu0 0.0
  %624 = vmatprep.subr.mxu0 0.0
  %625 = vmatpush1.msra.mxu0 0.0
  %626 = vmatprep.subr.mxu0 0.0
  %627 = vmatpush1.msra.mxu0 0.0
  %628 = vmatprep.subr.mxu0 0.0
  %629 = vmatpush1.msra.mxu0 0.0
  %630 = vmatprep.subr.mxu0 0.0
  %631 = vmatpush1.msra.mxu0 0.0
  %632 = vmatprep.subr.mxu0 %v599
  %633 = vmatpush1.msra.mxu0 %v596
  %634 = vmatprep.subr.mxu0 %v380
  %635 = vmatpush1.msra.mxu0 %v378
  %636 = vmatprep.subr.mxu0 %v374
  %637 = vmatpush1.msra.mxu0 %v372
  %638 = vmatprep.subr.mxu0 %v368
  %639 = vmatpush1.msra.mxu0 %v366
  %640 = vmatprep.subr.mxu0 %v362
  %641 = vmatpush1.msra.mxu0 %v360
  %642 = vmatprep.subr.mxu0 0.0
  %643 = vmatpush2.msra.mxu0 0.0
  %644 = vmatprep.subr.mxu0 0.0
  %645 = vmatpush2.msra.mxu0 0.0
  %646 = vmatprep.subr.mxu0 0.0
  %647 = vmatpush2.msra.mxu0 0.0
  %648 = vmatprep.subr.mxu0 0.0
  %649 = vmatpush2.msra.mxu0 0.0
  %650 = vmatprep.subr.mxu0 0.0
  %651 = vmatpush2.msra.mxu0 0.0
  %652 = vmatprep.subr.mxu0 0.0
  %653 = vmatpush2.msra.mxu0 0.0
  %654 = vmatprep.subr.mxu0 0.0
  %655 = vmatpush2.msra.mxu0 0.0
  %656 = vmatprep.subr.mxu0 0.0
  %657 = vmatpush2.msra.mxu0 0.0
  %658 = vmatprep.subr.mxu0 0.0
  %659 = vmatpush2.msra.mxu0 0.0
  %660 = vmatprep.subr.mxu0 0.0
  %661 = vmatpush2.msra.mxu0 0.0
  %662 = vmatprep.subr.mxu0 0.0
  %663 = vmatpush2.msra.mxu0 0.0
  %664 = vmatprep.subr.mxu0 0.0
  %665 = vmatpush2.msra.mxu0 0.0
  %666 = vmatprep.subr.mxu0 0.0
  %667 = vmatpush2.msra.mxu0 0.0
  %668 = vmatprep.subr.mxu0 0.0
  %669 = vmatpush2.msra.mxu0 0.0
  %670 = vmatprep.subr.mxu0 0.0
  %671 = vmatpush2.msra.mxu0 0.0
  %672 = vmatprep.subr.mxu0 0.0
  %673 = vmatpush2.msra.mxu0 0.0
  %674 = vmatprep.mubr.f32.mxu0 0.0
  %675 = vmatmul.mubr.f32.gmra.mxu0 %v580
  %v676 = vpop.f32.mrf.mxu0
  %v677 = vadd.f32 0.0, %v676
  %v678 = vpop.f32.mrf.mxu0
  %v679 = vadd.f32 0.0, %v678
  %680 = vmatprep.mubr.f32.mxu0 0.0
  %681 = vmatmul.mubr.f32.gmra.mxu0 %v583
  %v682 = vpop.f32.mrf.mxu0
  %v683 = vadd.f32 0.0, %v682
  %v684 = vpop.f32.mrf.mxu0
  %v685 = vadd.f32 0.0, %v684
  %686 = vmatprep.mubr.f32.mxu0 0.0
  %687 = vmatmul.mubr.f32.gmra.mxu0 %v586
  %v688 = vpop.f32.mrf.mxu0
  %v689 = vadd.f32 0.0, %v688
  %v690 = vpop.f32.mrf.mxu0
  %v691 = vadd.f32 0.0, %v690
  %692 = vmatprep.mubr.f32.mxu0 0.0
  %693 = vmatmul.mubr.f32.gmra.mxu0 %v589
  %v694 = vpop.f32.mrf.mxu0
  %v695 = vadd.f32 0.0, %v694
  %v696 = vpop.f32.mrf.mxu0
  %v697 = vadd.f32 0.0, %v696
  %698 = vmatprep.mubr.f32.mxu0 0.0
  %699 = vmatmul.mubr.f32.gmra.mxu0 %v592
  %v700 = vpop.f32.mrf.mxu0
  %v701 = vadd.f32 0.0, %v700
  %v702 = vpop.f32.mrf.mxu0
  %v703 = vadd.f32 0.0, %v702
  %704 = vdwg.mxu0
  %705 = vmatprep.subr.mxu0 0.0
  %706 = vmatpush1.msra.mxu0 0.0
  %707 = vmatprep.subr.mxu0 0.0
  %708 = vmatpush1.msra.mxu0 0.0
  %709 = vmatprep.subr.mxu0 0.0
  %710 = vmatpush1.msra.mxu0 0.0
  %711 = vmatprep.subr.mxu0 0.0
  %712 = vmatpush1.msra.mxu0 0.0
  %713 = vmatprep.subr.mxu0 0.0
  %714 = vmatpush1.msra.mxu0 0.0
  %715 = vmatprep.subr.mxu0 0.0
  %716 = vmatpush1.msra.mxu0 0.0
  %717 = vmatprep.subr.mxu0 0.0
  %718 = vmatpush1.msra.mxu0 0.0
  %719 = vmatprep.subr.mxu0 0.0
  %720 = vmatpush1.msra.mxu0 0.0
  %721 = vmatprep.subr.mxu0 0.0
  %722 = vmatpush1.msra.mxu0 0.0
  %723 = vmatprep.subr.mxu0 0.0
  %724 = vmatpush1.msra.mxu0 0.0
  %725 = vmatprep.subr.mxu0 0.0
  %726 = vmatpush1.msra.mxu0 0.0
  %727 = vmatprep.subr.mxu0 %v605
  %728 = vmatpush1.msra.mxu0 %v602
  %729 = vmatprep.subr.mxu0 %v475
  %730 = vmatpush1.msra.mxu0 %v473
  %731 = vmatprep.subr.mxu0 %v469
  %732 = vmatpush1.msra.mxu0 %v467
  %733 = vmatprep.subr.mxu0 %v463
  %734 = vmatpush1.msra.mxu0 %v461
  %735 = vmatprep.subr.mxu0 %v457
  %736 = vmatpush1.msra.mxu0 %v455
  %737 = vmatprep.subr.mxu0 0.0
  %738 = vmatpush2.msra.mxu0 0.0
  %739 = vmatprep.subr.mxu0 0.0
  %740 = vmatpush2.msra.mxu0 0.0
  %741 = vmatprep.subr.mxu0 0.0
  %742 = vmatpush2.msra.mxu0 0.0
  %743 = vmatprep.subr.mxu0 0.0
  %744 = vmatpush2.msra.mxu0 0.0
  %745 = vmatprep.subr.mxu0 0.0
  %746 = vmatpush2.msra.mxu0 0.0
  %747 = vmatprep.subr.mxu0 0.0
  %748 = vmatpush2.msra.mxu0 0.0
  %749 = vmatprep.subr.mxu0 0.0
  %750 = vmatpush2.msra.mxu0 0.0
  %751 = vmatprep.subr.mxu0 0.0
  %752 = vmatpush2.msra.mxu0 0.0
  %753 = vmatprep.subr.mxu0 0.0
  %754 = vmatpush2.msra.mxu0 0.0
  %755 = vmatprep.subr.mxu0 0.0
  %756 = vmatpush2.msra.mxu0 0.0
  %757 = vmatprep.subr.mxu0 0.0
  %758 = vmatpush2.msra.mxu0 0.0
  %759 = vmatprep.subr.mxu0 0.0
  %760 = vmatpush2.msra.mxu0 0.0
  %761 = vmatprep.subr.mxu0 0.0
  %762 = vmatpush2.msra.mxu0 0.0
  %763 = vmatprep.subr.mxu0 0.0
  %764 = vmatpush2.msra.mxu0 0.0
  %765 = vmatprep.subr.mxu0 0.0
  %766 = vmatpush2.msra.mxu0 0.0
  %767 = vmatprep.subr.mxu0 0.0
  %768 = vmatpush2.msra.mxu0 0.0
  %769 = vmatprep.mubr.f32.mxu0 0.0
  %770 = vmatmul.mubr.f32.gmra.mxu0 %v580
  %v771 = vpop.f32.mrf.mxu0
  %v772 = vadd.f32 0.0, %v771
  %v773 = vpop.f32.mrf.mxu0
  %v774 = vadd.f32 0.0, %v773
  %775 = vmatprep.mubr.f32.mxu0 0.0
  %776 = vmatmul.mubr.f32.gmra.mxu0 %v583
  %v777 = vpop.f32.mrf.mxu0
  %v778 = vadd.f32 0.0, %v777
  %v779 = vpop.f32.mrf.mxu0
  %v780 = vadd.f32 0.0, %v779
  %781 = vmatprep.mubr.f32.mxu0 0.0
  %782 = vmatmul.mubr.f32.gmra.mxu0 %v586
  %v783 = vpop.f32.mrf.mxu0
  %v784 = vadd.f32 0.0, %v783
  %v785 = vpop.f32.mrf.mxu0
  %v786 = vadd.f32 0.0, %v785
  %787 = vmatprep.mubr.f32.mxu0 0.0
  %788 = vmatmul.mubr.f32.gmra.mxu0 %v589
  %v789 = vpop.f32.mrf.mxu0
  %v790 = vadd.f32 0.0, %v789
  %v791 = vpop.f32.mrf.mxu0
  %v792 = vadd.f32 0.0, %v791
  %793 = vmatprep.mubr.f32.mxu0 0.0
  %794 = vmatmul.mubr.f32.gmra.mxu0 %v592
  %v795 = vpop.f32.mrf.mxu0
  %v796 = vadd.f32 0.0, %v795
  %v797 = vpop.f32.mrf.mxu0
  %v798 = vadd.f32 0.0, %v797
  %799 = vdwg.mxu0
  %800 = vmatprep.subr.mxu0 0.0
  %801 = vmatpush1.msra.mxu0 0.0
  %802 = vmatprep.subr.mxu0 0.0
  %803 = vmatpush1.msra.mxu0 0.0
  %804 = vmatprep.subr.mxu0 0.0
  %805 = vmatpush1.msra.mxu0 0.0
  %806 = vmatprep.subr.mxu0 0.0
  %807 = vmatpush1.msra.mxu0 0.0
  %808 = vmatprep.subr.mxu0 0.0
  %809 = vmatpush1.msra.mxu0 0.0
  %810 = vmatprep.subr.mxu0 0.0
  %811 = vmatpush1.msra.mxu0 0.0
  %812 = vmatprep.subr.mxu0 0.0
  %813 = vmatpush1.msra.mxu0 0.0
  %814 = vmatprep.subr.mxu0 0.0
  %815 = vmatpush1.msra.mxu0 0.0
  %816 = vmatprep.subr.mxu0 0.0
  %817 = vmatpush1.msra.mxu0 0.0
  %818 = vmatprep.subr.mxu0 0.0
  %819 = vmatpush1.msra.mxu0 0.0
  %820 = vmatprep.subr.mxu0 0.0
  %821 = vmatpush1.msra.mxu0 0.0
  %822 = vmatprep.subr.mxu0 0.0
  %823 = vmatpush1.msra.mxu0 %v608
  %824 = vmatprep.subr.mxu0 0.0
  %825 = vmatpush1.msra.mxu0 %v565
  %826 = vmatprep.subr.mxu0 0.0
  %827 = vmatpush1.msra.mxu0 %v560
  %828 = vmatprep.subr.mxu0 0.0
  %829 = vmatpush1.msra.mxu0 %v555
  %830 = vmatprep.subr.mxu0 0.0
  %831 = vmatpush1.msra.mxu0 %v550
  %832 = vmatprep.subr.mxu0 0.0
  %833 = vmatpush2.msra.mxu0 0.0
  %834 = vmatprep.subr.mxu0 0.0
  %835 = vmatpush2.msra.mxu0 0.0
  %836 = vmatprep.subr.mxu0 0.0
  %837 = vmatpush2.msra.mxu0 0.0
  %838 = vmatprep.subr.mxu0 0.0
  %839 = vmatpush2.msra.mxu0 0.0
  %840 = vmatprep.subr.mxu0 0.0
  %841 = vmatpush2.msra.mxu0 0.0
  %842 = vmatprep.subr.mxu0 0.0
  %843 = vmatpush2.msra.mxu0 0.0
  %844 = vmatprep.subr.mxu0 0.0
  %845 = vmatpush2.msra.mxu0 0.0
  %846 = vmatprep.subr.mxu0 0.0
  %847 = vmatpush2.msra.mxu0 0.0
  %848 = vmatprep.subr.mxu0 0.0
  %849 = vmatpush2.msra.mxu0 0.0
  %850 = vmatprep.subr.mxu0 0.0
  %851 = vmatpush2.msra.mxu0 0.0
  %852 = vmatprep.subr.mxu0 0.0
  %853 = vmatpush2.msra.mxu0 0.0
  %854 = vmatprep.subr.mxu0 0.0
  %855 = vmatpush2.msra.mxu0 0.0
  %856 = vmatprep.subr.mxu0 0.0
  %857 = vmatpush2.msra.mxu0 0.0
  %858 = vmatprep.subr.mxu0 0.0
  %859 = vmatpush2.msra.mxu0 0.0
  %860 = vmatprep.subr.mxu0 0.0
  %861 = vmatpush2.msra.mxu0 0.0
  %862 = vmatprep.subr.mxu0 0.0
  %863 = vmatpush2.msra.mxu0 0.0
  %864 = vmatprep.mubr.f32.mxu0 0.0
  %865 = vmatmul.mubr.f32.gmra.mxu0 %v580
  %v866 = vpop.f32.mrf.mxu0
  %v867 = vadd.f32 0.0, %v866
  %v868 = vpop.f32.mrf.mxu0
  %869 = vmatprep.mubr.f32.mxu0 0.0
  %870 = vmatmul.mubr.f32.gmra.mxu0 %v583
  %v871 = vpop.f32.mrf.mxu0
  %v872 = vadd.f32 0.0, %v871
  %v873 = vpop.f32.mrf.mxu0
  %874 = vmatprep.mubr.f32.mxu0 0.0
  %875 = vmatmul.mubr.f32.gmra.mxu0 %v586
  %v876 = vpop.f32.mrf.mxu0
  %v877 = vadd.f32 0.0, %v876
  %v878 = vpop.f32.mrf.mxu0
  %879 = vmatprep.mubr.f32.mxu0 0.0
  %880 = vmatmul.mubr.f32.gmra.mxu0 %v589
  %v881 = vpop.f32.mrf.mxu0
  %v882 = vadd.f32 0.0, %v881
  %v883 = vpop.f32.mrf.mxu0
  %884 = vmatprep.mubr.f32.mxu0 0.0
  %885 = vmatmul.mubr.f32.gmra.mxu0 %v592
  %v886 = vpop.f32.mrf.mxu0
  %v887 = vadd.f32 0.0, %v886
  %v888 = vpop.f32.mrf.mxu0
  %889 = vdwg.mxu0
  %v890 = vld [vmem:[%s5] sm:$0xff]
  %v891 = vld [vmem:[%s5 + $0x8] sm:$0xff]
  %v892 = vld [vmem:[%s5 + $0x10] sm:$0xff]
  %v893 = vld [vmem:[%s5 + $0x18] sm:$0xff]
  %v894 = vld [vmem:[%s5 + $0x20] sm:$0xff]
  %v895 = vld [vmem:[%s5 + $0x28] sm:$0xff]
  %v896 = vld [vmem:[%s5 + $0x30] sm:$0xff]
  %v897 = vld [vmem:[%s5 + $0x38] sm:$0xff]
  %v898 = vld [vmem:[%s5 + $0x40] sm:$0xff]
  %v899 = vld [vmem:[%s5 + $0x48] sm:$0xff]
  %v900 = vld [vmem:[%s5 + $0x50] sm:$0xff]
  %v901 = vld [vmem:[%s5 + $0x58] sm:$0xff]
  %v902 = vld [vmem:[%s5 + $0x60] sm:$0xff]
  %v903 = vld [vmem:[%s5 + $0x68] sm:$0xff]
  %v904 = vld [vmem:[%s5 + $0x70] sm:$0xff]
  %v905 = vld [vmem:[%s5 + $0x78] sm:$0xff]
  %v906 = vld [vmem:[%s5 + $0x80] sm:$0xff]
  %v907 = vld [vmem:[%s5 + $0x88] sm:$0xff]
  %v908 = vld [vmem:[%s5 + $0x90] sm:$0xff]
  %v909 = vld [vmem:[%s5 + $0x98] sm:$0xff]
  %v910 = vld [vmem:[%s5 + $0xa0] sm:$0xff]
  %v911 = vld [vmem:[%s5 + $0xa8] sm:$0xff]
  %v912 = vld [vmem:[%s5 + $0xb0] sm:$0xff]
  %v913 = vld [vmem:[%s5 + $0xb8] sm:$0xff]
  %v914 = vld [vmem:[%s5 + $0xc0] sm:$0xff]
  %v915 = vld [vmem:[%s5 + $0xc8] sm:$0xff]
  %v916 = vld [vmem:[%s5 + $0xd0] sm:$0xff]
  %v917 = vld [vmem:[%s5 + $0xd8] sm:$0xff]
  %v918 = vld [vmem:[%s5 + $0xe0] sm:$0xff]
  %v919 = vld [vmem:[%s5 + $0xe8] sm:$0xff]
  %v920 = vld [vmem:[%s5 + $0xf0] sm:$0xff]
  %v921 = vld [vmem:[%s5 + $0xf8] sm:$0xff]
  %v922 = vld [vmem:[%s5 + $0x100] sm:$0xff]
  %v923 = vld [vmem:[%s5 + $0x108] sm:$0xff]
  %v924 = vld [vmem:[%s5 + $0x110] sm:$0xff]
  %v925 = vld [vmem:[%s5 + $0x118] sm:$0xff]
  %v926 = vld [vmem:[%s5 + $0x120] sm:$0xff]
  %v927 = vld [vmem:[%s5 + $0x128] sm:$0xff]
  %v928 = vld [vmem:[%s5 + $0x130] sm:$0xff]
  %v929 = vld [vmem:[%s5 + $0x138] sm:$0xff]
  %v930 = vld [vmem:[%s5 + $0x140] sm:$0xff]
  %v931 = vld [vmem:[%s5 + $0x148] sm:$0xff]
  %v932 = vld [vmem:[%s5 + $0x150] sm:$0xff]
  %v933 = vld [vmem:[%s5 + $0x158] sm:$0xff]
  %v934 = vld [vmem:[%s5 + $0x160] sm:$0xff]
  %v935 = vld [vmem:[%s5 + $0x168] sm:$0xff]
  %v936 = vld [vmem:[%s5 + $0x170] sm:$0xff]
  %v937 = vld [vmem:[%s5 + $0x178] sm:$0xff]
  %v938 = vld [vmem:[%s5 + $0x180] sm:$0xff]
  %v939 = vld [vmem:[%s5 + $0x188] sm:$0xff]
  %v940 = vld [vmem:[%s5 + $0x190] sm:$0xff]
  %v941 = vld [vmem:[%s5 + $0x198] sm:$0xff]
  %v942 = vld [vmem:[%s5 + $0x1a0] sm:$0xff]
  %v943 = vld [vmem:[%s5 + $0x1a8] sm:$0xff]
  %v944 = vld [vmem:[%s5 + $0x1b0] sm:$0xff]
  %v945 = vld [vmem:[%s5 + $0x1b8] sm:$0xff]
  %v946 = vld [vmem:[%s5 + $0x1c0] sm:$0xff]
  %v947 = vld [vmem:[%s5 + $0x1c8] sm:$0xff]
  %v948 = vld [vmem:[%s5 + $0x1d0] sm:$0xff]
  %v949 = vld [vmem:[%s5 + $0x1d8] sm:$0xff]
  %v950 = vld [vmem:[%s5 + $0x1e0] sm:$0xff]
  %v951 = vld [vmem:[%s5 + $0x1e8] sm:$0xff]
  %v952 = vld [vmem:[%s5 + $0x1f0] sm:$0xff]
  %v953 = vld [vmem:[%s5 + $0x1f8] sm:$0xff]
  %v954 = vld [vmem:[%s5 + $0x200] sm:$0xff]
  %v955 = vld [vmem:[%s5 + $0x208] sm:$0xff]
  %v956 = vld [vmem:[%s5 + $0x210] sm:$0xff]
  %v957 = vld [vmem:[%s5 + $0x218] sm:$0xff]
  %v958 = vld [vmem:[%s5 + $0x220] sm:$0xff]
  %v959 = vld [vmem:[%s5 + $0x228] sm:$0xff]
  %v960 = vld [vmem:[%s5 + $0x230] sm:$0xff]
  %v961 = vld [vmem:[%s5 + $0x238] sm:$0xff]
  %v962 = vld [vmem:[%s5 + $0x240] sm:$0xff]
  %v963 = vld [vmem:[%s5 + $0x248] sm:$0xff]
  %v964 = vld [vmem:[%s5 + $0x250] sm:$0xff]
  %v965 = vld [vmem:[%s5 + $0x258] sm:$0xff]
  %v966 = vld [vmem:[%s5 + $0x260] sm:$0xff]
  %v967 = vld [vmem:[%s5 + $0x268] sm:$0xff]
  %v968 = vld [vmem:[%s5 + $0x270] sm:$0xff]
  %v969 = vld [vmem:[%s5 + $0x278] sm:$0xff]
  %v970 = vld [vmem:[%s5 + $0x280] sm:$0xff]
  %v971 = vld [vmem:[%s5 + $0x288] sm:$0xff]
  %v972 = vld [vmem:[%s5 + $0x290] sm:$0xff]
  %v973 = vld [vmem:[%s5 + $0x298] sm:$0xff]
  %v974 = vld [vmem:[%s5 + $0x2a0] sm:$0xff]
  %v975 = vld [vmem:[%s5 + $0x2a8] sm:$0xff]
  %v976 = vld [vmem:[%s5 + $0x2b0] sm:$0xff]
  %v977 = vld [vmem:[%s5 + $0x2b8] sm:$0xff]
  %v978 = vld [vmem:[%s5 + $0x2c0] sm:$0xff]
  %v979 = vld [vmem:[%s5 + $0x2c8] sm:$0xff]
  %v980 = vld [vmem:[%s5 + $0x2d0] sm:$0xff]
  %v981 = vld [vmem:[%s5 + $0x2d8] sm:$0xff]
  %v982 = vld [vmem:[%s5 + $0x2e0] sm:$0xff]
  %v983 = vld [vmem:[%s5 + $0x2e8] sm:$0xff]
  %v984 = vld [vmem:[%s5 + $0x2f0] sm:$0xff]
  %v985 = vld [vmem:[%s5 + $0x2f8] sm:$0xff]
  %v986 = vld [vmem:[%s5 + $0x300] sm:$0xff]
  %v987 = vld [vmem:[%s5 + $0x308] sm:$0xff]
  %v988 = vld [vmem:[%s5 + $0x310] sm:$0xff]
  %v989 = vld [vmem:[%s5 + $0x318] sm:$0xff]
  %v990 = vld [vmem:[%s5 + $0x320] sm:$0xff]
  %v991 = vld [vmem:[%s5 + $0x328] sm:$0xff]
  %v992 = vld [vmem:[%s5 + $0x330] sm:$0xff]
  %v993 = vld [vmem:[%s5 + $0x338] sm:$0xff]
  %v994 = vld [vmem:[%s5 + $0x340] sm:$0xff]
  %v995 = vld [vmem:[%s5 + $0x348] sm:$0xff]
  %v996 = vld [vmem:[%s5 + $0x350] sm:$0xff]
  %v997 = vld [vmem:[%s5 + $0x358] sm:$0xff]
  %v998 = vld [vmem:[%s5 + $0x360] sm:$0xff]
  %v999 = vld [vmem:[%s5 + $0x368] sm:$0xff]
  %v1000 = vld [vmem:[%s5 + $0x370] sm:$0xff]
  %v1001 = vld [vmem:[%s5 + $0x378] sm:$0xff]
  %v1002 = vld [vmem:[%s5 + $0x380] sm:$0xff]
  %v1003 = vld [vmem:[%s5 + $0x388] sm:$0xff]
  %v1004 = vld [vmem:[%s5 + $0x390] sm:$0xff]
  %v1005 = vld [vmem:[%s5 + $0x398] sm:$0xff]
  %v1006 = vld [vmem:[%s5 + $0x3a0] sm:$0xff]
  %v1007 = vld [vmem:[%s5 + $0x3a8] sm:$0xff]
  %v1008 = vld [vmem:[%s5 + $0x3b0] sm:$0xff]
  %v1009 = vld [vmem:[%s5 + $0x3b8] sm:$0xff]
  %v1010 = vld [vmem:[%s5 + $0x3c0] sm:$0xff]
  %v1011 = vld [vmem:[%s5 + $0x3c8] sm:$0xff]
  %v1012 = vld [vmem:[%s5 + $0x3d0] sm:$0xff]
  %v1013 = vld [vmem:[%s5 + $0x3d8] sm:$0xff]
  %v1014 = vld [vmem:[%s5 + $0x3e0] sm:$0xff]
  %v1015 = vld [vmem:[%s5 + $0x3e8] sm:$0xff]
  %v1016 = vld [vmem:[%s5 + $0x3f0] sm:$0xff]
  %v1017 = vld [vmem:[%s5 + $0x3f8] sm:$0xff]
  %v1018 = vld [vmem:[%s5 + $0x400] sm:$0xff]
  %v1019 = vld [vmem:[%s5 + $0x408] sm:$0xff]
  %v1020 = vld [vmem:[%s5 + $0x410] sm:$0xff]
  %v1021 = vld [vmem:[%s5 + $0x418] sm:$0xff]
  %v1022 = vld [vmem:[%s5 + $0x420] sm:$0xff]
  %v1023 = vld [vmem:[%s5 + $0x428] sm:$0xff]
  %v1024 = vld [vmem:[%s5 + $0x430] sm:$0xff]
  %v1025 = vld [vmem:[%s5 + $0x438] sm:$0xff]
  %v1026 = vld [vmem:[%s5 + $0x440] sm:$0xff]
  %v1027 = vld [vmem:[%s5 + $0x448] sm:$0xff]
  %v1028 = vld [vmem:[%s5 + $0x450] sm:$0xff]
  %v1029 = vld [vmem:[%s5 + $0x458] sm:$0xff]
  %v1030 = vld [vmem:[%s5 + $0x460] sm:$0xff]
  %v1031 = vld [vmem:[%s5 + $0x468] sm:$0xff]
  %v1032 = vld [vmem:[%s5 + $0x470] sm:$0xff]
  %v1033 = vld [vmem:[%s5 + $0x478] sm:$0xff]
  %v1034 = vld [vmem:[%s5 + $0x480] sm:$0xff]
  %v1035 = vld [vmem:[%s5 + $0x488] sm:$0xff]
  %v1036 = vld [vmem:[%s5 + $0x490] sm:$0xff]
  %v1037 = vld [vmem:[%s5 + $0x498] sm:$0xff]
  %v1038 = vld [vmem:[%s5 + $0x4a0] sm:$0xff]
  %v1039 = vld [vmem:[%s5 + $0x4a8] sm:$0xff]
  %v1040 = vld [vmem:[%s5 + $0x4b0] sm:$0xff]
  %v1041 = vld [vmem:[%s5 + $0x4b8] sm:$0xff]
  %v1042 = vld [vmem:[%s5 + $0x4c0] sm:$0xff]
  %v1043 = vld [vmem:[%s5 + $0x4c8] sm:$0xff]
  %v1044 = vld [vmem:[%s5 + $0x4d0] sm:$0xff]
  %v1045 = vld [vmem:[%s5 + $0x4d8] sm:$0xff]
  %v1046 = vld [vmem:[%s5 + $0x4e0] sm:$0xff]
  %v1047 = vld [vmem:[%s5 + $0x4e8] sm:$0xff]
  %v1048 = vld [vmem:[%s5 + $0x4f0] sm:$0xff]
  %v1049 = vld [vmem:[%s5 + $0x4f8] sm:$0xff]
  %v1050 = vld [vmem:[%s5 + $0x500] sm:$0xff]
  %v1051 = vld [vmem:[%s5 + $0x508] sm:$0xff]
  %v1052 = vld [vmem:[%s5 + $0x510] sm:$0xff]
  %v1053 = vld [vmem:[%s5 + $0x518] sm:$0xff]
  %v1054 = vld [vmem:[%s5 + $0x520] sm:$0xff]
  %v1055 = vld [vmem:[%s5 + $0x528] sm:$0xff]
  %v1056 = vld [vmem:[%s5 + $0x530] sm:$0xff]
  %v1057 = vld [vmem:[%s5 + $0x538] sm:$0xff]
  %v1058 = vld [vmem:[%s5 + $0x540] sm:$0xff]
  %v1059 = vld [vmem:[%s5 + $0x548] sm:$0xff]
  %v1060 = vld [vmem:[%s5 + $0x550] sm:$0xff]
  %v1061 = vld [vmem:[%s5 + $0x558] sm:$0xff]
  %v1062 = vld [vmem:[%s5 + $0x560] sm:$0xff]
  %v1063 = vld [vmem:[%s5 + $0x568] sm:$0xff]
  %v1064 = vld [vmem:[%s5 + $0x570] sm:$0xff]
  %v1065 = vld [vmem:[%s5 + $0x578] sm:$0xff]
  %v1066 = vld [vmem:[%s5 + $0x580] sm:$0xff]
  %v1067 = vld [vmem:[%s5 + $0x588] sm:$0xff]
  %v1068 = vld [vmem:[%s5 + $0x590] sm:$0xff]
  %v1069 = vld [vmem:[%s5 + $0x598] sm:$0xff]
  %v1070 = vld [vmem:[%s5 + $0x5a0] sm:$0xff]
  %v1071 = vld [vmem:[%s5 + $0x5a8] sm:$0xff]
  %v1072 = vld [vmem:[%s5 + $0x5b0] sm:$0xff]
  %v1073 = vld [vmem:[%s5 + $0x5b8] sm:$0xff]
  %v1074 = vld [vmem:[%s5 + $0x5c0] sm:$0xff]
  %v1075 = vld [vmem:[%s5 + $0x5c8] sm:$0xff]
  %v1076 = vld [vmem:[%s5 + $0x5d0] sm:$0xff]
  %v1077 = vld [vmem:[%s5 + $0x5d8] sm:$0xff]
  %v1078 = vld [vmem:[%s5 + $0x5e0] sm:$0xff]
  %v1079 = vld [vmem:[%s5 + $0x5e8] sm:$0xff]
  %v1080 = vld [vmem:[%s5 + $0x5f0] sm:$0xff]
  %v1081 = vld [vmem:[%s5 + $0x5f8] sm:$0xff]
  %v1082 = vld [vmem:[%s5 + $0x600] sm:$0xff]
  %v1083 = vld [vmem:[%s5 + $0x608] sm:$0xff]
  %v1084 = vld [vmem:[%s5 + $0x610] sm:$0xff]
  %v1085 = vld [vmem:[%s5 + $0x618] sm:$0xff]
  %v1086 = vld [vmem:[%s5 + $0x620] sm:$0xff]
  %v1087 = vld [vmem:[%s5 + $0x628] sm:$0xff]
  %v1088 = vld [vmem:[%s5 + $0x630] sm:$0xff]
  %v1089 = vld [vmem:[%s5 + $0x638] sm:$0xff]
  %v1090 = vld [vmem:[%s5 + $0x640] sm:$0xff]
  %v1091 = vld [vmem:[%s5 + $0x648] sm:$0xff]
  %v1092 = vld [vmem:[%s5 + $0x650] sm:$0xff]
  %v1093 = vld [vmem:[%s5 + $0x658] sm:$0xff]
  %v1094 = vld [vmem:[%s6] sm:$0x7]
  %v1096 = vlaneseq
  %v1097 = vshrl.u32 %v1096, 7
  %v1098 = vsub.s32 0, %v1097
  %v1099 = vrot.slane %v1094, %v1098
  %v1100 = vlaneseq
  %v1101 = vshrl.u32 %v1100, 7
  %v1102 = vsub.s32 1, %v1101
  %v1103 = vrot.slane %v1094, %v1102
  %v1104 = vlaneseq
  %v1105 = vshrl.u32 %v1104, 7
  %v1106 = vsub.s32 2, %v1105
  %v1107 = vrot.slane %v1094, %v1106
  %vm1111 = vcmask 261120
  %v1113 = vsel %vm1111, %v867, 0
  %v1116 = vsel %vm1111, %v872, 0
  %v1119 = vsel %vm1111, %v877, 0
  %v1122 = vsel %vm1111, %v882, 0
  %v1125 = vsel %vm1111, %v887, 0
  %1127 = vmatprep.subr.mxu0 %v936
  %1128 = vmatpush1.msra.mxu0 %v935
  %1129 = vmatprep.subr.mxu0 %v933
  %1130 = vmatpush1.msra.mxu0 %v932
  %1131 = vmatprep.subr.mxu0 %v930
  %1132 = vmatpush1.msra.mxu0 %v929
  %1133 = vmatprep.subr.mxu0 %v927
  %1134 = vmatpush1.msra.mxu0 %v926
  %1135 = vmatprep.subr.mxu0 %v924
  %1136 = vmatpush1.msra.mxu0 %v923
  %1137 = vmatprep.subr.mxu0 %v921
  %1138 = vmatpush1.msra.mxu0 %v920
  %1139 = vmatprep.subr.mxu0 %v918
  %1140 = vmatpush1.msra.mxu0 %v917
  %1141 = vmatprep.subr.mxu0 %v915
  %1142 = vmatpush1.msra.mxu0 %v914
  %1143 = vmatprep.subr.mxu0 %v912
  %1144 = vmatpush1.msra.mxu0 %v911
  %1145 = vmatprep.subr.mxu0 %v909
  %1146 = vmatpush1.msra.mxu0 %v908
  %1147 = vmatprep.subr.mxu0 %v906
  %1148 = vmatpush1.msra.mxu0 %v905
  %1149 = vmatprep.subr.mxu0 %v903
  %1150 = vmatpush1.msra.mxu0 %v902
  %1151 = vmatprep.subr.mxu0 %v900
  %1152 = vmatpush1.msra.mxu0 %v899
  %1153 = vmatprep.subr.mxu0 %v897
  %1154 = vmatpush1.msra.mxu0 %v896
  %1155 = vmatprep.subr.mxu0 %v894
  %1156 = vmatpush1.msra.mxu0 %v893
  %1157 = vmatprep.subr.mxu0 %v891
  %1158 = vmatpush1.msra.mxu0 %v890
  %1159 = vmatprep.subr.mxu0 %v984
  %1160 = vmatpush2.msra.mxu0 %v983
  %1161 = vmatprep.subr.mxu0 %v981
  %1162 = vmatpush2.msra.mxu0 %v980
  %1163 = vmatprep.subr.mxu0 %v978
  %1164 = vmatpush2.msra.mxu0 %v977
  %1165 = vmatprep.subr.mxu0 %v975
  %1166 = vmatpush2.msra.mxu0 %v974
  %1167 = vmatprep.subr.mxu0 %v972
  %1168 = vmatpush2.msra.mxu0 %v971
  %1169 = vmatprep.subr.mxu0 %v969
  %1170 = vmatpush2.msra.mxu0 %v968
  %1171 = vmatprep.subr.mxu0 %v966
  %1172 = vmatpush2.msra.mxu0 %v965
  %1173 = vmatprep.subr.mxu0 %v963
  %1174 = vmatpush2.msra.mxu0 %v962
  %1175 = vmatprep.subr.mxu0 %v960
  %1176 = vmatpush2.msra.mxu0 %v959
  %1177 = vmatprep.subr.mxu0 %v957
  %1178 = vmatpush2.msra.mxu0 %v956
  %1179 = vmatprep.subr.mxu0 %v954
  %1180 = vmatpush2.msra.mxu0 %v953
  %1181 = vmatprep.subr.mxu0 %v951
  %1182 = vmatpush2.msra.mxu0 %v950
  %1183 = vmatprep.subr.mxu0 %v948
  %1184 = vmatpush2.msra.mxu0 %v947
  %1185 = vmatprep.subr.mxu0 %v945
  %1186 = vmatpush2.msra.mxu0 %v944
  %1187 = vmatprep.subr.mxu0 %v942
  %1188 = vmatpush2.msra.mxu0 %v941
  %1189 = vmatprep.subr.mxu0 %v939
  %1190 = vmatpush2.msra.mxu0 %v938
  %1191 = vmatprep.mubr.f32.mxu0 %v679
  %1192 = vmatmul.mubr.f32.gmra.mxu0 %v677
  %v1193 = vpop.f32.mrf.mxu0
  %v1194 = vadd.f32 %v1099, %v1193
  %v1195 = vpop.f32.mrf.mxu0
  %v1196 = vadd.f32 %v1103, %v1195
  %1197 = vmatprep.mubr.f32.mxu0 %v685
  %1198 = vmatmul.mubr.f32.gmra.mxu0 %v683
  %v1199 = vpop.f32.mrf.mxu0
  %v1200 = vadd.f32 %v1099, %v1199
  %v1201 = vpop.f32.mrf.mxu0
  %v1202 = vadd.f32 %v1103, %v1201
  %1203 = vmatprep.mubr.f32.mxu0 %v691
  %1204 = vmatmul.mubr.f32.gmra.mxu0 %v689
  %v1205 = vpop.f32.mrf.mxu0
  %v1206 = vadd.f32 %v1099, %v1205
  %v1207 = vpop.f32.mrf.mxu0
  %v1208 = vadd.f32 %v1103, %v1207
  %1209 = vmatprep.mubr.f32.mxu0 %v697
  %1210 = vmatmul.mubr.f32.gmra.mxu0 %v695
  %v1211 = vpop.f32.mrf.mxu0
  %v1212 = vadd.f32 %v1099, %v1211
  %v1213 = vpop.f32.mrf.mxu0
  %v1214 = vadd.f32 %v1103, %v1213
  %1215 = vmatprep.mubr.f32.mxu0 %v703
  %1216 = vmatmul.mubr.f32.gmra.mxu0 %v701
  %v1217 = vpop.f32.mrf.mxu0
  %v1218 = vadd.f32 %v1099, %v1217
  %v1219 = vpop.f32.mrf.mxu0
  %v1220 = vadd.f32 %v1103, %v1219
  %1221 = vdwg.mxu0
  %1222 = vmatprep.subr.mxu0 %v1032
  %1223 = vmatpush1.msra.mxu0 %v1031
  %1224 = vmatprep.subr.mxu0 %v1029
  %1225 = vmatpush1.msra.mxu0 %v1028
  %1226 = vmatprep.subr.mxu0 %v1026
  %1227 = vmatpush1.msra.mxu0 %v1025
  %1228 = vmatprep.subr.mxu0 %v1023
  %1229 = vmatpush1.msra.mxu0 %v1022
  %1230 = vmatprep.subr.mxu0 %v1020
  %1231 = vmatpush1.msra.mxu0 %v1019
  %1232 = vmatprep.subr.mxu0 %v1017
  %1233 = vmatpush1.msra.mxu0 %v1016
  %1234 = vmatprep.subr.mxu0 %v1014
  %1235 = vmatpush1.msra.mxu0 %v1013
  %1236 = vmatprep.subr.mxu0 %v1011
  %1237 = vmatpush1.msra.mxu0 %v1010
  %1238 = vmatprep.subr.mxu0 %v1008
  %1239 = vmatpush1.msra.mxu0 %v1007
  %1240 = vmatprep.subr.mxu0 %v1005
  %1241 = vmatpush1.msra.mxu0 %v1004
  %1242 = vmatprep.subr.mxu0 %v1002
  %1243 = vmatpush1.msra.mxu0 %v1001
  %1244 = vmatprep.subr.mxu0 %v999
  %1245 = vmatpush1.msra.mxu0 %v998
  %1246 = vmatprep.subr.mxu0 %v996
  %1247 = vmatpush1.msra.mxu0 %v995
  %1248 = vmatprep.subr.mxu0 %v993
  %1249 = vmatpush1.msra.mxu0 %v992
  %1250 = vmatprep.subr.mxu0 %v990
  %1251 = vmatpush1.msra.mxu0 %v989
  %1252 = vmatprep.subr.mxu0 %v987
  %1253 = vmatpush1.msra.mxu0 %v986
  %1254 = vmatprep.subr.mxu0 %v1080
  %1255 = vmatpush2.msra.mxu0 %v1079
  %1256 = vmatprep.subr.mxu0 %v1077
  %1257 = vmatpush2.msra.mxu0 %v1076
  %1258 = vmatprep.subr.mxu0 %v1074
  %1259 = vmatpush2.msra.mxu0 %v1073
  %1260 = vmatprep.subr.mxu0 %v1071
  %1261 = vmatpush2.msra.mxu0 %v1070
  %1262 = vmatprep.subr.mxu0 %v1068
  %1263 = vmatpush2.msra.mxu0 %v1067
  %1264 = vmatprep.subr.mxu0 %v1065
  %1265 = vmatpush2.msra.mxu0 %v1064
  %1266 = vmatprep.subr.mxu0 %v1062
  %1267 = vmatpush2.msra.mxu0 %v1061
  %1268 = vmatprep.subr.mxu0 %v1059
  %1269 = vmatpush2.msra.mxu0 %v1058
  %1270 = vmatprep.subr.mxu0 %v1056
  %1271 = vmatpush2.msra.mxu0 %v1055
  %1272 = vmatprep.subr.mxu0 %v1053
  %1273 = vmatpush2.msra.mxu0 %v1052
  %1274 = vmatprep.subr.mxu0 %v1050
  %1275 = vmatpush2.msra.mxu0 %v1049
  %1276 = vmatprep.subr.mxu0 %v1047
  %1277 = vmatpush2.msra.mxu0 %v1046
  %1278 = vmatprep.subr.mxu0 %v1044
  %1279 = vmatpush2.msra.mxu0 %v1043
  %1280 = vmatprep.subr.mxu0 %v1041
  %1281 = vmatpush2.msra.mxu0 %v1040
  %1282 = vmatprep.subr.mxu0 %v1038
  %1283 = vmatpush2.msra.mxu0 %v1037
  %1284 = vmatprep.subr.mxu0 %v1035
  %1285 = vmatpush2.msra.mxu0 %v1034
  %1286 = vmatprep.mubr.f32.mxu0 %v774
  %1287 = vmatmul.mubr.f32.gmra.mxu0 %v772
  %v1288 = vpop.f32.mrf.mxu0
  %v1289 = vadd.f32 %v1194, %v1288
  %v1290 = vpop.f32.mrf.mxu0
  %v1291 = vadd.f32 %v1196, %v1290
  %1292 = vmatprep.mubr.f32.mxu0 %v780
  %1293 = vmatmul.mubr.f32.gmra.mxu0 %v778
  %v1294 = vpop.f32.mrf.mxu0
  %v1295 = vadd.f32 %v1200, %v1294
  %v1296 = vpop.f32.mrf.mxu0
  %v1297 = vadd.f32 %v1202, %v1296
  %1298 = vmatprep.mubr.f32.mxu0 %v786
  %1299 = vmatmul.mubr.f32.gmra.mxu0 %v784
  %v1300 = vpop.f32.mrf.mxu0
  %v1301 = vadd.f32 %v1206, %v1300
  %v1302 = vpop.f32.mrf.mxu0
  %v1303 = vadd.f32 %v1208, %v1302
  %1304 = vmatprep.mubr.f32.mxu0 %v792
  %1305 = vmatmul.mubr.f32.gmra.mxu0 %v790
  %v1306 = vpop.f32.mrf.mxu0
  %v1307 = vadd.f32 %v1212, %v1306
  %v1308 = vpop.f32.mrf.mxu0
  %v1309 = vadd.f32 %v1214, %v1308
  %1310 = vmatprep.mubr.f32.mxu0 %v798
  %1311 = vmatmul.mubr.f32.gmra.mxu0 %v796
  %v1312 = vpop.f32.mrf.mxu0
  %v1313 = vadd.f32 %v1218, %v1312
  %v1314 = vpop.f32.mrf.mxu0
  %v1315 = vadd.f32 %v1220, %v1314
  %1316 = vdwg.mxu0
  %1317 = vmatprep.subr.mxu0 0.0
  %1318 = vmatpush1.msra.mxu0 0.0
  %1319 = vmatprep.subr.mxu0 0.0
  %1320 = vmatpush1.msra.mxu0 0.0
  %1321 = vmatprep.subr.mxu0 0.0
  %1322 = vmatpush1.msra.mxu0 0.0
  %1323 = vmatprep.subr.mxu0 0.0
  %1324 = vmatpush1.msra.mxu0 0.0
  %1325 = vmatprep.subr.mxu0 0.0
  %1326 = vmatpush1.msra.mxu0 0.0
  %1327 = vmatprep.subr.mxu0 0.0
  %1328 = vmatpush1.msra.mxu0 0.0
  %1329 = vmatprep.subr.mxu0 0.0
  %1330 = vmatpush1.msra.mxu0 0.0
  %1331 = vmatprep.subr.mxu0 0.0
  %1332 = vmatpush1.msra.mxu0 0.0
  %1333 = vmatprep.subr.mxu0 0.0
  %1334 = vmatpush1.msra.mxu0 0.0
  %1335 = vmatprep.subr.mxu0 0.0
  %1336 = vmatpush1.msra.mxu0 0.0
  %1337 = vmatprep.subr.mxu0 0.0
  %1338 = vmatpush1.msra.mxu0 0.0
  %1339 = vmatprep.subr.mxu0 0.0
  %1340 = vmatpush1.msra.mxu0 0.0
  %1341 = vmatprep.subr.mxu0 %v1092
  %1342 = vmatpush1.msra.mxu0 %v1091
  %1343 = vmatprep.subr.mxu0 %v1089
  %1344 = vmatpush1.msra.mxu0 %v1088
  %1345 = vmatprep.subr.mxu0 %v1086
  %1346 = vmatpush1.msra.mxu0 %v1085
  %1347 = vmatprep.subr.mxu0 %v1083
  %1348 = vmatpush1.msra.mxu0 %v1082
  %1349 = vmatprep.subr.mxu0 0.0
  %1350 = vmatpush2.msra.mxu0 0.0
  %1351 = vmatprep.subr.mxu0 0.0
  %1352 = vmatpush2.msra.mxu0 0.0
  %1353 = vmatprep.subr.mxu0 0.0
  %1354 = vmatpush2.msra.mxu0 0.0
  %1355 = vmatprep.subr.mxu0 0.0
  %1356 = vmatpush2.msra.mxu0 0.0
  %1357 = vmatprep.subr.mxu0 0.0
  %1358 = vmatpush2.msra.mxu0 0.0
  %1359 = vmatprep.subr.mxu0 0.0
  %1360 = vmatpush2.msra.mxu0 0.0
  %1361 = vmatprep.subr.mxu0 0.0
  %1362 = vmatpush2.msra.mxu0 0.0
  %1363 = vmatprep.subr.mxu0 0.0
  %1364 = vmatpush2.msra.mxu0 0.0
  %1365 = vmatprep.subr.mxu0 0.0
  %1366 = vmatpush2.msra.mxu0 0.0
  %1367 = vmatprep.subr.mxu0 0.0
  %1368 = vmatpush2.msra.mxu0 0.0
  %1369 = vmatprep.subr.mxu0 0.0
  %1370 = vmatpush2.msra.mxu0 0.0
  %1371 = vmatprep.subr.mxu0 0.0
  %1372 = vmatpush2.msra.mxu0 0.0
  %1373 = vmatprep.subr.mxu0 0.0
  %1374 = vmatpush2.msra.mxu0 0.0
  %1375 = vmatprep.subr.mxu0 0.0
  %1376 = vmatpush2.msra.mxu0 0.0
  %1377 = vmatprep.subr.mxu0 0.0
  %1378 = vmatpush2.msra.mxu0 0.0
  %1379 = vmatprep.subr.mxu0 0.0
  %1380 = vmatpush2.msra.mxu0 0.0
  %1381 = vmatprep.mubr.f32.mxu0 0.0
  %1382 = vmatmul.mubr.f32.gmra.mxu0 %v1113
  %v1383 = vpop.f32.mrf.mxu0
  %v1384 = vadd.f32 %v1289, %v1383
  %v1385 = vpop.f32.mrf.mxu0
  %v1386 = vadd.f32 %v1291, %v1385
  %1387 = vmatprep.mubr.f32.mxu0 0.0
  %1388 = vmatmul.mubr.f32.gmra.mxu0 %v1116
  %v1389 = vpop.f32.mrf.mxu0
  %v1390 = vadd.f32 %v1295, %v1389
  %v1391 = vpop.f32.mrf.mxu0
  %v1392 = vadd.f32 %v1297, %v1391
  %1393 = vmatprep.mubr.f32.mxu0 0.0
  %1394 = vmatmul.mubr.f32.gmra.mxu0 %v1119
  %v1395 = vpop.f32.mrf.mxu0
  %v1396 = vadd.f32 %v1301, %v1395
  %v1397 = vpop.f32.mrf.mxu0
  %v1398 = vadd.f32 %v1303, %v1397
  %1399 = vmatprep.mubr.f32.mxu0 0.0
  %1400 = vmatmul.mubr.f32.gmra.mxu0 %v1122
  %v1401 = vpop.f32.mrf.mxu0
  %v1402 = vadd.f32 %v1307, %v1401
  %v1403 = vpop.f32.mrf.mxu0
  %v1404 = vadd.f32 %v1309, %v1403
  %1405 = vmatprep.mubr.f32.mxu0 0.0
  %1406 = vmatmul.mubr.f32.gmra.mxu0 %v1125
  %v1407 = vpop.f32.mrf.mxu0
  %v1408 = vadd.f32 %v1313, %v1407
  %v1409 = vpop.f32.mrf.mxu0
  %v1410 = vadd.f32 %v1315, %v1409
  %1411 = vdwg.mxu0
  %1412 = vmatprep.subr.mxu0 0.0
  %1413 = vmatpush1.msra.mxu0 %v937
  %1414 = vmatprep.subr.mxu0 0.0
  %1415 = vmatpush1.msra.mxu0 %v934
  %1416 = vmatprep.subr.mxu0 0.0
  %1417 = vmatpush1.msra.mxu0 %v931
  %1418 = vmatprep.subr.mxu0 0.0
  %1419 = vmatpush1.msra.mxu0 %v928
  %1420 = vmatprep.subr.mxu0 0.0
  %1421 = vmatpush1.msra.mxu0 %v925
  %1422 = vmatprep.subr.mxu0 0.0
  %1423 = vmatpush1.msra.mxu0 %v922
  %1424 = vmatprep.subr.mxu0 0.0
  %1425 = vmatpush1.msra.mxu0 %v919
  %1426 = vmatprep.subr.mxu0 0.0
  %1427 = vmatpush1.msra.mxu0 %v916
  %1428 = vmatprep.subr.mxu0 0.0
  %1429 = vmatpush1.msra.mxu0 %v913
  %1430 = vmatprep.subr.mxu0 0.0
  %1431 = vmatpush1.msra.mxu0 %v910
  %1432 = vmatprep.subr.mxu0 0.0
  %1433 = vmatpush1.msra.mxu0 %v907
  %1434 = vmatprep.subr.mxu0 0.0
  %1435 = vmatpush1.msra.mxu0 %v904
  %1436 = vmatprep.subr.mxu0 0.0
  %1437 = vmatpush1.msra.mxu0 %v901
  %1438 = vmatprep.subr.mxu0 0.0
  %1439 = vmatpush1.msra.mxu0 %v898
  %1440 = vmatprep.subr.mxu0 0.0
  %1441 = vmatpush1.msra.mxu0 %v895
  %1442 = vmatprep.subr.mxu0 0.0
  %1443 = vmatpush1.msra.mxu0 %v892
  %1444 = vmatprep.subr.mxu0 0.0
  %1445 = vmatpush2.msra.mxu0 %v985
  %1446 = vmatprep.subr.mxu0 0.0
  %1447 = vmatpush2.msra.mxu0 %v982
  %1448 = vmatprep.subr.mxu0 0.0
  %1449 = vmatpush2.msra.mxu0 %v979
  %1450 = vmatprep.subr.mxu0 0.0
  %1451 = vmatpush2.msra.mxu0 %v976
  %1452 = vmatprep.subr.mxu0 0.0
  %1453 = vmatpush2.msra.mxu0 %v973
  %1454 = vmatprep.subr.mxu0 0.0
  %1455 = vmatpush2.msra.mxu0 %v970
  %1456 = vmatprep.subr.mxu0 0.0
  %1457 = vmatpush2.msra.mxu0 %v967
  %1458 = vmatprep.subr.mxu0 0.0
  %1459 = vmatpush2.msra.mxu0 %v964
  %1460 = vmatprep.subr.mxu0 0.0
  %1461 = vmatpush2.msra.mxu0 %v961
  %1462 = vmatprep.subr.mxu0 0.0
  %1463 = vmatpush2.msra.mxu0 %v958
  %1464 = vmatprep.subr.mxu0 0.0
  %1465 = vmatpush2.msra.mxu0 %v955
  %1466 = vmatprep.subr.mxu0 0.0
  %1467 = vmatpush2.msra.mxu0 %v952
  %1468 = vmatprep.subr.mxu0 0.0
  %1469 = vmatpush2.msra.mxu0 %v949
  %1470 = vmatprep.subr.mxu0 0.0
  %1471 = vmatpush2.msra.mxu0 %v946
  %1472 = vmatprep.subr.mxu0 0.0
  %1473 = vmatpush2.msra.mxu0 %v943
  %1474 = vmatprep.subr.mxu0 0.0
  %1475 = vmatpush2.msra.mxu0 %v940
  %1476 = vmatprep.mubr.f32.mxu0 %v679
  %1477 = vmatmul.mubr.f32.gmra.mxu0 %v677
  %v1478 = vpop.f32.mrf.mxu0
  %v1479 = vadd.f32 %v1107, %v1478
  %v1480 = vpop.f32.mrf.mxu0
  %1481 = vmatprep.mubr.f32.mxu0 %v685
  %1482 = vmatmul.mubr.f32.gmra.mxu0 %v683
  %v1483 = vpop.f32.mrf.mxu0
  %v1484 = vadd.f32 %v1107, %v1483
  %v1485 = vpop.f32.mrf.mxu0
  %1486 = vmatprep.mubr.f32.mxu0 %v691
  %1487 = vmatmul.mubr.f32.gmra.mxu0 %v689
  %v1488 = vpop.f32.mrf.mxu0
  %v1489 = vadd.f32 %v1107, %v1488
  %v1490 = vpop.f32.mrf.mxu0
  %1491 = vmatprep.mubr.f32.mxu0 %v697
  %1492 = vmatmul.mubr.f32.gmra.mxu0 %v695
  %v1493 = vpop.f32.mrf.mxu0
  %v1494 = vadd.f32 %v1107, %v1493
  %v1495 = vpop.f32.mrf.mxu0
  %1496 = vmatprep.mubr.f32.mxu0 %v703
  %1497 = vmatmul.mubr.f32.gmra.mxu0 %v701
  %v1498 = vpop.f32.mrf.mxu0
  %v1499 = vadd.f32 %v1107, %v1498
  %v1500 = vpop.f32.mrf.mxu0
  %1501 = vdwg.mxu0
  %1502 = vmatprep.subr.mxu0 0.0
  %1503 = vmatpush1.msra.mxu0 %v1033
  %1504 = vmatprep.subr.mxu0 0.0
  %1505 = vmatpush1.msra.mxu0 %v1030
  %1506 = vmatprep.subr.mxu0 0.0
  %1507 = vmatpush1.msra.mxu0 %v1027
  %1508 = vmatprep.subr.mxu0 0.0
  %1509 = vmatpush1.msra.mxu0 %v1024
  %1510 = vmatprep.subr.mxu0 0.0
  %1511 = vmatpush1.msra.mxu0 %v1021
  %1512 = vmatprep.subr.mxu0 0.0
  %1513 = vmatpush1.msra.mxu0 %v1018
  %1514 = vmatprep.subr.mxu0 0.0
  %1515 = vmatpush1.msra.mxu0 %v1015
  %1516 = vmatprep.subr.mxu0 0.0
  %1517 = vmatpush1.msra.mxu0 %v1012
  %1518 = vmatprep.subr.mxu0 0.0
  %1519 = vmatpush1.msra.mxu0 %v1009
  %1520 = vmatprep.subr.mxu0 0.0
  %1521 = vmatpush1.msra.mxu0 %v1006
  %1522 = vmatprep.subr.mxu0 0.0
  %1523 = vmatpush1.msra.mxu0 %v1003
  %1524 = vmatprep.subr.mxu0 0.0
  %1525 = vmatpush1.msra.mxu0 %v1000
  %1526 = vmatprep.subr.mxu0 0.0
  %1527 = vmatpush1.msra.mxu0 %v997
  %1528 = vmatprep.subr.mxu0 0.0
  %1529 = vmatpush1.msra.mxu0 %v994
  %1530 = vmatprep.subr.mxu0 0.0
  %1531 = vmatpush1.msra.mxu0 %v991
  %1532 = vmatprep.subr.mxu0 0.0
  %1533 = vmatpush1.msra.mxu0 %v988
  %1534 = vmatprep.subr.mxu0 0.0
  %1535 = vmatpush2.msra.mxu0 %v1081
  %1536 = vmatprep.subr.mxu0 0.0
  %1537 = vmatpush2.msra.mxu0 %v1078
  %1538 = vmatprep.subr.mxu0 0.0
  %1539 = vmatpush2.msra.mxu0 %v1075
  %1540 = vmatprep.subr.mxu0 0.0
  %1541 = vmatpush2.msra.mxu0 %v1072
  %1542 = vmatprep.subr.mxu0 0.0
  %1543 = vmatpush2.msra.mxu0 %v1069
  %1544 = vmatprep.subr.mxu0 0.0
  %1545 = vmatpush2.msra.mxu0 %v1066
  %1546 = vmatprep.subr.mxu0 0.0
  %1547 = vmatpush2.msra.mxu0 %v1063
  %1548 = vmatprep.subr.mxu0 0.0
  %1549 = vmatpush2.msra.mxu0 %v1060
  %1550 = vmatprep.subr.mxu0 0.0
  %1551 = vmatpush2.msra.mxu0 %v1057
  %1552 = vmatprep.subr.mxu0 0.0
  %1553 = vmatpush2.msra.mxu0 %v1054
  %1554 = vmatprep.subr.mxu0 0.0
  %1555 = vmatpush2.msra.mxu0 %v1051
  %1556 = vmatprep.subr.mxu0 0.0
  %1557 = vmatpush2.msra.mxu0 %v1048
  %1558 = vmatprep.subr.mxu0 0.0
  %1559 = vmatpush2.msra.mxu0 %v1045
  %1560 = vmatprep.subr.mxu0 0.0
  %1561 = vmatpush2.msra.mxu0 %v1042
  %1562 = vmatprep.subr.mxu0 0.0
  %1563 = vmatpush2.msra.mxu0 %v1039
  %1564 = vmatprep.subr.mxu0 0.0
  %1565 = vmatpush2.msra.mxu0 %v1036
  %1566 = vmatprep.mubr.f32.mxu0 %v774
  %1567 = vmatmul.mubr.f32.gmra.mxu0 %v772
  %v1568 = vpop.f32.mrf.mxu0
  %v1569 = vadd.f32 %v1479, %v1568
  %v1570 = vpop.f32.mrf.mxu0
  %1571 = vmatprep.mubr.f32.mxu0 %v780
  %1572 = vmatmul.mubr.f32.gmra.mxu0 %v778
  %v1573 = vpop.f32.mrf.mxu0
  %v1574 = vadd.f32 %v1484, %v1573
  %v1575 = vpop.f32.mrf.mxu0
  %1576 = vmatprep.mubr.f32.mxu0 %v786
  %1577 = vmatmul.mubr.f32.gmra.mxu0 %v784
  %v1578 = vpop.f32.mrf.mxu0
  %v1579 = vadd.f32 %v1489, %v1578
  %v1580 = vpop.f32.mrf.mxu0
  %1581 = vmatprep.mubr.f32.mxu0 %v792
  %1582 = vmatmul.mubr.f32.gmra.mxu0 %v790
  %v1583 = vpop.f32.mrf.mxu0
  %v1584 = vadd.f32 %v1494, %v1583
  %v1585 = vpop.f32.mrf.mxu0
  %1586 = vmatprep.mubr.f32.mxu0 %v798
  %1587 = vmatmul.mubr.f32.gmra.mxu0 %v796
  %v1588 = vpop.f32.mrf.mxu0
  %v1589 = vadd.f32 %v1499, %v1588
  %v1590 = vpop.f32.mrf.mxu0
  %1591 = vdwg.mxu0
  %1592 = vmatprep.subr.mxu0 0.0
  %1593 = vmatpush1.msra.mxu0 0.0
  %1594 = vmatprep.subr.mxu0 0.0
  %1595 = vmatpush1.msra.mxu0 0.0
  %1596 = vmatprep.subr.mxu0 0.0
  %1597 = vmatpush1.msra.mxu0 0.0
  %1598 = vmatprep.subr.mxu0 0.0
  %1599 = vmatpush1.msra.mxu0 0.0
  %1600 = vmatprep.subr.mxu0 0.0
  %1601 = vmatpush1.msra.mxu0 0.0
  %1602 = vmatprep.subr.mxu0 0.0
  %1603 = vmatpush1.msra.mxu0 0.0
  %1604 = vmatprep.subr.mxu0 0.0
  %1605 = vmatpush1.msra.mxu0 0.0
  %1606 = vmatprep.subr.mxu0 0.0
  %1607 = vmatpush1.msra.mxu0 0.0
  %1608 = vmatprep.subr.mxu0 0.0
  %1609 = vmatpush1.msra.mxu0 0.0
  %1610 = vmatprep.subr.mxu0 0.0
  %1611 = vmatpush1.msra.mxu0 0.0
  %1612 = vmatprep.subr.mxu0 0.0
  %1613 = vmatpush1.msra.mxu0 0.0
  %1614 = vmatprep.subr.mxu0 0.0
  %1615 = vmatpush1.msra.mxu0 0.0
  %1616 = vmatprep.subr.mxu0 0.0
  %1617 = vmatpush1.msra.mxu0 %v1093
  %1618 = vmatprep.subr.mxu0 0.0
  %1619 = vmatpush1.msra.mxu0 %v1090
  %1620 = vmatprep.subr.mxu0 0.0
  %1621 = vmatpush1.msra.mxu0 %v1087
  %1622 = vmatprep.subr.mxu0 0.0
  %1623 = vmatpush1.msra.mxu0 %v1084
  %1624 = vmatprep.subr.mxu0 0.0
  %1625 = vmatpush2.msra.mxu0 0.0
  %1626 = vmatprep.subr.mxu0 0.0
  %1627 = vmatpush2.msra.mxu0 0.0
  %1628 = vmatprep.subr.mxu0 0.0
  %1629 = vmatpush2.msra.mxu0 0.0
  %1630 = vmatprep.subr.mxu0 0.0
  %1631 = vmatpush2.msra.mxu0 0.0
  %1632 = vmatprep.subr.mxu0 0.0
  %1633 = vmatpush2.msra.mxu0 0.0
  %1634 = vmatprep.subr.mxu0 0.0
  %1635 = vmatpush2.msra.mxu0 0.0
  %1636 = vmatprep.subr.mxu0 0.0
  %1637 = vmatpush2.msra.mxu0 0.0
  %1638 = vmatprep.subr.mxu0 0.0
  %1639 = vmatpush2.msra.mxu0 0.0
  %1640 = vmatprep.subr.mxu0 0.0
  %1641 = vmatpush2.msra.mxu0 0.0
  %1642 = vmatprep.subr.mxu0 0.0
  %1643 = vmatpush2.msra.mxu0 0.0
  %1644 = vmatprep.subr.mxu0 0.0
  %1645 = vmatpush2.msra.mxu0 0.0
  %1646 = vmatprep.subr.mxu0 0.0
  %1647 = vmatpush2.msra.mxu0 0.0
  %1648 = vmatprep.subr.mxu0 0.0
  %1649 = vmatpush2.msra.mxu0 0.0
  %1650 = vmatprep.subr.mxu0 0.0
  %1651 = vmatpush2.msra.mxu0 0.0
  %1652 = vmatprep.subr.mxu0 0.0
  %1653 = vmatpush2.msra.mxu0 0.0
  %1654 = vmatprep.subr.mxu0 0.0
  %1655 = vmatpush2.msra.mxu0 0.0
  %1656 = vmatprep.mubr.f32.mxu0 0.0
  %1657 = vmatmul.mubr.f32.gmra.mxu0 %v1113
  %v1658 = vpop.f32.mrf.mxu0
  %v1659 = vadd.f32 %v1569, %v1658
  %v1660 = vpop.f32.mrf.mxu0
  %1661 = vmatprep.mubr.f32.mxu0 0.0
  %1662 = vmatmul.mubr.f32.gmra.mxu0 %v1116
  %v1663 = vpop.f32.mrf.mxu0
  %v1664 = vadd.f32 %v1574, %v1663
  %v1665 = vpop.f32.mrf.mxu0
  %1666 = vmatprep.mubr.f32.mxu0 0.0
  %1667 = vmatmul.mubr.f32.gmra.mxu0 %v1119
  %v1668 = vpop.f32.mrf.mxu0
  %v1669 = vadd.f32 %v1579, %v1668
  %v1670 = vpop.f32.mrf.mxu0
  %1671 = vmatprep.mubr.f32.mxu0 0.0
  %1672 = vmatmul.mubr.f32.gmra.mxu0 %v1122
  %v1673 = vpop.f32.mrf.mxu0
  %v1674 = vadd.f32 %v1584, %v1673
  %v1675 = vpop.f32.mrf.mxu0
  %1676 = vmatprep.mubr.f32.mxu0 0.0
  %1677 = vmatmul.mubr.f32.gmra.mxu0 %v1125
  %v1678 = vpop.f32.mrf.mxu0
  %v1679 = vadd.f32 %v1589, %v1678
  %v1680 = vpop.f32.mrf.mxu0
  %1681 = vdwg.mxu0
  %v1682 = vld [vmem:[%s7] sm:$0xff]
  %v1683 = vld [vmem:[%s7 + $0x8] sm:$0xff]
  %v1684 = vld [vmem:[%s7 + $0x10] sm:$0xf]
  %vm1685 = vcmask 310272
  %v1687 = vsel %vm1685, %v1682, 0
  %v1690 = vsel %vm1685, %v1683, 0
  %v1693 = vsel %vm1685, %v1684, 0
  %vm1695 = vcmask 1045504
  %v1697 = vsel %vm1695, %v1408, 0
  %v1700 = vsel %vm1695, %v1410, 0
  %v1703 = vsel %vm1695, %v1679, 0
  %1705 = vmatprep.subr.mxu0 0.0
  %1706 = vmatpush1.msra.mxu0 0.0
  %1707 = vmatprep.subr.mxu0 0.0
  %1708 = vmatpush1.msra.mxu0 0.0
  %1709 = vmatprep.subr.mxu0 0.0
  %1710 = vmatpush1.msra.mxu0 0.0
  %1711 = vmatprep.subr.mxu0 0.0
  %1712 = vmatpush1.msra.mxu0 0.0
  %1713 = vmatprep.subr.mxu0 0.0
  %1714 = vmatpush1.msra.mxu0 0.0
  %1715 = vmatprep.subr.mxu0 0.0
  %1716 = vmatpush1.msra.mxu0 0.0
  %1717 = vmatprep.subr.mxu0 0.0
  %1718 = vmatpush1.msra.mxu0 0.0
  %1719 = vmatprep.subr.mxu0 0.0
  %1720 = vmatpush1.msra.mxu0 0.0
  %1721 = vmatprep.subr.mxu0 0.0
  %1722 = vmatpush1.msra.mxu0 0.0
  %1723 = vmatprep.subr.mxu0 0.0
  %1724 = vmatpush1.msra.mxu0 0.0
  %1725 = vmatprep.subr.mxu0 0.0
  %1726 = vmatpush1.msra.mxu0 0.0
  %1727 = vmatprep.subr.mxu0 %v1700
  %1728 = vmatpush1.msra.mxu0 %v1697
  %1729 = vmatprep.subr.mxu0 %v1404
  %1730 = vmatpush1.msra.mxu0 %v1402
  %1731 = vmatprep.subr.mxu0 %v1398
  %1732 = vmatpush1.msra.mxu0 %v1396
  %1733 = vmatprep.subr.mxu0 %v1392
  %1734 = vmatpush1.msra.mxu0 %v1390
  %1735 = vmatprep.subr.mxu0 %v1386
  %1736 = vmatpush1.msra.mxu0 %v1384
  %1737 = vmatprep.subr.mxu0 0.0
  %1738 = vmatpush2.msra.mxu0 0.0
  %1739 = vmatprep.subr.mxu0 0.0
  %1740 = vmatpush2.msra.mxu0 0.0
  %1741 = vmatprep.subr.mxu0 0.0
  %1742 = vmatpush2.msra.mxu0 0.0
  %1743 = vmatprep.subr.mxu0 0.0
  %1744 = vmatpush2.msra.mxu0 0.0
  %1745 = vmatprep.subr.mxu0 0.0
  %1746 = vmatpush2.msra.mxu0 0.0
  %1747 = vmatprep.subr.mxu0 0.0
  %1748 = vmatpush2.msra.mxu0 0.0
  %1749 = vmatprep.subr.mxu0 0.0
  %1750 = vmatpush2.msra.mxu0 0.0
  %1751 = vmatprep.subr.mxu0 0.0
  %1752 = vmatpush2.msra.mxu0 0.0
  %1753 = vmatprep.subr.mxu0 0.0
  %1754 = vmatpush2.msra.mxu0 0.0
  %1755 = vmatprep.subr.mxu0 0.0
  %1756 = vmatpush2.msra.mxu0 0.0
  %1757 = vmatprep.subr.mxu0 0.0
  %1758 = vmatpush2.msra.mxu0 0.0
  %1759 = vmatprep.subr.mxu0 0.0
  %1760 = vmatpush2.msra.mxu0 0.0
  %1761 = vmatprep.subr.mxu0 0.0
  %1762 = vmatpush2.msra.mxu0 0.0
  %1763 = vmatprep.subr.mxu0 0.0
  %1764 = vmatpush2.msra.mxu0 0.0
  %1765 = vmatprep.subr.mxu0 0.0
  %1766 = vmatpush2.msra.mxu0 0.0
  %1767 = vmatprep.subr.mxu0 0.0
  %1768 = vmatpush2.msra.mxu0 0.0
  %1769 = vmatprep.mubr.f32.mxu0 0.0
  %1770 = vmatmul.mubr.f32.gmra.mxu0 %v1687
  %v1771 = vpop.f32.mrf.mxu0
  %v1772 = vadd.f32 0.0, %v1771
  %v1773 = vpop.f32.mrf.mxu0
  %v1774 = vadd.f32 0.0, %v1773
  %1775 = vmatprep.mubr.f32.mxu0 0.0
  %1776 = vmatmul.mubr.f32.gmra.mxu0 %v1690
  %v1777 = vpop.f32.mrf.mxu0
  %v1778 = vadd.f32 0.0, %v1777
  %v1779 = vpop.f32.mrf.mxu0
  %v1780 = vadd.f32 0.0, %v1779
  %1781 = vmatprep.mubr.f32.mxu0 0.0
  %1782 = vmatmul.mubr.f32.gmra.mxu0 %v1693
  %v1783 = vpop.f32.mrf.mxu0
  %v1784 = vadd.f32 0.0, %v1783
  %v1785 = vpop.f32.mrf.mxu0
  %v1786 = vadd.f32 0.0, %v1785
  %1787 = vdwg.mxu0
  %1788 = vmatprep.subr.mxu0 0.0
  %1789 = vmatpush1.msra.mxu0 0.0
  %1790 = vmatprep.subr.mxu0 0.0
  %1791 = vmatpush1.msra.mxu0 0.0
  %1792 = vmatprep.subr.mxu0 0.0
  %1793 = vmatpush1.msra.mxu0 0.0
  %1794 = vmatprep.subr.mxu0 0.0
  %1795 = vmatpush1.msra.mxu0 0.0
  %1796 = vmatprep.subr.mxu0 0.0
  %1797 = vmatpush1.msra.mxu0 0.0
  %1798 = vmatprep.subr.mxu0 0.0
  %1799 = vmatpush1.msra.mxu0 0.0
  %1800 = vmatprep.subr.mxu0 0.0
  %1801 = vmatpush1.msra.mxu0 0.0
  %1802 = vmatprep.subr.mxu0 0.0
  %1803 = vmatpush1.msra.mxu0 0.0
  %1804 = vmatprep.subr.mxu0 0.0
  %1805 = vmatpush1.msra.mxu0 0.0
  %1806 = vmatprep.subr.mxu0 0.0
  %1807 = vmatpush1.msra.mxu0 0.0
  %1808 = vmatprep.subr.mxu0 0.0
  %1809 = vmatpush1.msra.mxu0 0.0
  %1810 = vmatprep.subr.mxu0 0.0
  %1811 = vmatpush1.msra.mxu0 %v1703
  %1812 = vmatprep.subr.mxu0 0.0
  %1813 = vmatpush1.msra.mxu0 %v1674
  %1814 = vmatprep.subr.mxu0 0.0
  %1815 = vmatpush1.msra.mxu0 %v1669
  %1816 = vmatprep.subr.mxu0 0.0
  %1817 = vmatpush1.msra.mxu0 %v1664
  %1818 = vmatprep.subr.mxu0 0.0
  %1819 = vmatpush1.msra.mxu0 %v1659
  %1820 = vmatprep.subr.mxu0 0.0
  %1821 = vmatpush2.msra.mxu0 0.0
  %1822 = vmatprep.subr.mxu0 0.0
  %1823 = vmatpush2.msra.mxu0 0.0
  %1824 = vmatprep.subr.mxu0 0.0
  %1825 = vmatpush2.msra.mxu0 0.0
  %1826 = vmatprep.subr.mxu0 0.0
  %1827 = vmatpush2.msra.mxu0 0.0
  %1828 = vmatprep.subr.mxu0 0.0
  %1829 = vmatpush2.msra.mxu0 0.0
  %1830 = vmatprep.subr.mxu0 0.0
  %1831 = vmatpush2.msra.mxu0 0.0
  %1832 = vmatprep.subr.mxu0 0.0
  %1833 = vmatpush2.msra.mxu0 0.0
  %1834 = vmatprep.subr.mxu0 0.0
  %1835 = vmatpush2.msra.mxu0 0.0
  %1836 = vmatprep.subr.mxu0 0.0
  %1837 = vmatpush2.msra.mxu0 0.0
  %1838 = vmatprep.subr.mxu0 0.0
  %1839 = vmatpush2.msra.mxu0 0.0
  %1840 = vmatprep.subr.mxu0 0.0
  %1841 = vmatpush2.msra.mxu0 0.0
  %1842 = vmatprep.subr.mxu0 0.0
  %1843 = vmatpush2.msra.mxu0 0.0
  %1844 = vmatprep.subr.mxu0 0.0
  %1845 = vmatpush2.msra.mxu0 0.0
  %1846 = vmatprep.subr.mxu0 0.0
  %1847 = vmatpush2.msra.mxu0 0.0
  %1848 = vmatprep.subr.mxu0 0.0
  %1849 = vmatpush2.msra.mxu0 0.0
  %1850 = vmatprep.subr.mxu0 0.0
  %1851 = vmatpush2.msra.mxu0 0.0
  %1852 = vmatprep.mubr.f32.mxu0 0.0
  %1853 = vmatmul.mubr.f32.gmra.mxu0 %v1687
  %v1854 = vpop.f32.mrf.mxu0
  %v1855 = vadd.f32 0.0, %v1854
  %v1856 = vpop.f32.mrf.mxu0
  %1857 = vmatprep.mubr.f32.mxu0 0.0
  %1858 = vmatmul.mubr.f32.gmra.mxu0 %v1690
  %v1859 = vpop.f32.mrf.mxu0
  %v1860 = vadd.f32 0.0, %v1859
  %v1861 = vpop.f32.mrf.mxu0
  %1862 = vmatprep.mubr.f32.mxu0 0.0
  %1863 = vmatmul.mubr.f32.gmra.mxu0 %v1693
  %v1864 = vpop.f32.mrf.mxu0
  %v1865 = vadd.f32 0.0, %v1864
  %v1866 = vpop.f32.mrf.mxu0
  %1867 = vdwg.mxu0
  %v1868 = vld [vmem:[%s8] sm:$0xff]
  %v1869 = vld [vmem:[%s8 + $0x8] sm:$0xff]
  %v1870 = vld [vmem:[%s8 + $0x10] sm:$0xff]
  %v1871 = vld [vmem:[%s8 + $0x18] sm:$0xff]
  %v1872 = vld [vmem:[%s8 + $0x20] sm:$0xff]
  %v1873 = vld [vmem:[%s8 + $0x28] sm:$0xff]
  %v1874 = vld [vmem:[%s8 + $0x30] sm:$0xff]
  %v1875 = vld [vmem:[%s8 + $0x38] sm:$0xff]
  %v1876 = vld [vmem:[%s8 + $0x40] sm:$0xff]
  %v1877 = vld [vmem:[%s8 + $0x48] sm:$0xff]
  %v1878 = vld [vmem:[%s8 + $0x50] sm:$0xff]
  %v1879 = vld [vmem:[%s8 + $0x58] sm:$0xff]
  %v1880 = vld [vmem:[%s8 + $0x60] sm:$0xff]
  %v1881 = vld [vmem:[%s8 + $0x68] sm:$0xff]
  %v1882 = vld [vmem:[%s8 + $0x70] sm:$0xff]
  %v1883 = vld [vmem:[%s8 + $0x78] sm:$0xff]
  %v1884 = vld [vmem:[%s8 + $0x80] sm:$0xff]
  %v1885 = vld [vmem:[%s8 + $0x88] sm:$0xff]
  %v1886 = vld [vmem:[%s8 + $0x90] sm:$0xff]
  %v1887 = vld [vmem:[%s8 + $0x98] sm:$0xff]
  %v1888 = vld [vmem:[%s8 + $0xa0] sm:$0xff]
  %v1889 = vld [vmem:[%s8 + $0xa8] sm:$0xff]
  %v1890 = vld [vmem:[%s8 + $0xb0] sm:$0xff]
  %v1891 = vld [vmem:[%s8 + $0xb8] sm:$0xff]
  %v1892 = vld [vmem:[%s8 + $0xc0] sm:$0xff]
  %v1893 = vld [vmem:[%s8 + $0xc8] sm:$0xff]
  %v1894 = vld [vmem:[%s8 + $0xd0] sm:$0xff]
  %v1895 = vld [vmem:[%s8 + $0xd8] sm:$0xff]
  %v1896 = vld [vmem:[%s8 + $0xe0] sm:$0xff]
  %v1897 = vld [vmem:[%s8 + $0xe8] sm:$0xff]
  %v1898 = vld [vmem:[%s8 + $0xf0] sm:$0xff]
  %v1899 = vld [vmem:[%s8 + $0xf8] sm:$0xff]
  %v1900 = vld [vmem:[%s8 + $0x100] sm:$0xff]
  %v1901 = vld [vmem:[%s8 + $0x108] sm:$0xff]
  %v1902 = vld [vmem:[%s8 + $0x110] sm:$0xff]
  %v1903 = vld [vmem:[%s8 + $0x118] sm:$0xff]
  %v1904 = vld [vmem:[%s8 + $0x120] sm:$0xff]
  %v1905 = vld [vmem:[%s8 + $0x128] sm:$0xff]
  %v1906 = vld [vmem:[%s8 + $0x130] sm:$0xff]
  %v1907 = vld [vmem:[%s8 + $0x138] sm:$0xff]
  %v1908 = vld [vmem:[%s8 + $0x140] sm:$0xff]
  %v1909 = vld [vmem:[%s8 + $0x148] sm:$0xff]
  %v1910 = vld [vmem:[%s8 + $0x150] sm:$0xff]
  %v1911 = vld [vmem:[%s8 + $0x158] sm:$0xff]
  %v1912 = vld [vmem:[%s8 + $0x160] sm:$0xff]
  %v1913 = vld [vmem:[%s8 + $0x168] sm:$0xff]
  %v1914 = vld [vmem:[%s8 + $0x170] sm:$0xff]
  %v1915 = vld [vmem:[%s8 + $0x178] sm:$0xff]
  %v1916 = vld [vmem:[%s8 + $0x180] sm:$0xff]
  %v1917 = vld [vmem:[%s8 + $0x188] sm:$0xff]
  %v1918 = vld [vmem:[%s8 + $0x190] sm:$0xff]
  %v1919 = vld [vmem:[%s8 + $0x198] sm:$0xff]
  %v1920 = vld [vmem:[%s8 + $0x1a0] sm:$0xff]
  %v1921 = vld [vmem:[%s8 + $0x1a8] sm:$0xff]
  %v1922 = vld [vmem:[%s8 + $0x1b0] sm:$0xff]
  %v1923 = vld [vmem:[%s8 + $0x1b8] sm:$0xff]
  %v1924 = vld [vmem:[%s8 + $0x1c0] sm:$0xff]
  %v1925 = vld [vmem:[%s8 + $0x1c8] sm:$0xff]
  %v1926 = vld [vmem:[%s8 + $0x1d0] sm:$0xff]
  %v1927 = vld [vmem:[%s8 + $0x1d8] sm:$0xff]
  %v1928 = vld [vmem:[%s8 + $0x1e0] sm:$0xff]
  %v1929 = vld [vmem:[%s8 + $0x1e8] sm:$0xff]
  %v1930 = vld [vmem:[%s8 + $0x1f0] sm:$0xff]
  %v1931 = vld [vmem:[%s8 + $0x1f8] sm:$0xff]
  %v1932 = vld [vmem:[%s8 + $0x200] sm:$0xff]
  %v1933 = vld [vmem:[%s8 + $0x208] sm:$0xff]
  %v1934 = vld [vmem:[%s8 + $0x210] sm:$0xff]
  %v1935 = vld [vmem:[%s8 + $0x218] sm:$0xff]
  %v1936 = vld [vmem:[%s8 + $0x220] sm:$0xff]
  %v1937 = vld [vmem:[%s8 + $0x228] sm:$0xff]
  %v1938 = vld [vmem:[%s8 + $0x230] sm:$0xff]
  %v1939 = vld [vmem:[%s8 + $0x238] sm:$0xff]
  %v1940 = vld [vmem:[%s8 + $0x240] sm:$0xff]
  %v1941 = vld [vmem:[%s8 + $0x248] sm:$0xff]
  %v1942 = vld [vmem:[%s8 + $0x250] sm:$0xff]
  %v1943 = vld [vmem:[%s8 + $0x258] sm:$0xff]
  %s1944 = scalar_lea.vmem %s7, 24
  %v1945 = vld [vmem:[%s1944] sm:$0xff]
  %v1946 = vld [vmem:[%s1944 + $0x8] sm:$0xff]
  %v1947 = vld [vmem:[%s1944 + $0x10] sm:$0xf]
  %v1949 = vsel %vm1685, %v1945, 0
  %v1952 = vsel %vm1685, %v1946, 0
  %v1955 = vsel %vm1685, %v1947, 0
  %1957 = vmatprep.subr.mxu0 0.0
  %1958 = vmatpush1.msra.mxu0 0.0
  %1959 = vmatprep.subr.mxu0 0.0
  %1960 = vmatpush1.msra.mxu0 0.0
  %1961 = vmatprep.subr.mxu0 0.0
  %1962 = vmatpush1.msra.mxu0 0.0
  %1963 = vmatprep.subr.mxu0 0.0
  %1964 = vmatpush1.msra.mxu0 0.0
  %1965 = vmatprep.subr.mxu0 0.0
  %1966 = vmatpush1.msra.mxu0 0.0
  %1967 = vmatprep.subr.mxu0 0.0
  %1968 = vmatpush1.msra.mxu0 0.0
  %1969 = vmatprep.subr.mxu0 0.0
  %1970 = vmatpush1.msra.mxu0 0.0
  %1971 = vmatprep.subr.mxu0 0.0
  %1972 = vmatpush1.msra.mxu0 0.0
  %1973 = vmatprep.subr.mxu0 0.0
  %1974 = vmatpush1.msra.mxu0 0.0
  %1975 = vmatprep.subr.mxu0 0.0
  %1976 = vmatpush1.msra.mxu0 0.0
  %1977 = vmatprep.subr.mxu0 0.0
  %1978 = vmatpush1.msra.mxu0 0.0
  %1979 = vmatprep.subr.mxu0 %v1700
  %1980 = vmatpush1.msra.mxu0 %v1697
  %1981 = vmatprep.subr.mxu0 %v1404
  %1982 = vmatpush1.msra.mxu0 %v1402
  %1983 = vmatprep.subr.mxu0 %v1398
  %1984 = vmatpush1.msra.mxu0 %v1396
  %1985 = vmatprep.subr.mxu0 %v1392
  %1986 = vmatpush1.msra.mxu0 %v1390
  %1987 = vmatprep.subr.mxu0 %v1386
  %1988 = vmatpush1.msra.mxu0 %v1384
  %1989 = vmatprep.subr.mxu0 0.0
  %1990 = vmatpush2.msra.mxu0 0.0
  %1991 = vmatprep.subr.mxu0 0.0
  %1992 = vmatpush2.msra.mxu0 0.0
  %1993 = vmatprep.subr.mxu0 0.0
  %1994 = vmatpush2.msra.mxu0 0.0
  %1995 = vmatprep.subr.mxu0 0.0
  %1996 = vmatpush2.msra.mxu0 0.0
  %1997 = vmatprep.subr.mxu0 0.0
  %1998 = vmatpush2.msra.mxu0 0.0
  %1999 = vmatprep.subr.mxu0 0.0
  %2000 = vmatpush2.msra.mxu0 0.0
  %2001 = vmatprep.subr.mxu0 0.0
  %2002 = vmatpush2.msra.mxu0 0.0
  %2003 = vmatprep.subr.mxu0 0.0
  %2004 = vmatpush2.msra.mxu0 0.0
  %2005 = vmatprep.subr.mxu0 0.0
  %2006 = vmatpush2.msra.mxu0 0.0
  %2007 = vmatprep.subr.mxu0 0.0
  %2008 = vmatpush2.msra.mxu0 0.0
  %2009 = vmatprep.subr.mxu0 0.0
  %2010 = vmatpush2.msra.mxu0 0.0
  %2011 = vmatprep.subr.mxu0 0.0
  %2012 = vmatpush2.msra.mxu0 0.0
  %2013 = vmatprep.subr.mxu0 0.0
  %2014 = vmatpush2.msra.mxu0 0.0
  %2015 = vmatprep.subr.mxu0 0.0
  %2016 = vmatpush2.msra.mxu0 0.0
  %2017 = vmatprep.subr.mxu0 0.0
  %2018 = vmatpush2.msra.mxu0 0.0
  %2019 = vmatprep.subr.mxu0 0.0
  %2020 = vmatpush2.msra.mxu0 0.0
  %2021 = vmatprep.mubr.f32.mxu0 0.0
  %2022 = vmatmul.mubr.f32.gmra.mxu0 %v1949
  %v2023 = vpop.f32.mrf.mxu0
  %v2024 = vadd.f32 0.0, %v2023
  %v2025 = vpop.f32.mrf.mxu0
  %v2026 = vadd.f32 0.0, %v2025
  %2027 = vmatprep.mubr.f32.mxu0 0.0
  %2028 = vmatmul.mubr.f32.gmra.mxu0 %v1952
  %v2029 = vpop.f32.mrf.mxu0
  %v2030 = vadd.f32 0.0, %v2029
  %v2031 = vpop.f32.mrf.mxu0
  %v2032 = vadd.f32 0.0, %v2031
  %2033 = vmatprep.mubr.f32.mxu0 0.0
  %2034 = vmatmul.mubr.f32.gmra.mxu0 %v1955
  %v2035 = vpop.f32.mrf.mxu0
  %v2036 = vadd.f32 0.0, %v2035
  %v2037 = vpop.f32.mrf.mxu0
  %v2038 = vadd.f32 0.0, %v2037
  %2039 = vdwg.mxu0
  %2040 = vmatprep.subr.mxu0 0.0
  %2041 = vmatpush1.msra.mxu0 0.0
  %2042 = vmatprep.subr.mxu0 0.0
  %2043 = vmatpush1.msra.mxu0 0.0
  %2044 = vmatprep.subr.mxu0 0.0
  %2045 = vmatpush1.msra.mxu0 0.0
  %2046 = vmatprep.subr.mxu0 0.0
  %2047 = vmatpush1.msra.mxu0 0.0
  %2048 = vmatprep.subr.mxu0 0.0
  %2049 = vmatpush1.msra.mxu0 0.0
  %2050 = vmatprep.subr.mxu0 0.0
  %2051 = vmatpush1.msra.mxu0 0.0
  %2052 = vmatprep.subr.mxu0 0.0
  %2053 = vmatpush1.msra.mxu0 0.0
  %2054 = vmatprep.subr.mxu0 0.0
  %2055 = vmatpush1.msra.mxu0 0.0
  %2056 = vmatprep.subr.mxu0 0.0
  %2057 = vmatpush1.msra.mxu0 0.0
  %2058 = vmatprep.subr.mxu0 0.0
  %2059 = vmatpush1.msra.mxu0 0.0
  %2060 = vmatprep.subr.mxu0 0.0
  %2061 = vmatpush1.msra.mxu0 0.0
  %2062 = vmatprep.subr.mxu0 0.0
  %2063 = vmatpush1.msra.mxu0 %v1703
  %2064 = vmatprep.subr.mxu0 0.0
  %2065 = vmatpush1.msra.mxu0 %v1674
  %2066 = vmatprep.subr.mxu0 0.0
  %2067 = vmatpush1.msra.mxu0 %v1669
  %2068 = vmatprep.subr.mxu0 0.0
  %2069 = vmatpush1.msra.mxu0 %v1664
  %2070 = vmatprep.subr.mxu0 0.0
  %2071 = vmatpush1.msra.mxu0 %v1659
  %2072 = vmatprep.subr.mxu0 0.0
  %2073 = vmatpush2.msra.mxu0 0.0
  %2074 = vmatprep.subr.mxu0 0.0
  %2075 = vmatpush2.msra.mxu0 0.0
  %2076 = vmatprep.subr.mxu0 0.0
  %2077 = vmatpush2.msra.mxu0 0.0
  %2078 = vmatprep.subr.mxu0 0.0
  %2079 = vmatpush2.msra.mxu0 0.0
  %2080 = vmatprep.subr.mxu0 0.0
  %2081 = vmatpush2.msra.mxu0 0.0
  %2082 = vmatprep.subr.mxu0 0.0
  %2083 = vmatpush2.msra.mxu0 0.0
  %2084 = vmatprep.subr.mxu0 0.0
  %2085 = vmatpush2.msra.mxu0 0.0
  %2086 = vmatprep.subr.mxu0 0.0
  %2087 = vmatpush2.msra.mxu0 0.0
  %2088 = vmatprep.subr.mxu0 0.0
  %2089 = vmatpush2.msra.mxu0 0.0
  %2090 = vmatprep.subr.mxu0 0.0
  %2091 = vmatpush2.msra.mxu0 0.0
  %2092 = vmatprep.subr.mxu0 0.0
  %2093 = vmatpush2.msra.mxu0 0.0
  %2094 = vmatprep.subr.mxu0 0.0
  %2095 = vmatpush2.msra.mxu0 0.0
  %2096 = vmatprep.subr.mxu0 0.0
  %2097 = vmatpush2.msra.mxu0 0.0
  %2098 = vmatprep.subr.mxu0 0.0
  %2099 = vmatpush2.msra.mxu0 0.0
  %2100 = vmatprep.subr.mxu0 0.0
  %2101 = vmatpush2.msra.mxu0 0.0
  %2102 = vmatprep.subr.mxu0 0.0
  %2103 = vmatpush2.msra.mxu0 0.0
  %2104 = vmatprep.mubr.f32.mxu0 0.0
  %2105 = vmatmul.mubr.f32.gmra.mxu0 %v1949
  %v2106 = vpop.f32.mrf.mxu0
  %v2107 = vadd.f32 0.0, %v2106
  %v2108 = vpop.f32.mrf.mxu0
  %2109 = vmatprep.mubr.f32.mxu0 0.0
  %2110 = vmatmul.mubr.f32.gmra.mxu0 %v1952
  %v2111 = vpop.f32.mrf.mxu0
  %v2112 = vadd.f32 0.0, %v2111
  %v2113 = vpop.f32.mrf.mxu0
  %2114 = vmatprep.mubr.f32.mxu0 0.0
  %2115 = vmatmul.mubr.f32.gmra.mxu0 %v1955
  %v2116 = vpop.f32.mrf.mxu0
  %v2117 = vadd.f32 0.0, %v2116
  %v2118 = vpop.f32.mrf.mxu0
  %2119 = vdwg.mxu0
  %s2120 = scalar_lea.vmem %s8, 608
  %v2121 = vld [vmem:[%s2120] sm:$0xff]
  %v2122 = vld [vmem:[%s2120 + $0x8] sm:$0xff]
  %v2123 = vld [vmem:[%s2120 + $0x10] sm:$0xff]
  %v2124 = vld [vmem:[%s2120 + $0x18] sm:$0xff]
  %v2125 = vld [vmem:[%s2120 + $0x20] sm:$0xff]
  %v2126 = vld [vmem:[%s2120 + $0x28] sm:$0xff]
  %v2127 = vld [vmem:[%s2120 + $0x30] sm:$0xff]
  %v2128 = vld [vmem:[%s2120 + $0x38] sm:$0xff]
  %v2129 = vld [vmem:[%s2120 + $0x40] sm:$0xff]
  %v2130 = vld [vmem:[%s2120 + $0x48] sm:$0xff]
  %v2131 = vld [vmem:[%s2120 + $0x50] sm:$0xff]
  %v2132 = vld [vmem:[%s2120 + $0x58] sm:$0xff]
  %v2133 = vld [vmem:[%s2120 + $0x60] sm:$0xff]
  %v2134 = vld [vmem:[%s2120 + $0x68] sm:$0xff]
  %v2135 = vld [vmem:[%s2120 + $0x70] sm:$0xff]
  %v2136 = vld [vmem:[%s2120 + $0x78] sm:$0xff]
  %v2137 = vld [vmem:[%s2120 + $0x80] sm:$0xff]
  %v2138 = vld [vmem:[%s2120 + $0x88] sm:$0xff]
  %v2139 = vld [vmem:[%s2120 + $0x90] sm:$0xff]
  %v2140 = vld [vmem:[%s2120 + $0x98] sm:$0xff]
  %v2141 = vld [vmem:[%s2120 + $0xa0] sm:$0xff]
  %v2142 = vld [vmem:[%s2120 + $0xa8] sm:$0xff]
  %v2143 = vld [vmem:[%s2120 + $0xb0] sm:$0xff]
  %v2144 = vld [vmem:[%s2120 + $0xb8] sm:$0xff]
  %v2145 = vld [vmem:[%s2120 + $0xc0] sm:$0xff]
  %v2146 = vld [vmem:[%s2120 + $0xc8] sm:$0xff]
  %v2147 = vld [vmem:[%s2120 + $0xd0] sm:$0xff]
  %v2148 = vld [vmem:[%s2120 + $0xd8] sm:$0xff]
  %v2149 = vld [vmem:[%s2120 + $0xe0] sm:$0xff]
  %v2150 = vld [vmem:[%s2120 + $0xe8] sm:$0xff]
  %v2151 = vld [vmem:[%s2120 + $0xf0] sm:$0xff]
  %v2152 = vld [vmem:[%s2120 + $0xf8] sm:$0xff]
  %v2153 = vld [vmem:[%s2120 + $0x100] sm:$0xff]
  %v2154 = vld [vmem:[%s2120 + $0x108] sm:$0xff]
  %v2155 = vld [vmem:[%s2120 + $0x110] sm:$0xff]
  %v2156 = vld [vmem:[%s2120 + $0x118] sm:$0xff]
  %v2157 = vld [vmem:[%s2120 + $0x120] sm:$0xff]
  %v2158 = vld [vmem:[%s2120 + $0x128] sm:$0xff]
  %v2159 = vld [vmem:[%s2120 + $0x130] sm:$0xff]
  %v2160 = vld [vmem:[%s2120 + $0x138] sm:$0xff]
  %v2161 = vld [vmem:[%s2120 + $0x140] sm:$0xff]
  %v2162 = vld [vmem:[%s2120 + $0x148] sm:$0xff]
  %v2163 = vld [vmem:[%s2120 + $0x150] sm:$0xff]
  %v2164 = vld [vmem:[%s2120 + $0x158] sm:$0xff]
  %v2165 = vld [vmem:[%s2120 + $0x160] sm:$0xff]
  %v2166 = vld [vmem:[%s2120 + $0x168] sm:$0xff]
  %v2167 = vld [vmem:[%s2120 + $0x170] sm:$0xff]
  %v2168 = vld [vmem:[%s2120 + $0x178] sm:$0xff]
  %v2169 = vld [vmem:[%s2120 + $0x180] sm:$0xff]
  %v2170 = vld [vmem:[%s2120 + $0x188] sm:$0xff]
  %v2171 = vld [vmem:[%s2120 + $0x190] sm:$0xff]
  %v2172 = vld [vmem:[%s2120 + $0x198] sm:$0xff]
  %v2173 = vld [vmem:[%s2120 + $0x1a0] sm:$0xff]
  %v2174 = vld [vmem:[%s2120 + $0x1a8] sm:$0xff]
  %v2175 = vld [vmem:[%s2120 + $0x1b0] sm:$0xff]
  %v2176 = vld [vmem:[%s2120 + $0x1b8] sm:$0xff]
  %v2177 = vld [vmem:[%s2120 + $0x1c0] sm:$0xff]
  %v2178 = vld [vmem:[%s2120 + $0x1c8] sm:$0xff]
  %v2179 = vld [vmem:[%s2120 + $0x1d0] sm:$0xff]
  %v2180 = vld [vmem:[%s2120 + $0x1d8] sm:$0xff]
  %v2181 = vld [vmem:[%s2120 + $0x1e0] sm:$0xff]
  %v2182 = vld [vmem:[%s2120 + $0x1e8] sm:$0xff]
  %v2183 = vld [vmem:[%s2120 + $0x1f0] sm:$0xff]
  %v2184 = vld [vmem:[%s2120 + $0x1f8] sm:$0xff]
  %v2185 = vld [vmem:[%s2120 + $0x200] sm:$0xff]
  %v2186 = vld [vmem:[%s2120 + $0x208] sm:$0xff]
  %v2187 = vld [vmem:[%s2120 + $0x210] sm:$0xff]
  %v2188 = vld [vmem:[%s2120 + $0x218] sm:$0xff]
  %v2189 = vld [vmem:[%s2120 + $0x220] sm:$0xff]
  %v2190 = vld [vmem:[%s2120 + $0x228] sm:$0xff]
  %v2191 = vld [vmem:[%s2120 + $0x230] sm:$0xff]
  %v2192 = vld [vmem:[%s2120 + $0x238] sm:$0xff]
  %v2193 = vld [vmem:[%s2120 + $0x240] sm:$0xff]
  %v2194 = vld [vmem:[%s2120 + $0x248] sm:$0xff]
  %v2195 = vld [vmem:[%s2120 + $0x250] sm:$0xff]
  %v2196 = vld [vmem:[%s2120 + $0x258] sm:$0xff]
  %vm2197 = vcmask 392192
  %v2199 = vsel %vm2197, %v2107, 0
  %v2202 = vsel %vm2197, %v2112, 0
  %v2205 = vsel %vm2197, %v2117, 0
  %2207 = vmatprep.subr.mxu0 %v2152
  %2208 = vmatpush1.msra.mxu0 %v2151
  %2209 = vmatprep.subr.mxu0 %v2150
  %2210 = vmatpush1.msra.mxu0 %v2149
  %2211 = vmatprep.subr.mxu0 %v2148
  %2212 = vmatpush1.msra.mxu0 %v2147
  %2213 = vmatprep.subr.mxu0 %v2146
  %2214 = vmatpush1.msra.mxu0 %v2145
  %2215 = vmatprep.subr.mxu0 %v2144
  %2216 = vmatpush1.msra.mxu0 %v2143
  %2217 = vmatprep.subr.mxu0 %v2142
  %2218 = vmatpush1.msra.mxu0 %v2141
  %2219 = vmatprep.subr.mxu0 %v2140
  %2220 = vmatpush1.msra.mxu0 %v2139
  %2221 = vmatprep.subr.mxu0 %v2138
  %2222 = vmatpush1.msra.mxu0 %v2137
  %2223 = vmatprep.subr.mxu0 %v2136
  %2224 = vmatpush1.msra.mxu0 %v2135
  %2225 = vmatprep.subr.mxu0 %v2134
  %2226 = vmatpush1.msra.mxu0 %v2133
  %2227 = vmatprep.subr.mxu0 %v2132
  %2228 = vmatpush1.msra.mxu0 %v2131
  %2229 = vmatprep.subr.mxu0 %v2130
  %2230 = vmatpush1.msra.mxu0 %v2129
  %2231 = vmatprep.subr.mxu0 %v2128
  %2232 = vmatpush1.msra.mxu0 %v2127
  %2233 = vmatprep.subr.mxu0 %v2126
  %2234 = vmatpush1.msra.mxu0 %v2125
  %2235 = vmatprep.subr.mxu0 %v2124
  %2236 = vmatpush1.msra.mxu0 %v2123
  %2237 = vmatprep.subr.mxu0 %v2122
  %2238 = vmatpush1.msra.mxu0 %v2121
  %2239 = vmatprep.subr.mxu0 %v2184
  %2240 = vmatpush2.msra.mxu0 %v2183
  %2241 = vmatprep.subr.mxu0 %v2182
  %2242 = vmatpush2.msra.mxu0 %v2181
  %2243 = vmatprep.subr.mxu0 %v2180
  %2244 = vmatpush2.msra.mxu0 %v2179
  %2245 = vmatprep.subr.mxu0 %v2178
  %2246 = vmatpush2.msra.mxu0 %v2177
  %2247 = vmatprep.subr.mxu0 %v2176
  %2248 = vmatpush2.msra.mxu0 %v2175
  %2249 = vmatprep.subr.mxu0 %v2174
  %2250 = vmatpush2.msra.mxu0 %v2173
  %2251 = vmatprep.subr.mxu0 %v2172
  %2252 = vmatpush2.msra.mxu0 %v2171
  %2253 = vmatprep.subr.mxu0 %v2170
  %2254 = vmatpush2.msra.mxu0 %v2169
  %2255 = vmatprep.subr.mxu0 %v2168
  %2256 = vmatpush2.msra.mxu0 %v2167
  %2257 = vmatprep.subr.mxu0 %v2166
  %2258 = vmatpush2.msra.mxu0 %v2165
  %2259 = vmatprep.subr.mxu0 %v2164
  %2260 = vmatpush2.msra.mxu0 %v2163
  %2261 = vmatprep.subr.mxu0 %v2162
  %2262 = vmatpush2.msra.mxu0 %v2161
  %2263 = vmatprep.subr.mxu0 %v2160
  %2264 = vmatpush2.msra.mxu0 %v2159
  %2265 = vmatprep.subr.mxu0 %v2158
  %2266 = vmatpush2.msra.mxu0 %v2157
  %2267 = vmatprep.subr.mxu0 %v2156
  %2268 = vmatpush2.msra.mxu0 %v2155
  %2269 = vmatprep.subr.mxu0 %v2154
  %2270 = vmatpush2.msra.mxu0 %v2153
  %2271 = vmatprep.mubr.f32.mxu0 %v2026
  %2272 = vmatmul.mubr.f32.gmra.mxu0 %v2024
  %v2273 = vpop.f32.mrf.mxu0
  %v2274 = vadd.f32 0.0, %v2273
  %v2275 = vpop.f32.mrf.mxu0
  %v2276 = vadd.f32 0.0, %v2275
  %2277 = vmatprep.mubr.f32.mxu0 %v2032
  %2278 = vmatmul.mubr.f32.gmra.mxu0 %v2030
  %v2279 = vpop.f32.mrf.mxu0
  %v2280 = vadd.f32 0.0, %v2279
  %v2281 = vpop.f32.mrf.mxu0
  %v2282 = vadd.f32 0.0, %v2281
  %2283 = vmatprep.mubr.f32.mxu0 %v2038
  %2284 = vmatmul.mubr.f32.gmra.mxu0 %v2036
  %v2285 = vpop.f32.mrf.mxu0
  %v2286 = vadd.f32 0.0, %v2285
  %v2287 = vpop.f32.mrf.mxu0
  %v2288 = vadd.f32 0.0, %v2287
  %2289 = vdwg.mxu0
  %2290 = vmatprep.subr.mxu0 0.0
  %2291 = vmatpush1.msra.mxu0 0.0
  %2292 = vmatprep.subr.mxu0 0.0
  %2293 = vmatpush1.msra.mxu0 0.0
  %2294 = vmatprep.subr.mxu0 0.0
  %2295 = vmatpush1.msra.mxu0 0.0
  %2296 = vmatprep.subr.mxu0 0.0
  %2297 = vmatpush1.msra.mxu0 0.0
  %2298 = vmatprep.subr.mxu0 0.0
  %2299 = vmatpush1.msra.mxu0 0.0
  %2300 = vmatprep.subr.mxu0 0.0
  %2301 = vmatpush1.msra.mxu0 0.0
  %2302 = vmatprep.subr.mxu0 0.0
  %2303 = vmatpush1.msra.mxu0 0.0
  %2304 = vmatprep.subr.mxu0 0.0
  %2305 = vmatpush1.msra.mxu0 0.0
  %2306 = vmatprep.subr.mxu0 0.0
  %2307 = vmatpush1.msra.mxu0 0.0
  %2308 = vmatprep.subr.mxu0 0.0
  %2309 = vmatpush1.msra.mxu0 0.0
  %2310 = vmatprep.subr.mxu0 %v2196
  %2311 = vmatpush1.msra.mxu0 %v2195
  %2312 = vmatprep.subr.mxu0 %v2194
  %2313 = vmatpush1.msra.mxu0 %v2193
  %2314 = vmatprep.subr.mxu0 %v2192
  %2315 = vmatpush1.msra.mxu0 %v2191
  %2316 = vmatprep.subr.mxu0 %v2190
  %2317 = vmatpush1.msra.mxu0 %v2189
  %2318 = vmatprep.subr.mxu0 %v2188
  %2319 = vmatpush1.msra.mxu0 %v2187
  %2320 = vmatprep.subr.mxu0 %v2186
  %2321 = vmatpush1.msra.mxu0 %v2185
  %2322 = vmatprep.subr.mxu0 0.0
  %2323 = vmatpush2.msra.mxu0 0.0
  %2324 = vmatprep.subr.mxu0 0.0
  %2325 = vmatpush2.msra.mxu0 0.0
  %2326 = vmatprep.subr.mxu0 0.0
  %2327 = vmatpush2.msra.mxu0 0.0
  %2328 = vmatprep.subr.mxu0 0.0
  %2329 = vmatpush2.msra.mxu0 0.0
  %2330 = vmatprep.subr.mxu0 0.0
  %2331 = vmatpush2.msra.mxu0 0.0
  %2332 = vmatprep.subr.mxu0 0.0
  %2333 = vmatpush2.msra.mxu0 0.0
  %2334 = vmatprep.subr.mxu0 0.0
  %2335 = vmatpush2.msra.mxu0 0.0
  %2336 = vmatprep.subr.mxu0 0.0
  %2337 = vmatpush2.msra.mxu0 0.0
  %2338 = vmatprep.subr.mxu0 0.0
  %2339 = vmatpush2.msra.mxu0 0.0
  %2340 = vmatprep.subr.mxu0 0.0
  %2341 = vmatpush2.msra.mxu0 0.0
  %2342 = vmatprep.subr.mxu0 0.0
  %2343 = vmatpush2.msra.mxu0 0.0
  %2344 = vmatprep.subr.mxu0 0.0
  %2345 = vmatpush2.msra.mxu0 0.0
  %2346 = vmatprep.subr.mxu0 0.0
  %2347 = vmatpush2.msra.mxu0 0.0
  %2348 = vmatprep.subr.mxu0 0.0
  %2349 = vmatpush2.msra.mxu0 0.0
  %2350 = vmatprep.subr.mxu0 0.0
  %2351 = vmatpush2.msra.mxu0 0.0
  %2352 = vmatprep.subr.mxu0 0.0
  %2353 = vmatpush2.msra.mxu0 0.0
  %2354 = vmatprep.mubr.f32.mxu0 0.0
  %2355 = vmatmul.mubr.f32.gmra.mxu0 %v2199
  %v2356 = vpop.f32.mrf.mxu0
  %v2357 = vadd.f32 %v2274, %v2356
  %v2358 = vpop.f32.mrf.mxu0
  %v2359 = vadd.f32 %v2276, %v2358
  %2360 = vmatprep.mubr.f32.mxu0 0.0
  %2361 = vmatmul.mubr.f32.gmra.mxu0 %v2202
  %v2362 = vpop.f32.mrf.mxu0
  %v2363 = vadd.f32 %v2280, %v2362
  %v2364 = vpop.f32.mrf.mxu0
  %v2365 = vadd.f32 %v2282, %v2364
  %2366 = vmatprep.mubr.f32.mxu0 0.0
  %2367 = vmatmul.mubr.f32.gmra.mxu0 %v2205
  %v2368 = vpop.f32.mrf.mxu0
  %v2369 = vadd.f32 %v2286, %v2368
  %v2370 = vpop.f32.mrf.mxu0
  %v2371 = vadd.f32 %v2288, %v2370
  %2372 = vdwg.mxu0
  %v2374 = vsel %vm2197, %v1855, 0
  %v2377 = vsel %vm2197, %v1860, 0
  %v2380 = vsel %vm2197, %v1865, 0
  %2382 = vmatprep.subr.mxu0 %v1899
  %2383 = vmatpush1.msra.mxu0 %v1898
  %2384 = vmatprep.subr.mxu0 %v1897
  %2385 = vmatpush1.msra.mxu0 %v1896
  %2386 = vmatprep.subr.mxu0 %v1895
  %2387 = vmatpush1.msra.mxu0 %v1894
  %2388 = vmatprep.subr.mxu0 %v1893
  %2389 = vmatpush1.msra.mxu0 %v1892
  %2390 = vmatprep.subr.mxu0 %v1891
  %2391 = vmatpush1.msra.mxu0 %v1890
  %2392 = vmatprep.subr.mxu0 %v1889
  %2393 = vmatpush1.msra.mxu0 %v1888
  %2394 = vmatprep.subr.mxu0 %v1887
  %2395 = vmatpush1.msra.mxu0 %v1886
  %2396 = vmatprep.subr.mxu0 %v1885
  %2397 = vmatpush1.msra.mxu0 %v1884
  %2398 = vmatprep.subr.mxu0 %v1883
  %2399 = vmatpush1.msra.mxu0 %v1882
  %2400 = vmatprep.subr.mxu0 %v1881
  %2401 = vmatpush1.msra.mxu0 %v1880
  %2402 = vmatprep.subr.mxu0 %v1879
  %2403 = vmatpush1.msra.mxu0 %v1878
  %2404 = vmatprep.subr.mxu0 %v1877
  %2405 = vmatpush1.msra.mxu0 %v1876
  %2406 = vmatprep.subr.mxu0 %v1875
  %2407 = vmatpush1.msra.mxu0 %v1874
  %2408 = vmatprep.subr.mxu0 %v1873
  %2409 = vmatpush1.msra.mxu0 %v1872
  %2410 = vmatprep.subr.mxu0 %v1871
  %2411 = vmatpush1.msra.mxu0 %v1870
  %2412 = vmatprep.subr.mxu0 %v1869
  %2413 = vmatpush1.msra.mxu0 %v1868
  %2414 = vmatprep.subr.mxu0 %v1931
  %2415 = vmatpush2.msra.mxu0 %v1930
  %2416 = vmatprep.subr.mxu0 %v1929
  %2417 = vmatpush2.msra.mxu0 %v1928
  %2418 = vmatprep.subr.mxu0 %v1927
  %2419 = vmatpush2.msra.mxu0 %v1926
  %2420 = vmatprep.subr.mxu0 %v1925
  %2421 = vmatpush2.msra.mxu0 %v1924
  %2422 = vmatprep.subr.mxu0 %v1923
  %2423 = vmatpush2.msra.mxu0 %v1922
  %2424 = vmatprep.subr.mxu0 %v1921
  %2425 = vmatpush2.msra.mxu0 %v1920
  %2426 = vmatprep.subr.mxu0 %v1919
  %2427 = vmatpush2.msra.mxu0 %v1918
  %2428 = vmatprep.subr.mxu0 %v1917
  %2429 = vmatpush2.msra.mxu0 %v1916
  %2430 = vmatprep.subr.mxu0 %v1915
  %2431 = vmatpush2.msra.mxu0 %v1914
  %2432 = vmatprep.subr.mxu0 %v1913
  %2433 = vmatpush2.msra.mxu0 %v1912
  %2434 = vmatprep.subr.mxu0 %v1911
  %2435 = vmatpush2.msra.mxu0 %v1910
  %2436 = vmatprep.subr.mxu0 %v1909
  %2437 = vmatpush2.msra.mxu0 %v1908
  %2438 = vmatprep.subr.mxu0 %v1907
  %2439 = vmatpush2.msra.mxu0 %v1906
  %2440 = vmatprep.subr.mxu0 %v1905
  %2441 = vmatpush2.msra.mxu0 %v1904
  %2442 = vmatprep.subr.mxu0 %v1903
  %2443 = vmatpush2.msra.mxu0 %v1902
  %2444 = vmatprep.subr.mxu0 %v1901
  %2445 = vmatpush2.msra.mxu0 %v1900
  %2446 = vmatprep.mubr.f32.mxu0 %v1774
  %2447 = vmatmul.mubr.f32.gmra.mxu0 %v1772
  %v2448 = vpop.f32.mrf.mxu0
  %v2449 = vadd.f32 %v2357, %v2448
  %v2450 = vpop.f32.mrf.mxu0
  %v2451 = vadd.f32 %v2359, %v2450
  %2452 = vmatprep.mubr.f32.mxu0 %v1780
  %2453 = vmatmul.mubr.f32.gmra.mxu0 %v1778
  %v2454 = vpop.f32.mrf.mxu0
  %v2455 = vadd.f32 %v2363, %v2454
  %v2456 = vpop.f32.mrf.mxu0
  %v2457 = vadd.f32 %v2365, %v2456
  %2458 = vmatprep.mubr.f32.mxu0 %v1786
  %2459 = vmatmul.mubr.f32.gmra.mxu0 %v1784
  %v2460 = vpop.f32.mrf.mxu0
  %v2461 = vadd.f32 %v2369, %v2460
  %v2462 = vpop.f32.mrf.mxu0
  %v2463 = vadd.f32 %v2371, %v2462
  %2464 = vdwg.mxu0
  %2465 = vmatprep.subr.mxu0 0.0
  %2466 = vmatpush1.msra.mxu0 0.0
  %2467 = vmatprep.subr.mxu0 0.0
  %2468 = vmatpush1.msra.mxu0 0.0
  %2469 = vmatprep.subr.mxu0 0.0
  %2470 = vmatpush1.msra.mxu0 0.0
  %2471 = vmatprep.subr.mxu0 0.0
  %2472 = vmatpush1.msra.mxu0 0.0
  %2473 = vmatprep.subr.mxu0 0.0
  %2474 = vmatpush1.msra.mxu0 0.0
  %2475 = vmatprep.subr.mxu0 0.0
  %2476 = vmatpush1.msra.mxu0 0.0
  %2477 = vmatprep.subr.mxu0 0.0
  %2478 = vmatpush1.msra.mxu0 0.0
  %2479 = vmatprep.subr.mxu0 0.0
  %2480 = vmatpush1.msra.mxu0 0.0
  %2481 = vmatprep.subr.mxu0 0.0
  %2482 = vmatpush1.msra.mxu0 0.0
  %2483 = vmatprep.subr.mxu0 0.0
  %2484 = vmatpush1.msra.mxu0 0.0
  %2485 = vmatprep.subr.mxu0 %v1943
  %2486 = vmatpush1.msra.mxu0 %v1942
  %2487 = vmatprep.subr.mxu0 %v1941
  %2488 = vmatpush1.msra.mxu0 %v1940
  %2489 = vmatprep.subr.mxu0 %v1939
  %2490 = vmatpush1.msra.mxu0 %v1938
  %2491 = vmatprep.subr.mxu0 %v1937
  %2492 = vmatpush1.msra.mxu0 %v1936
  %2493 = vmatprep.subr.mxu0 %v1935
  %2494 = vmatpush1.msra.mxu0 %v1934
  %2495 = vmatprep.subr.mxu0 %v1933
  %2496 = vmatpush1.msra.mxu0 %v1932
  %2497 = vmatprep.subr.mxu0 0.0
  %2498 = vmatpush2.msra.mxu0 0.0
  %2499 = vmatprep.subr.mxu0 0.0
  %2500 = vmatpush2.msra.mxu0 0.0
  %2501 = vmatprep.subr.mxu0 0.0
  %2502 = vmatpush2.msra.mxu0 0.0
  %2503 = vmatprep.subr.mxu0 0.0
  %2504 = vmatpush2.msra.mxu0 0.0
  %2505 = vmatprep.subr.mxu0 0.0
  %2506 = vmatpush2.msra.mxu0 0.0
  %2507 = vmatprep.subr.mxu0 0.0
  %2508 = vmatpush2.msra.mxu0 0.0
  %2509 = vmatprep.subr.mxu0 0.0
  %2510 = vmatpush2.msra.mxu0 0.0
  %2511 = vmatprep.subr.mxu0 0.0
  %2512 = vmatpush2.msra.mxu0 0.0
  %2513 = vmatprep.subr.mxu0 0.0
  %2514 = vmatpush2.msra.mxu0 0.0
  %2515 = vmatprep.subr.mxu0 0.0
  %2516 = vmatpush2.msra.mxu0 0.0
  %2517 = vmatprep.subr.mxu0 0.0
  %2518 = vmatpush2.msra.mxu0 0.0
  %2519 = vmatprep.subr.mxu0 0.0
  %2520 = vmatpush2.msra.mxu0 0.0
  %2521 = vmatprep.subr.mxu0 0.0
  %2522 = vmatpush2.msra.mxu0 0.0
  %2523 = vmatprep.subr.mxu0 0.0
  %2524 = vmatpush2.msra.mxu0 0.0
  %2525 = vmatprep.subr.mxu0 0.0
  %2526 = vmatpush2.msra.mxu0 0.0
  %2527 = vmatprep.subr.mxu0 0.0
  %2528 = vmatpush2.msra.mxu0 0.0
  %2529 = vmatprep.mubr.f32.mxu0 0.0
  %2530 = vmatmul.mubr.f32.gmra.mxu0 %v2374
  %v2531 = vpop.f32.mrf.mxu0
  %v2532 = vadd.f32 %v2449, %v2531
  %v2533 = vpop.f32.mrf.mxu0
  %v2534 = vadd.f32 %v2451, %v2533
  %2535 = vmatprep.mubr.f32.mxu0 0.0
  %2536 = vmatmul.mubr.f32.gmra.mxu0 %v2377
  %v2537 = vpop.f32.mrf.mxu0
  %v2538 = vadd.f32 %v2455, %v2537
  %v2539 = vpop.f32.mrf.mxu0
  %v2540 = vadd.f32 %v2457, %v2539
  %2541 = vmatprep.mubr.f32.mxu0 0.0
  %2542 = vmatmul.mubr.f32.gmra.mxu0 %v2380
  %v2543 = vpop.f32.mrf.mxu0
  %v2544 = vadd.f32 %v2461, %v2543
  %v2545 = vpop.f32.mrf.mxu0
  %v2546 = vadd.f32 %v2463, %v2545
  %2547 = vdwg.mxu0
  %s2548 = scalar_lea.vmem %s7, 48
  %v2549 = vld [vmem:[%s2548] sm:$0xff]
  %v2550 = vld [vmem:[%s2548 + $0x8] sm:$0xff]
  %v2551 = vld [vmem:[%s2548 + $0x10] sm:$0xf]
  %v2553 = vsel %vm1685, %v2549, 0
  %v2556 = vsel %vm1685, %v2550, 0
  %v2559 = vsel %vm1685, %v2551, 0
  %2561 = vmatprep.subr.mxu0 0.0
  %2562 = vmatpush1.msra.mxu0 0.0
  %2563 = vmatprep.subr.mxu0 0.0
  %2564 = vmatpush1.msra.mxu0 0.0
  %2565 = vmatprep.subr.mxu0 0.0
  %2566 = vmatpush1.msra.mxu0 0.0
  %2567 = vmatprep.subr.mxu0 0.0
  %2568 = vmatpush1.msra.mxu0 0.0
  %2569 = vmatprep.subr.mxu0 0.0
  %2570 = vmatpush1.msra.mxu0 0.0
  %2571 = vmatprep.subr.mxu0 0.0
  %2572 = vmatpush1.msra.mxu0 0.0
  %2573 = vmatprep.subr.mxu0 0.0
  %2574 = vmatpush1.msra.mxu0 0.0
  %2575 = vmatprep.subr.mxu0 0.0
  %2576 = vmatpush1.msra.mxu0 0.0
  %2577 = vmatprep.subr.mxu0 0.0
  %2578 = vmatpush1.msra.mxu0 0.0
  %2579 = vmatprep.subr.mxu0 0.0
  %2580 = vmatpush1.msra.mxu0 0.0
  %2581 = vmatprep.subr.mxu0 0.0
  %2582 = vmatpush1.msra.mxu0 0.0
  %2583 = vmatprep.subr.mxu0 %v1700
  %2584 = vmatpush1.msra.mxu0 %v1697
  %2585 = vmatprep.subr.mxu0 %v1404
  %2586 = vmatpush1.msra.mxu0 %v1402
  %2587 = vmatprep.subr.mxu0 %v1398
  %2588 = vmatpush1.msra.mxu0 %v1396
  %2589 = vmatprep.subr.mxu0 %v1392
  %2590 = vmatpush1.msra.mxu0 %v1390
  %2591 = vmatprep.subr.mxu0 %v1386
  %2592 = vmatpush1.msra.mxu0 %v1384
  %2593 = vmatprep.subr.mxu0 0.0
  %2594 = vmatpush2.msra.mxu0 0.0
  %2595 = vmatprep.subr.mxu0 0.0
  %2596 = vmatpush2.msra.mxu0 0.0
  %2597 = vmatprep.subr.mxu0 0.0
  %2598 = vmatpush2.msra.mxu0 0.0
  %2599 = vmatprep.subr.mxu0 0.0
  %2600 = vmatpush2.msra.mxu0 0.0
  %2601 = vmatprep.subr.mxu0 0.0
  %2602 = vmatpush2.msra.mxu0 0.0
  %2603 = vmatprep.subr.mxu0 0.0
  %2604 = vmatpush2.msra.mxu0 0.0
  %2605 = vmatprep.subr.mxu0 0.0
  %2606 = vmatpush2.msra.mxu0 0.0
  %2607 = vmatprep.subr.mxu0 0.0
  %2608 = vmatpush2.msra.mxu0 0.0
  %2609 = vmatprep.subr.mxu0 0.0
  %2610 = vmatpush2.msra.mxu0 0.0
  %2611 = vmatprep.subr.mxu0 0.0
  %2612 = vmatpush2.msra.mxu0 0.0
  %2613 = vmatprep.subr.mxu0 0.0
  %2614 = vmatpush2.msra.mxu0 0.0
  %2615 = vmatprep.subr.mxu0 0.0
  %2616 = vmatpush2.msra.mxu0 0.0
  %2617 = vmatprep.subr.mxu0 0.0
  %2618 = vmatpush2.msra.mxu0 0.0
  %2619 = vmatprep.subr.mxu0 0.0
  %2620 = vmatpush2.msra.mxu0 0.0
  %2621 = vmatprep.subr.mxu0 0.0
  %2622 = vmatpush2.msra.mxu0 0.0
  %2623 = vmatprep.subr.mxu0 0.0
  %2624 = vmatpush2.msra.mxu0 0.0
  %2625 = vmatprep.mubr.f32.mxu0 0.0
  %2626 = vmatmul.mubr.f32.gmra.mxu0 %v2553
  %v2627 = vpop.f32.mrf.mxu0
  %v2628 = vadd.f32 0.0, %v2627
  %v2629 = vpop.f32.mrf.mxu0
  %v2630 = vadd.f32 0.0, %v2629
  %2631 = vmatprep.mubr.f32.mxu0 0.0
  %2632 = vmatmul.mubr.f32.gmra.mxu0 %v2556
  %v2633 = vpop.f32.mrf.mxu0
  %v2634 = vadd.f32 0.0, %v2633
  %v2635 = vpop.f32.mrf.mxu0
  %v2636 = vadd.f32 0.0, %v2635
  %2637 = vmatprep.mubr.f32.mxu0 0.0
  %2638 = vmatmul.mubr.f32.gmra.mxu0 %v2559
  %v2639 = vpop.f32.mrf.mxu0
  %v2640 = vadd.f32 0.0, %v2639
  %v2641 = vpop.f32.mrf.mxu0
  %v2642 = vadd.f32 0.0, %v2641
  %2643 = vdwg.mxu0
  %2644 = vmatprep.subr.mxu0 0.0
  %2645 = vmatpush1.msra.mxu0 0.0
  %2646 = vmatprep.subr.mxu0 0.0
  %2647 = vmatpush1.msra.mxu0 0.0
  %2648 = vmatprep.subr.mxu0 0.0
  %2649 = vmatpush1.msra.mxu0 0.0
  %2650 = vmatprep.subr.mxu0 0.0
  %2651 = vmatpush1.msra.mxu0 0.0
  %2652 = vmatprep.subr.mxu0 0.0
  %2653 = vmatpush1.msra.mxu0 0.0
  %2654 = vmatprep.subr.mxu0 0.0
  %2655 = vmatpush1.msra.mxu0 0.0
  %2656 = vmatprep.subr.mxu0 0.0
  %2657 = vmatpush1.msra.mxu0 0.0
  %2658 = vmatprep.subr.mxu0 0.0
  %2659 = vmatpush1.msra.mxu0 0.0
  %2660 = vmatprep.subr.mxu0 0.0
  %2661 = vmatpush1.msra.mxu0 0.0
  %2662 = vmatprep.subr.mxu0 0.0
  %2663 = vmatpush1.msra.mxu0 0.0
  %2664 = vmatprep.subr.mxu0 0.0
  %2665 = vmatpush1.msra.mxu0 0.0
  %2666 = vmatprep.subr.mxu0 0.0
  %2667 = vmatpush1.msra.mxu0 %v1703
  %2668 = vmatprep.subr.mxu0 0.0
  %2669 = vmatpush1.msra.mxu0 %v1674
  %2670 = vmatprep.subr.mxu0 0.0
  %2671 = vmatpush1.msra.mxu0 %v1669
  %2672 = vmatprep.subr.mxu0 0.0
  %2673 = vmatpush1.msra.mxu0 %v1664
  %2674 = vmatprep.subr.mxu0 0.0
  %2675 = vmatpush1.msra.mxu0 %v1659
  %2676 = vmatprep.subr.mxu0 0.0
  %2677 = vmatpush2.msra.mxu0 0.0
  %2678 = vmatprep.subr.mxu0 0.0
  %2679 = vmatpush2.msra.mxu0 0.0
  %2680 = vmatprep.subr.mxu0 0.0
  %2681 = vmatpush2.msra.mxu0 0.0
  %2682 = vmatprep.subr.mxu0 0.0
  %2683 = vmatpush2.msra.mxu0 0.0
  %2684 = vmatprep.subr.mxu0 0.0
  %2685 = vmatpush2.msra.mxu0 0.0
  %2686 = vmatprep.subr.mxu0 0.0
  %2687 = vmatpush2.msra.mxu0 0.0
  %2688 = vmatprep.subr.mxu0 0.0
  %2689 = vmatpush2.msra.mxu0 0.0
  %2690 = vmatprep.subr.mxu0 0.0
  %2691 = vmatpush2.msra.mxu0 0.0
  %2692 = vmatprep.subr.mxu0 0.0
  %2693 = vmatpush2.msra.mxu0 0.0
  %2694 = vmatprep.subr.mxu0 0.0
  %2695 = vmatpush2.msra.mxu0 0.0
  %2696 = vmatprep.subr.mxu0 0.0
  %2697 = vmatpush2.msra.mxu0 0.0
  %2698 = vmatprep.subr.mxu0 0.0
  %2699 = vmatpush2.msra.mxu0 0.0
  %2700 = vmatprep.subr.mxu0 0.0
  %2701 = vmatpush2.msra.mxu0 0.0
  %2702 = vmatprep.subr.mxu0 0.0
  %2703 = vmatpush2.msra.mxu0 0.0
  %2704 = vmatprep.subr.mxu0 0.0
  %2705 = vmatpush2.msra.mxu0 0.0
  %2706 = vmatprep.subr.mxu0 0.0
  %2707 = vmatpush2.msra.mxu0 0.0
  %2708 = vmatprep.mubr.f32.mxu0 0.0
  %2709 = vmatmul.mubr.f32.gmra.mxu0 %v2553
  %v2710 = vpop.f32.mrf.mxu0
  %v2711 = vadd.f32 0.0, %v2710
  %v2712 = vpop.f32.mrf.mxu0
  %2713 = vmatprep.mubr.f32.mxu0 0.0
  %2714 = vmatmul.mubr.f32.gmra.mxu0 %v2556
  %v2715 = vpop.f32.mrf.mxu0
  %v2716 = vadd.f32 0.0, %v2715
  %v2717 = vpop.f32.mrf.mxu0
  %2718 = vmatprep.mubr.f32.mxu0 0.0
  %2719 = vmatmul.mubr.f32.gmra.mxu0 %v2559
  %v2720 = vpop.f32.mrf.mxu0
  %v2721 = vadd.f32 0.0, %v2720
  %v2722 = vpop.f32.mrf.mxu0
  %2723 = vdwg.mxu0
  %s2724 = scalar_lea.vmem %s8, 1216
  %v2725 = vld [vmem:[%s2724] sm:$0xff]
  %v2726 = vld [vmem:[%s2724 + $0x8] sm:$0xff]
  %v2727 = vld [vmem:[%s2724 + $0x10] sm:$0xff]
  %v2728 = vld [vmem:[%s2724 + $0x18] sm:$0xff]
  %v2729 = vld [vmem:[%s2724 + $0x20] sm:$0xff]
  %v2730 = vld [vmem:[%s2724 + $0x28] sm:$0xff]
  %v2731 = vld [vmem:[%s2724 + $0x30] sm:$0xff]
  %v2732 = vld [vmem:[%s2724 + $0x38] sm:$0xff]
  %v2733 = vld [vmem:[%s2724 + $0x40] sm:$0xff]
  %v2734 = vld [vmem:[%s2724 + $0x48] sm:$0xff]
  %v2735 = vld [vmem:[%s2724 + $0x50] sm:$0xff]
  %v2736 = vld [vmem:[%s2724 + $0x58] sm:$0xff]
  %v2737 = vld [vmem:[%s2724 + $0x60] sm:$0xff]
  %v2738 = vld [vmem:[%s2724 + $0x68] sm:$0xff]
  %v2739 = vld [vmem:[%s2724 + $0x70] sm:$0xff]
  %v2740 = vld [vmem:[%s2724 + $0x78] sm:$0xff]
  %v2741 = vld [vmem:[%s2724 + $0x80] sm:$0xff]
  %v2742 = vld [vmem:[%s2724 + $0x88] sm:$0xff]
  %v2743 = vld [vmem:[%s2724 + $0x90] sm:$0xff]
  %v2744 = vld [vmem:[%s2724 + $0x98] sm:$0xff]
  %v2745 = vld [vmem:[%s2724 + $0xa0] sm:$0xff]
  %v2746 = vld [vmem:[%s2724 + $0xa8] sm:$0xff]
  %v2747 = vld [vmem:[%s2724 + $0xb0] sm:$0xff]
  %v2748 = vld [vmem:[%s2724 + $0xb8] sm:$0xff]
  %v2749 = vld [vmem:[%s2724 + $0xc0] sm:$0xff]
  %v2750 = vld [vmem:[%s2724 + $0xc8] sm:$0xff]
  %v2751 = vld [vmem:[%s2724 + $0xd0] sm:$0xff]
  %v2752 = vld [vmem:[%s2724 + $0xd8] sm:$0xff]
  %v2753 = vld [vmem:[%s2724 + $0xe0] sm:$0xff]
  %v2754 = vld [vmem:[%s2724 + $0xe8] sm:$0xff]
  %v2755 = vld [vmem:[%s2724 + $0xf0] sm:$0xff]
  %v2756 = vld [vmem:[%s2724 + $0xf8] sm:$0xff]
  %v2757 = vld [vmem:[%s2724 + $0x100] sm:$0xff]
  %v2758 = vld [vmem:[%s2724 + $0x108] sm:$0xff]
  %v2759 = vld [vmem:[%s2724 + $0x110] sm:$0xff]
  %v2760 = vld [vmem:[%s2724 + $0x118] sm:$0xff]
  %v2761 = vld [vmem:[%s2724 + $0x120] sm:$0xff]
  %v2762 = vld [vmem:[%s2724 + $0x128] sm:$0xff]
  %v2763 = vld [vmem:[%s2724 + $0x130] sm:$0xff]
  %v2764 = vld [vmem:[%s2724 + $0x138] sm:$0xff]
  %v2765 = vld [vmem:[%s2724 + $0x140] sm:$0xff]
  %v2766 = vld [vmem:[%s2724 + $0x148] sm:$0xff]
  %v2767 = vld [vmem:[%s2724 + $0x150] sm:$0xff]
  %v2768 = vld [vmem:[%s2724 + $0x158] sm:$0xff]
  %v2769 = vld [vmem:[%s2724 + $0x160] sm:$0xff]
  %v2770 = vld [vmem:[%s2724 + $0x168] sm:$0xff]
  %v2771 = vld [vmem:[%s2724 + $0x170] sm:$0xff]
  %v2772 = vld [vmem:[%s2724 + $0x178] sm:$0xff]
  %v2773 = vld [vmem:[%s2724 + $0x180] sm:$0xff]
  %v2774 = vld [vmem:[%s2724 + $0x188] sm:$0xff]
  %v2775 = vld [vmem:[%s2724 + $0x190] sm:$0xff]
  %v2776 = vld [vmem:[%s2724 + $0x198] sm:$0xff]
  %v2777 = vld [vmem:[%s2724 + $0x1a0] sm:$0xff]
  %v2778 = vld [vmem:[%s2724 + $0x1a8] sm:$0xff]
  %v2779 = vld [vmem:[%s2724 + $0x1b0] sm:$0xff]
  %v2780 = vld [vmem:[%s2724 + $0x1b8] sm:$0xff]
  %v2781 = vld [vmem:[%s2724 + $0x1c0] sm:$0xff]
  %v2782 = vld [vmem:[%s2724 + $0x1c8] sm:$0xff]
  %v2783 = vld [vmem:[%s2724 + $0x1d0] sm:$0xff]
  %v2784 = vld [vmem:[%s2724 + $0x1d8] sm:$0xff]
  %v2785 = vld [vmem:[%s2724 + $0x1e0] sm:$0xff]
  %v2786 = vld [vmem:[%s2724 + $0x1e8] sm:$0xff]
  %v2787 = vld [vmem:[%s2724 + $0x1f0] sm:$0xff]
  %v2788 = vld [vmem:[%s2724 + $0x1f8] sm:$0xff]
  %v2789 = vld [vmem:[%s2724 + $0x200] sm:$0xff]
  %v2790 = vld [vmem:[%s2724 + $0x208] sm:$0xff]
  %v2791 = vld [vmem:[%s2724 + $0x210] sm:$0xff]
  %v2792 = vld [vmem:[%s2724 + $0x218] sm:$0xff]
  %v2793 = vld [vmem:[%s2724 + $0x220] sm:$0xff]
  %v2794 = vld [vmem:[%s2724 + $0x228] sm:$0xff]
  %v2795 = vld [vmem:[%s2724 + $0x230] sm:$0xff]
  %v2796 = vld [vmem:[%s2724 + $0x238] sm:$0xff]
  %v2797 = vld [vmem:[%s2724 + $0x240] sm:$0xff]
  %v2798 = vld [vmem:[%s2724 + $0x248] sm:$0xff]
  %v2799 = vld [vmem:[%s2724 + $0x250] sm:$0xff]
  %v2800 = vld [vmem:[%s2724 + $0x258] sm:$0xff]
  %v2802 = vsel %vm2197, %v2711, 0
  %v2805 = vsel %vm2197, %v2716, 0
  %v2808 = vsel %vm2197, %v2721, 0
  %2810 = vmatprep.subr.mxu0 %v2756
  %2811 = vmatpush1.msra.mxu0 %v2755
  %2812 = vmatprep.subr.mxu0 %v2754
  %2813 = vmatpush1.msra.mxu0 %v2753
  %2814 = vmatprep.subr.mxu0 %v2752
  %2815 = vmatpush1.msra.mxu0 %v2751
  %2816 = vmatprep.subr.mxu0 %v2750
  %2817 = vmatpush1.msra.mxu0 %v2749
  %2818 = vmatprep.subr.mxu0 %v2748
  %2819 = vmatpush1.msra.mxu0 %v2747
  %2820 = vmatprep.subr.mxu0 %v2746
  %2821 = vmatpush1.msra.mxu0 %v2745
  %2822 = vmatprep.subr.mxu0 %v2744
  %2823 = vmatpush1.msra.mxu0 %v2743
  %2824 = vmatprep.subr.mxu0 %v2742
  %2825 = vmatpush1.msra.mxu0 %v2741
  %2826 = vmatprep.subr.mxu0 %v2740
  %2827 = vmatpush1.msra.mxu0 %v2739
  %2828 = vmatprep.subr.mxu0 %v2738
  %2829 = vmatpush1.msra.mxu0 %v2737
  %2830 = vmatprep.subr.mxu0 %v2736
  %2831 = vmatpush1.msra.mxu0 %v2735
  %2832 = vmatprep.subr.mxu0 %v2734
  %2833 = vmatpush1.msra.mxu0 %v2733
  %2834 = vmatprep.subr.mxu0 %v2732
  %2835 = vmatpush1.msra.mxu0 %v2731
  %2836 = vmatprep.subr.mxu0 %v2730
  %2837 = vmatpush1.msra.mxu0 %v2729
  %2838 = vmatprep.subr.mxu0 %v2728
  %2839 = vmatpush1.msra.mxu0 %v2727
  %2840 = vmatprep.subr.mxu0 %v2726
  %2841 = vmatpush1.msra.mxu0 %v2725
  %2842 = vmatprep.subr.mxu0 %v2788
  %2843 = vmatpush2.msra.mxu0 %v2787
  %2844 = vmatprep.subr.mxu0 %v2786
  %2845 = vmatpush2.msra.mxu0 %v2785
  %2846 = vmatprep.subr.mxu0 %v2784
  %2847 = vmatpush2.msra.mxu0 %v2783
  %2848 = vmatprep.subr.mxu0 %v2782
  %2849 = vmatpush2.msra.mxu0 %v2781
  %2850 = vmatprep.subr.mxu0 %v2780
  %2851 = vmatpush2.msra.mxu0 %v2779
  %2852 = vmatprep.subr.mxu0 %v2778
  %2853 = vmatpush2.msra.mxu0 %v2777
  %2854 = vmatprep.subr.mxu0 %v2776
  %2855 = vmatpush2.msra.mxu0 %v2775
  %2856 = vmatprep.subr.mxu0 %v2774
  %2857 = vmatpush2.msra.mxu0 %v2773
  %2858 = vmatprep.subr.mxu0 %v2772
  %2859 = vmatpush2.msra.mxu0 %v2771
  %2860 = vmatprep.subr.mxu0 %v2770
  %2861 = vmatpush2.msra.mxu0 %v2769
  %2862 = vmatprep.subr.mxu0 %v2768
  %2863 = vmatpush2.msra.mxu0 %v2767
  %2864 = vmatprep.subr.mxu0 %v2766
  %2865 = vmatpush2.msra.mxu0 %v2765
  %2866 = vmatprep.subr.mxu0 %v2764
  %2867 = vmatpush2.msra.mxu0 %v2763
  %2868 = vmatprep.subr.mxu0 %v2762
  %2869 = vmatpush2.msra.mxu0 %v2761
  %2870 = vmatprep.subr.mxu0 %v2760
  %2871 = vmatpush2.msra.mxu0 %v2759
  %2872 = vmatprep.subr.mxu0 %v2758
  %2873 = vmatpush2.msra.mxu0 %v2757
  %2874 = vmatprep.mubr.f32.mxu0 %v2630
  %2875 = vmatmul.mubr.f32.gmra.mxu0 %v2628
  %v2876 = vpop.f32.mrf.mxu0
  %v2877 = vadd.f32 0.0, %v2876
  %v2878 = vpop.f32.mrf.mxu0
  %v2879 = vadd.f32 0.0, %v2878
  %2880 = vmatprep.mubr.f32.mxu0 %v2636
  %2881 = vmatmul.mubr.f32.gmra.mxu0 %v2634
  %v2882 = vpop.f32.mrf.mxu0
  %v2883 = vadd.f32 0.0, %v2882
  %v2884 = vpop.f32.mrf.mxu0
  %v2885 = vadd.f32 0.0, %v2884
  %2886 = vmatprep.mubr.f32.mxu0 %v2642
  %2887 = vmatmul.mubr.f32.gmra.mxu0 %v2640
  %v2888 = vpop.f32.mrf.mxu0
  %v2889 = vadd.f32 0.0, %v2888
  %v2890 = vpop.f32.mrf.mxu0
  %v2891 = vadd.f32 0.0, %v2890
  %2892 = vdwg.mxu0
  %2893 = vmatprep.subr.mxu0 0.0
  %2894 = vmatpush1.msra.mxu0 0.0
  %2895 = vmatprep.subr.mxu0 0.0
  %2896 = vmatpush1.msra.mxu0 0.0
  %2897 = vmatprep.subr.mxu0 0.0
  %2898 = vmatpush1.msra.mxu0 0.0
  %2899 = vmatprep.subr.mxu0 0.0
  %2900 = vmatpush1.msra.mxu0 0.0
  %2901 = vmatprep.subr.mxu0 0.0
  %2902 = vmatpush1.msra.mxu0 0.0
  %2903 = vmatprep.subr.mxu0 0.0
  %2904 = vmatpush1.msra.mxu0 0.0
  %2905 = vmatprep.subr.mxu0 0.0
  %2906 = vmatpush1.msra.mxu0 0.0
  %2907 = vmatprep.subr.mxu0 0.0
  %2908 = vmatpush1.msra.mxu0 0.0
  %2909 = vmatprep.subr.mxu0 0.0
  %2910 = vmatpush1.msra.mxu0 0.0
  %2911 = vmatprep.subr.mxu0 0.0
  %2912 = vmatpush1.msra.mxu0 0.0
  %2913 = vmatprep.subr.mxu0 %v2800
  %2914 = vmatpush1.msra.mxu0 %v2799
  %2915 = vmatprep.subr.mxu0 %v2798
  %2916 = vmatpush1.msra.mxu0 %v2797
  %2917 = vmatprep.subr.mxu0 %v2796
  %2918 = vmatpush1.msra.mxu0 %v2795
  %2919 = vmatprep.subr.mxu0 %v2794
  %2920 = vmatpush1.msra.mxu0 %v2793
  %2921 = vmatprep.subr.mxu0 %v2792
  %2922 = vmatpush1.msra.mxu0 %v2791
  %2923 = vmatprep.subr.mxu0 %v2790
  %2924 = vmatpush1.msra.mxu0 %v2789
  %2925 = vmatprep.subr.mxu0 0.0
  %2926 = vmatpush2.msra.mxu0 0.0
  %2927 = vmatprep.subr.mxu0 0.0
  %2928 = vmatpush2.msra.mxu0 0.0
  %2929 = vmatprep.subr.mxu0 0.0
  %2930 = vmatpush2.msra.mxu0 0.0
  %2931 = vmatprep.subr.mxu0 0.0
  %2932 = vmatpush2.msra.mxu0 0.0
  %2933 = vmatprep.subr.mxu0 0.0
  %2934 = vmatpush2.msra.mxu0 0.0
  %2935 = vmatprep.subr.mxu0 0.0
  %2936 = vmatpush2.msra.mxu0 0.0
  %2937 = vmatprep.subr.mxu0 0.0
  %2938 = vmatpush2.msra.mxu0 0.0
  %2939 = vmatprep.subr.mxu0 0.0
  %2940 = vmatpush2.msra.mxu0 0.0
  %2941 = vmatprep.subr.mxu0 0.0
  %2942 = vmatpush2.msra.mxu0 0.0
  %2943 = vmatprep.subr.mxu0 0.0
  %2944 = vmatpush2.msra.mxu0 0.0
  %2945 = vmatprep.subr.mxu0 0.0
  %2946 = vmatpush2.msra.mxu0 0.0
  %2947 = vmatprep.subr.mxu0 0.0
  %2948 = vmatpush2.msra.mxu0 0.0
  %2949 = vmatprep.subr.mxu0 0.0
  %2950 = vmatpush2.msra.mxu0 0.0
  %2951 = vmatprep.subr.mxu0 0.0
  %2952 = vmatpush2.msra.mxu0 0.0
  %2953 = vmatprep.subr.mxu0 0.0
  %2954 = vmatpush2.msra.mxu0 0.0
  %2955 = vmatprep.subr.mxu0 0.0
  %2956 = vmatpush2.msra.mxu0 0.0
  %2957 = vmatprep.mubr.f32.mxu0 0.0
  %2958 = vmatmul.mubr.f32.gmra.mxu0 %v2802
  %v2959 = vpop.f32.mrf.mxu0
  %v2960 = vadd.f32 %v2877, %v2959
  %v2961 = vpop.f32.mrf.mxu0
  %v2962 = vadd.f32 %v2879, %v2961
  %2963 = vmatprep.mubr.f32.mxu0 0.0
  %2964 = vmatmul.mubr.f32.gmra.mxu0 %v2805
  %v2965 = vpop.f32.mrf.mxu0
  %v2966 = vadd.f32 %v2883, %v2965
  %v2967 = vpop.f32.mrf.mxu0
  %v2968 = vadd.f32 %v2885, %v2967
  %2969 = vmatprep.mubr.f32.mxu0 0.0
  %2970 = vmatmul.mubr.f32.gmra.mxu0 %v2808
  %v2971 = vpop.f32.mrf.mxu0
  %v2972 = vadd.f32 %v2889, %v2971
  %v2973 = vpop.f32.mrf.mxu0
  %v2974 = vadd.f32 %v2891, %v2973
  %2975 = vdwg.mxu0
  %v2976 = vadd.f32 %v2532, %v2960
  %v2977 = vadd.f32 %v2534, %v2962
  %v2978 = vadd.f32 %v2538, %v2966
  %v2979 = vadd.f32 %v2540, %v2968
  %v2980 = vadd.f32 %v2544, %v2972
  %v2981 = vadd.f32 %v2546, %v2974
  %v2982 = vld [vmem:[%s9] sm:$0x3]
  %v2984 = vlaneseq
  %v2985 = vshrl.u32 %v2984, 7
  %v2986 = vsub.s32 0, %v2985
  %v2987 = vrot.slane %v2982, %v2986
  %v2988 = vlaneseq
  %v2989 = vshrl.u32 %v2988, 7
  %v2990 = vsub.s32 1, %v2989
  %v2991 = vrot.slane %v2982, %v2990
  %v2994 = vadd.f32 %v2976, %v2987
  %v2995 = vadd.f32 %v2977, %v2991
  %v2996 = vadd.f32 %v2978, %v2987
  %v2997 = vadd.f32 %v2979, %v2991
  %v2998 = vadd.f32 %v2980, %v2987
  %v2999 = vadd.f32 %v2981, %v2991
  %v3000 = vld [vmem:[%s10] sm:$0xff]
  %v3001 = vld [vmem:[%s10 + $0x8] sm:$0xf]
  %vm3002 = vcmask 162816
  %v3004 = vsel %vm3002, %v3000, 0
  %v3007 = vsel %vm3002, %v3001, 0
  %vm3009 = vcmask 1043456
  %v3011 = vsel %vm3009, %v2998, 0
  %v3014 = vsel %vm3009, %v2999, 0
  %3016 = vmatprep.subr.mxu0 0.0
  %3017 = vmatpush1.msra.mxu0 0.0
  %3018 = vmatprep.subr.mxu0 0.0
  %3019 = vmatpush1.msra.mxu0 0.0
  %3020 = vmatprep.subr.mxu0 0.0
  %3021 = vmatpush1.msra.mxu0 0.0
  %3022 = vmatprep.subr.mxu0 0.0
  %3023 = vmatpush1.msra.mxu0 0.0
  %3024 = vmatprep.subr.mxu0 0.0
  %3025 = vmatpush1.msra.mxu0 0.0
  %3026 = vmatprep.subr.mxu0 0.0
  %3027 = vmatpush1.msra.mxu0 0.0
  %3028 = vmatprep.subr.mxu0 0.0
  %3029 = vmatpush1.msra.mxu0 0.0
  %3030 = vmatprep.subr.mxu0 0.0
  %3031 = vmatpush1.msra.mxu0 0.0
  %3032 = vmatprep.subr.mxu0 0.0
  %3033 = vmatpush1.msra.mxu0 0.0
  %3034 = vmatprep.subr.mxu0 0.0
  %3035 = vmatpush1.msra.mxu0 0.0
  %3036 = vmatprep.subr.mxu0 0.0
  %3037 = vmatpush1.msra.mxu0 0.0
  %3038 = vmatprep.subr.mxu0 0.0
  %3039 = vmatpush1.msra.mxu0 0.0
  %3040 = vmatprep.subr.mxu0 0.0
  %3041 = vmatpush1.msra.mxu0 0.0
  %3042 = vmatprep.subr.mxu0 %v3014
  %3043 = vmatpush1.msra.mxu0 %v3011
  %3044 = vmatprep.subr.mxu0 %v2997
  %3045 = vmatpush1.msra.mxu0 %v2996
  %3046 = vmatprep.subr.mxu0 %v2995
  %3047 = vmatpush1.msra.mxu0 %v2994
  %3048 = vmatprep.subr.mxu0 0.0
  %3049 = vmatpush2.msra.mxu0 0.0
  %3050 = vmatprep.subr.mxu0 0.0
  %3051 = vmatpush2.msra.mxu0 0.0
  %3052 = vmatprep.subr.mxu0 0.0
  %3053 = vmatpush2.msra.mxu0 0.0
  %3054 = vmatprep.subr.mxu0 0.0
  %3055 = vmatpush2.msra.mxu0 0.0
  %3056 = vmatprep.subr.mxu0 0.0
  %3057 = vmatpush2.msra.mxu0 0.0
  %3058 = vmatprep.subr.mxu0 0.0
  %3059 = vmatpush2.msra.mxu0 0.0
  %3060 = vmatprep.subr.mxu0 0.0
  %3061 = vmatpush2.msra.mxu0 0.0
  %3062 = vmatprep.subr.mxu0 0.0
  %3063 = vmatpush2.msra.mxu0 0.0
  %3064 = vmatprep.subr.mxu0 0.0
  %3065 = vmatpush2.msra.mxu0 0.0
  %3066 = vmatprep.subr.mxu0 0.0
  %3067 = vmatpush2.msra.mxu0 0.0
  %3068 = vmatprep.subr.mxu0 0.0
  %3069 = vmatpush2.msra.mxu0 0.0
  %3070 = vmatprep.subr.mxu0 0.0
  %3071 = vmatpush2.msra.mxu0 0.0
  %3072 = vmatprep.subr.mxu0 0.0
  %3073 = vmatpush2.msra.mxu0 0.0
  %3074 = vmatprep.subr.mxu0 0.0
  %3075 = vmatpush2.msra.mxu0 0.0
  %3076 = vmatprep.subr.mxu0 0.0
  %3077 = vmatpush2.msra.mxu0 0.0
  %3078 = vmatprep.subr.mxu0 0.0
  %3079 = vmatpush2.msra.mxu0 0.0
  %3080 = vmatprep.mubr.f32.mxu0 0.0
  %3081 = vmatmul.mubr.f32.gmra.mxu0 %v3004
  %v3082 = vpop.f32.mrf.mxu0
  %v3083 = vadd.f32 0.0, %v3082
  %v3084 = vpop.f32.mrf.mxu0
  %v3085 = vadd.f32 0.0, %v3084
  %3086 = vmatprep.mubr.f32.mxu0 0.0
  %3087 = vmatmul.mubr.f32.gmra.mxu0 %v3007
  %v3088 = vpop.f32.mrf.mxu0
  %v3089 = vadd.f32 0.0, %v3088
  %v3090 = vpop.f32.mrf.mxu0
  %v3091 = vadd.f32 0.0, %v3090
  %3092 = vdwg.mxu0
  %v3093 = vld [vmem:[%s11] sm:$0xff]
  %v3094 = vld [vmem:[%s11 + $0x8] sm:$0xff]
  %v3095 = vld [vmem:[%s11 + $0x10] sm:$0xff]
  %v3096 = vld [vmem:[%s11 + $0x18] sm:$0xff]
  %v3097 = vld [vmem:[%s11 + $0x20] sm:$0xff]
  %v3098 = vld [vmem:[%s11 + $0x28] sm:$0xff]
  %v3099 = vld [vmem:[%s11 + $0x30] sm:$0xff]
  %v3100 = vld [vmem:[%s11 + $0x38] sm:$0xff]
  %v3101 = vld [vmem:[%s11 + $0x40] sm:$0xff]
  %v3102 = vld [vmem:[%s11 + $0x48] sm:$0xff]
  %v3103 = vld [vmem:[%s11 + $0x50] sm:$0xff]
  %v3104 = vld [vmem:[%s11 + $0x58] sm:$0xff]
  %v3105 = vld [vmem:[%s11 + $0x60] sm:$0xff]
  %v3106 = vld [vmem:[%s11 + $0x68] sm:$0xff]
  %v3107 = vld [vmem:[%s11 + $0x70] sm:$0xff]
  %v3108 = vld [vmem:[%s11 + $0x78] sm:$0xff]
  %v3109 = vld [vmem:[%s11 + $0x80] sm:$0xff]
  %v3110 = vld [vmem:[%s11 + $0x88] sm:$0xff]
  %v3111 = vld [vmem:[%s11 + $0x90] sm:$0xff]
  %v3112 = vld [vmem:[%s11 + $0x98] sm:$0xff]
  %v3113 = vld [vmem:[%s12] sm:$0x1]
  %v3115 = vlaneseq
  %v3116 = vshrl.u32 %v3115, 7
  %v3117 = vsub.s32 0, %v3116
  %v3118 = vrot.slane %v3113, %v3117
  %v3121 = vsel %vm1111, %v3085, 0
  %v3124 = vsel %vm1111, %v3091, 0
  %3126 = vmatprep.subr.mxu0 0.0
  %3127 = vmatpush1.msra.mxu0 %v3108
  %3128 = vmatprep.subr.mxu0 0.0
  %3129 = vmatpush1.msra.mxu0 %v3107
  %3130 = vmatprep.subr.mxu0 0.0
  %3131 = vmatpush1.msra.mxu0 %v3106
  %3132 = vmatprep.subr.mxu0 0.0
  %3133 = vmatpush1.msra.mxu0 %v3105
  %3134 = vmatprep.subr.mxu0 0.0
  %3135 = vmatpush1.msra.mxu0 %v3104
  %3136 = vmatprep.subr.mxu0 0.0
  %3137 = vmatpush1.msra.mxu0 %v3103
  %3138 = vmatprep.subr.mxu0 0.0
  %3139 = vmatpush1.msra.mxu0 %v3102
  %3140 = vmatprep.subr.mxu0 0.0
  %3141 = vmatpush1.msra.mxu0 %v3101
  %3142 = vmatprep.subr.mxu0 0.0
  %3143 = vmatpush1.msra.mxu0 %v3100
  %3144 = vmatprep.subr.mxu0 0.0
  %3145 = vmatpush1.msra.mxu0 %v3099
  %3146 = vmatprep.subr.mxu0 0.0
  %3147 = vmatpush1.msra.mxu0 %v3098
  %3148 = vmatprep.subr.mxu0 0.0
  %3149 = vmatpush1.msra.mxu0 %v3097
  %3150 = vmatprep.subr.mxu0 0.0
  %3151 = vmatpush1.msra.mxu0 %v3096
  %3152 = vmatprep.subr.mxu0 0.0
  %3153 = vmatpush1.msra.mxu0 %v3095
  %3154 = vmatprep.subr.mxu0 0.0
  %3155 = vmatpush1.msra.mxu0 %v3094
  %3156 = vmatprep.subr.mxu0 0.0
  %3157 = vmatpush1.msra.mxu0 %v3093
  %3158 = vmatprep.subr.mxu0 0.0
  %3159 = vmatpush2.msra.mxu0 0.0
  %3160 = vmatprep.subr.mxu0 0.0
  %3161 = vmatpush2.msra.mxu0 0.0
  %3162 = vmatprep.subr.mxu0 0.0
  %3163 = vmatpush2.msra.mxu0 0.0
  %3164 = vmatprep.subr.mxu0 0.0
  %3165 = vmatpush2.msra.mxu0 0.0
  %3166 = vmatprep.subr.mxu0 0.0
  %3167 = vmatpush2.msra.mxu0 0.0
  %3168 = vmatprep.subr.mxu0 0.0
  %3169 = vmatpush2.msra.mxu0 0.0
  %3170 = vmatprep.subr.mxu0 0.0
  %3171 = vmatpush2.msra.mxu0 0.0
  %3172 = vmatprep.subr.mxu0 0.0
  %3173 = vmatpush2.msra.mxu0 0.0
  %3174 = vmatprep.subr.mxu0 0.0
  %3175 = vmatpush2.msra.mxu0 0.0
  %3176 = vmatprep.subr.mxu0 0.0
  %3177 = vmatpush2.msra.mxu0 0.0
  %3178 = vmatprep.subr.mxu0 0.0
  %3179 = vmatpush2.msra.mxu0 0.0
  %3180 = vmatprep.subr.mxu0 0.0
  %3181 = vmatpush2.msra.mxu0 0.0
  %3182 = vmatprep.subr.mxu0 0.0
  %3183 = vmatpush2.msra.mxu0 %v3112
  %3184 = vmatprep.subr.mxu0 0.0
  %3185 = vmatpush2.msra.mxu0 %v3111
  %3186 = vmatprep.subr.mxu0 0.0
  %3187 = vmatpush2.msra.mxu0 %v3110
  %3188 = vmatprep.subr.mxu0 0.0
  %3189 = vmatpush2.msra.mxu0 %v3109
  %3190 = vmatprep.mubr.f32.mxu0 %v3121
  %3191 = vmatmul.mubr.f32.gmra.mxu0 %v3083
  %v3192 = vpop.f32.mrf.mxu0
  %v3193 = vadd.f32 %v3118, %v3192
  %v3194 = vpop.f32.mrf.mxu0
  %3195 = vmatprep.mubr.f32.mxu0 %v3124
  %3196 = vmatmul.mubr.f32.gmra.mxu0 %v3089
  %v3197 = vpop.f32.mrf.mxu0
  %v3198 = vadd.f32 %v3118, %v3197
  %v3199 = vpop.f32.mrf.mxu0
  %3200 = vdwg.mxu0
  %v3201 = vld [vmem:[%s13] sm:$0xff]
  %v3202 = vld [vmem:[%s13 + $0x8] sm:$0xf]
  %v3204 = vsel %vm3002, %v3201, 0
  %v3207 = vsel %vm3002, %v3202, 0
  %3209 = vmatprep.subr.mxu0 0.0
  %3210 = vmatpush1.msra.mxu0 0.0
  %3211 = vmatprep.subr.mxu0 0.0
  %3212 = vmatpush1.msra.mxu0 0.0
  %3213 = vmatprep.subr.mxu0 0.0
  %3214 = vmatpush1.msra.mxu0 0.0
  %3215 = vmatprep.subr.mxu0 0.0
  %3216 = vmatpush1.msra.mxu0 0.0
  %3217 = vmatprep.subr.mxu0 0.0
  %3218 = vmatpush1.msra.mxu0 0.0
  %3219 = vmatprep.subr.mxu0 0.0
  %3220 = vmatpush1.msra.mxu0 0.0
  %3221 = vmatprep.subr.mxu0 0.0
  %3222 = vmatpush1.msra.mxu0 0.0
  %3223 = vmatprep.subr.mxu0 0.0
  %3224 = vmatpush1.msra.mxu0 0.0
  %3225 = vmatprep.subr.mxu0 0.0
  %3226 = vmatpush1.msra.mxu0 0.0
  %3227 = vmatprep.subr.mxu0 0.0
  %3228 = vmatpush1.msra.mxu0 0.0
  %3229 = vmatprep.subr.mxu0 0.0
  %3230 = vmatpush1.msra.mxu0 0.0
  %3231 = vmatprep.subr.mxu0 0.0
  %3232 = vmatpush1.msra.mxu0 0.0
  %3233 = vmatprep.subr.mxu0 0.0
  %3234 = vmatpush1.msra.mxu0 0.0
  %3235 = vmatprep.subr.mxu0 %v3014
  %3236 = vmatpush1.msra.mxu0 %v3011
  %3237 = vmatprep.subr.mxu0 %v2997
  %3238 = vmatpush1.msra.mxu0 %v2996
  %3239 = vmatprep.subr.mxu0 %v2995
  %3240 = vmatpush1.msra.mxu0 %v2994
  %3241 = vmatprep.subr.mxu0 0.0
  %3242 = vmatpush2.msra.mxu0 0.0
  %3243 = vmatprep.subr.mxu0 0.0
  %3244 = vmatpush2.msra.mxu0 0.0
  %3245 = vmatprep.subr.mxu0 0.0
  %3246 = vmatpush2.msra.mxu0 0.0
  %3247 = vmatprep.subr.mxu0 0.0
  %3248 = vmatpush2.msra.mxu0 0.0
  %3249 = vmatprep.subr.mxu0 0.0
  %3250 = vmatpush2.msra.mxu0 0.0
  %3251 = vmatprep.subr.mxu0 0.0
  %3252 = vmatpush2.msra.mxu0 0.0
  %3253 = vmatprep.subr.mxu0 0.0
  %3254 = vmatpush2.msra.mxu0 0.0
  %3255 = vmatprep.subr.mxu0 0.0
  %3256 = vmatpush2.msra.mxu0 0.0
  %3257 = vmatprep.subr.mxu0 0.0
  %3258 = vmatpush2.msra.mxu0 0.0
  %3259 = vmatprep.subr.mxu0 0.0
  %3260 = vmatpush2.msra.mxu0 0.0
  %3261 = vmatprep.subr.mxu0 0.0
  %3262 = vmatpush2.msra.mxu0 0.0
  %3263 = vmatprep.subr.mxu0 0.0
  %3264 = vmatpush2.msra.mxu0 0.0
  %3265 = vmatprep.subr.mxu0 0.0
  %3266 = vmatpush2.msra.mxu0 0.0
  %3267 = vmatprep.subr.mxu0 0.0
  %3268 = vmatpush2.msra.mxu0 0.0
  %3269 = vmatprep.subr.mxu0 0.0
  %3270 = vmatpush2.msra.mxu0 0.0
  %3271 = vmatprep.subr.mxu0 0.0
  %3272 = vmatpush2.msra.mxu0 0.0
  %3273 = vmatprep.mubr.f32.mxu0 0.0
  %3274 = vmatmul.mubr.f32.gmra.mxu0 %v3204
  %v3275 = vpop.f32.mrf.mxu0
  %v3276 = vadd.f32 0.0, %v3275
  %v3277 = vpop.f32.mrf.mxu0
  %v3278 = vadd.f32 0.0, %v3277
  %3279 = vmatprep.mubr.f32.mxu0 0.0
  %3280 = vmatmul.mubr.f32.gmra.mxu0 %v3207
  %v3281 = vpop.f32.mrf.mxu0
  %v3282 = vadd.f32 0.0, %v3281
  %v3283 = vpop.f32.mrf.mxu0
  %v3284 = vadd.f32 0.0, %v3283
  %3285 = vdwg.mxu0
  %v3286 = vld [vmem:[%s14] sm:$0xff]
  %v3287 = vld [vmem:[%s14 + $0x8] sm:$0xff]
  %v3288 = vld [vmem:[%s14 + $0x10] sm:$0xff]
  %v3289 = vld [vmem:[%s14 + $0x18] sm:$0xff]
  %v3290 = vld [vmem:[%s14 + $0x20] sm:$0xff]
  %v3291 = vld [vmem:[%s14 + $0x28] sm:$0xff]
  %v3292 = vld [vmem:[%s14 + $0x30] sm:$0xff]
  %v3293 = vld [vmem:[%s14 + $0x38] sm:$0xff]
  %v3294 = vld [vmem:[%s14 + $0x40] sm:$0xff]
  %v3295 = vld [vmem:[%s14 + $0x48] sm:$0xff]
  %v3296 = vld [vmem:[%s14 + $0x50] sm:$0xff]
  %v3297 = vld [vmem:[%s14 + $0x58] sm:$0xff]
  %v3298 = vld [vmem:[%s14 + $0x60] sm:$0xff]
  %v3299 = vld [vmem:[%s14 + $0x68] sm:$0xff]
  %v3300 = vld [vmem:[%s14 + $0x70] sm:$0xff]
  %v3301 = vld [vmem:[%s14 + $0x78] sm:$0xff]
  %v3302 = vld [vmem:[%s14 + $0x80] sm:$0xff]
  %v3303 = vld [vmem:[%s14 + $0x88] sm:$0xff]
  %v3304 = vld [vmem:[%s14 + $0x90] sm:$0xff]
  %v3305 = vld [vmem:[%s14 + $0x98] sm:$0xff]
  %s3306 = scalar_lea.vmem %s13, 16
  %v3307 = vld [vmem:[%s3306] sm:$0xff]
  %v3308 = vld [vmem:[%s3306 + $0x8] sm:$0xf]
  %v3310 = vsel %vm3002, %v3307, 0
  %v3313 = vsel %vm3002, %v3308, 0
  %3315 = vmatprep.subr.mxu0 0.0
  %3316 = vmatpush1.msra.mxu0 0.0
  %3317 = vmatprep.subr.mxu0 0.0
  %3318 = vmatpush1.msra.mxu0 0.0
  %3319 = vmatprep.subr.mxu0 0.0
  %3320 = vmatpush1.msra.mxu0 0.0
  %3321 = vmatprep.subr.mxu0 0.0
  %3322 = vmatpush1.msra.mxu0 0.0
  %3323 = vmatprep.subr.mxu0 0.0
  %3324 = vmatpush1.msra.mxu0 0.0
  %3325 = vmatprep.subr.mxu0 0.0
  %3326 = vmatpush1.msra.mxu0 0.0
  %3327 = vmatprep.subr.mxu0 0.0
  %3328 = vmatpush1.msra.mxu0 0.0
  %3329 = vmatprep.subr.mxu0 0.0
  %3330 = vmatpush1.msra.mxu0 0.0
  %3331 = vmatprep.subr.mxu0 0.0
  %3332 = vmatpush1.msra.mxu0 0.0
  %3333 = vmatprep.subr.mxu0 0.0
  %3334 = vmatpush1.msra.mxu0 0.0
  %3335 = vmatprep.subr.mxu0 0.0
  %3336 = vmatpush1.msra.mxu0 0.0
  %3337 = vmatprep.subr.mxu0 0.0
  %3338 = vmatpush1.msra.mxu0 0.0
  %3339 = vmatprep.subr.mxu0 0.0
  %3340 = vmatpush1.msra.mxu0 0.0
  %3341 = vmatprep.subr.mxu0 %v3014
  %3342 = vmatpush1.msra.mxu0 %v3011
  %3343 = vmatprep.subr.mxu0 %v2997
  %3344 = vmatpush1.msra.mxu0 %v2996
  %3345 = vmatprep.subr.mxu0 %v2995
  %3346 = vmatpush1.msra.mxu0 %v2994
  %3347 = vmatprep.subr.mxu0 0.0
  %3348 = vmatpush2.msra.mxu0 0.0
  %3349 = vmatprep.subr.mxu0 0.0
  %3350 = vmatpush2.msra.mxu0 0.0
  %3351 = vmatprep.subr.mxu0 0.0
  %3352 = vmatpush2.msra.mxu0 0.0
  %3353 = vmatprep.subr.mxu0 0.0
  %3354 = vmatpush2.msra.mxu0 0.0
  %3355 = vmatprep.subr.mxu0 0.0
  %3356 = vmatpush2.msra.mxu0 0.0
  %3357 = vmatprep.subr.mxu0 0.0
  %3358 = vmatpush2.msra.mxu0 0.0
  %3359 = vmatprep.subr.mxu0 0.0
  %3360 = vmatpush2.msra.mxu0 0.0
  %3361 = vmatprep.subr.mxu0 0.0
  %3362 = vmatpush2.msra.mxu0 0.0
  %3363 = vmatprep.subr.mxu0 0.0
  %3364 = vmatpush2.msra.mxu0 0.0
  %3365 = vmatprep.subr.mxu0 0.0
  %3366 = vmatpush2.msra.mxu0 0.0
  %3367 = vmatprep.subr.mxu0 0.0
  %3368 = vmatpush2.msra.mxu0 0.0
  %3369 = vmatprep.subr.mxu0 0.0
  %3370 = vmatpush2.msra.mxu0 0.0
  %3371 = vmatprep.subr.mxu0 0.0
  %3372 = vmatpush2.msra.mxu0 0.0
  %3373 = vmatprep.subr.mxu0 0.0
  %3374 = vmatpush2.msra.mxu0 0.0
  %3375 = vmatprep.subr.mxu0 0.0
  %3376 = vmatpush2.msra.mxu0 0.0
  %3377 = vmatprep.subr.mxu0 0.0
  %3378 = vmatpush2.msra.mxu0 0.0
  %3379 = vmatprep.mubr.f32.mxu0 0.0
  %3380 = vmatmul.mubr.f32.gmra.mxu0 %v3310
  %v3381 = vpop.f32.mrf.mxu0
  %v3382 = vadd.f32 0.0, %v3381
  %v3383 = vpop.f32.mrf.mxu0
  %v3384 = vadd.f32 0.0, %v3383
  %3385 = vmatprep.mubr.f32.mxu0 0.0
  %3386 = vmatmul.mubr.f32.gmra.mxu0 %v3313
  %v3387 = vpop.f32.mrf.mxu0
  %v3388 = vadd.f32 0.0, %v3387
  %v3389 = vpop.f32.mrf.mxu0
  %v3390 = vadd.f32 0.0, %v3389
  %3391 = vdwg.mxu0
  %s3392 = scalar_lea.vmem %s14, 160
  %v3393 = vld [vmem:[%s3392] sm:$0xff]
  %v3394 = vld [vmem:[%s3392 + $0x8] sm:$0xff]
  %v3395 = vld [vmem:[%s3392 + $0x10] sm:$0xff]
  %v3396 = vld [vmem:[%s3392 + $0x18] sm:$0xff]
  %v3397 = vld [vmem:[%s3392 + $0x20] sm:$0xff]
  %v3398 = vld [vmem:[%s3392 + $0x28] sm:$0xff]
  %v3399 = vld [vmem:[%s3392 + $0x30] sm:$0xff]
  %v3400 = vld [vmem:[%s3392 + $0x38] sm:$0xff]
  %v3401 = vld [vmem:[%s3392 + $0x40] sm:$0xff]
  %v3402 = vld [vmem:[%s3392 + $0x48] sm:$0xff]
  %v3403 = vld [vmem:[%s3392 + $0x50] sm:$0xff]
  %v3404 = vld [vmem:[%s3392 + $0x58] sm:$0xff]
  %v3405 = vld [vmem:[%s3392 + $0x60] sm:$0xff]
  %v3406 = vld [vmem:[%s3392 + $0x68] sm:$0xff]
  %v3407 = vld [vmem:[%s3392 + $0x70] sm:$0xff]
  %v3408 = vld [vmem:[%s3392 + $0x78] sm:$0xff]
  %v3409 = vld [vmem:[%s3392 + $0x80] sm:$0xff]
  %v3410 = vld [vmem:[%s3392 + $0x88] sm:$0xff]
  %v3411 = vld [vmem:[%s3392 + $0x90] sm:$0xff]
  %v3412 = vld [vmem:[%s3392 + $0x98] sm:$0xff]
  %v3414 = vsel %vm1111, %v3384, 0
  %v3417 = vsel %vm1111, %v3390, 0
  %3419 = vmatprep.subr.mxu0 0.0
  %3420 = vmatpush1.msra.mxu0 %v3408
  %3421 = vmatprep.subr.mxu0 0.0
  %3422 = vmatpush1.msra.mxu0 %v3407
  %3423 = vmatprep.subr.mxu0 0.0
  %3424 = vmatpush1.msra.mxu0 %v3406
  %3425 = vmatprep.subr.mxu0 0.0
  %3426 = vmatpush1.msra.mxu0 %v3405
  %3427 = vmatprep.subr.mxu0 0.0
  %3428 = vmatpush1.msra.mxu0 %v3404
  %3429 = vmatprep.subr.mxu0 0.0
  %3430 = vmatpush1.msra.mxu0 %v3403
  %3431 = vmatprep.subr.mxu0 0.0
  %3432 = vmatpush1.msra.mxu0 %v3402
  %3433 = vmatprep.subr.mxu0 0.0
  %3434 = vmatpush1.msra.mxu0 %v3401
  %3435 = vmatprep.subr.mxu0 0.0
  %3436 = vmatpush1.msra.mxu0 %v3400
  %3437 = vmatprep.subr.mxu0 0.0
  %3438 = vmatpush1.msra.mxu0 %v3399
  %3439 = vmatprep.subr.mxu0 0.0
  %3440 = vmatpush1.msra.mxu0 %v3398
  %3441 = vmatprep.subr.mxu0 0.0
  %3442 = vmatpush1.msra.mxu0 %v3397
  %3443 = vmatprep.subr.mxu0 0.0
  %3444 = vmatpush1.msra.mxu0 %v3396
  %3445 = vmatprep.subr.mxu0 0.0
  %3446 = vmatpush1.msra.mxu0 %v3395
  %3447 = vmatprep.subr.mxu0 0.0
  %3448 = vmatpush1.msra.mxu0 %v3394
  %3449 = vmatprep.subr.mxu0 0.0
  %3450 = vmatpush1.msra.mxu0 %v3393
  %3451 = vmatprep.subr.mxu0 0.0
  %3452 = vmatpush2.msra.mxu0 0.0
  %3453 = vmatprep.subr.mxu0 0.0
  %3454 = vmatpush2.msra.mxu0 0.0
  %3455 = vmatprep.subr.mxu0 0.0
  %3456 = vmatpush2.msra.mxu0 0.0
  %3457 = vmatprep.subr.mxu0 0.0
  %3458 = vmatpush2.msra.mxu0 0.0
  %3459 = vmatprep.subr.mxu0 0.0
  %3460 = vmatpush2.msra.mxu0 0.0
  %3461 = vmatprep.subr.mxu0 0.0
  %3462 = vmatpush2.msra.mxu0 0.0
  %3463 = vmatprep.subr.mxu0 0.0
  %3464 = vmatpush2.msra.mxu0 0.0
  %3465 = vmatprep.subr.mxu0 0.0
  %3466 = vmatpush2.msra.mxu0 0.0
  %3467 = vmatprep.subr.mxu0 0.0
  %3468 = vmatpush2.msra.mxu0 0.0
  %3469 = vmatprep.subr.mxu0 0.0
  %3470 = vmatpush2.msra.mxu0 0.0
  %3471 = vmatprep.subr.mxu0 0.0
  %3472 = vmatpush2.msra.mxu0 0.0
  %3473 = vmatprep.subr.mxu0 0.0
  %3474 = vmatpush2.msra.mxu0 0.0
  %3475 = vmatprep.subr.mxu0 0.0
  %3476 = vmatpush2.msra.mxu0 %v3412
  %3477 = vmatprep.subr.mxu0 0.0
  %3478 = vmatpush2.msra.mxu0 %v3411
  %3479 = vmatprep.subr.mxu0 0.0
  %3480 = vmatpush2.msra.mxu0 %v3410
  %3481 = vmatprep.subr.mxu0 0.0
  %3482 = vmatpush2.msra.mxu0 %v3409
  %3483 = vmatprep.mubr.f32.mxu0 %v3414
  %3484 = vmatmul.mubr.f32.gmra.mxu0 %v3382
  %v3485 = vpop.f32.mrf.mxu0
  %v3486 = vadd.f32 0.0, %v3485
  %v3487 = vpop.f32.mrf.mxu0
  %3488 = vmatprep.mubr.f32.mxu0 %v3417
  %3489 = vmatmul.mubr.f32.gmra.mxu0 %v3388
  %v3490 = vpop.f32.mrf.mxu0
  %v3491 = vadd.f32 0.0, %v3490
  %v3492 = vpop.f32.mrf.mxu0
  %3493 = vdwg.mxu0
  %v3495 = vsel %vm1111, %v3278, 0
  %v3498 = vsel %vm1111, %v3284, 0
  %3500 = vmatprep.subr.mxu0 0.0
  %3501 = vmatpush1.msra.mxu0 %v3301
  %3502 = vmatprep.subr.mxu0 0.0
  %3503 = vmatpush1.msra.mxu0 %v3300
  %3504 = vmatprep.subr.mxu0 0.0
  %3505 = vmatpush1.msra.mxu0 %v3299
  %3506 = vmatprep.subr.mxu0 0.0
  %3507 = vmatpush1.msra.mxu0 %v3298
  %3508 = vmatprep.subr.mxu0 0.0
  %3509 = vmatpush1.msra.mxu0 %v3297
  %3510 = vmatprep.subr.mxu0 0.0
  %3511 = vmatpush1.msra.mxu0 %v3296
  %3512 = vmatprep.subr.mxu0 0.0
  %3513 = vmatpush1.msra.mxu0 %v3295
  %3514 = vmatprep.subr.mxu0 0.0
  %3515 = vmatpush1.msra.mxu0 %v3294
  %3516 = vmatprep.subr.mxu0 0.0
  %3517 = vmatpush1.msra.mxu0 %v3293
  %3518 = vmatprep.subr.mxu0 0.0
  %3519 = vmatpush1.msra.mxu0 %v3292
  %3520 = vmatprep.subr.mxu0 0.0
  %3521 = vmatpush1.msra.mxu0 %v3291
  %3522 = vmatprep.subr.mxu0 0.0
  %3523 = vmatpush1.msra.mxu0 %v3290
  %3524 = vmatprep.subr.mxu0 0.0
  %3525 = vmatpush1.msra.mxu0 %v3289
  %3526 = vmatprep.subr.mxu0 0.0
  %3527 = vmatpush1.msra.mxu0 %v3288
  %3528 = vmatprep.subr.mxu0 0.0
  %3529 = vmatpush1.msra.mxu0 %v3287
  %3530 = vmatprep.subr.mxu0 0.0
  %3531 = vmatpush1.msra.mxu0 %v3286
  %3532 = vmatprep.subr.mxu0 0.0
  %3533 = vmatpush2.msra.mxu0 0.0
  %3534 = vmatprep.subr.mxu0 0.0
  %3535 = vmatpush2.msra.mxu0 0.0
  %3536 = vmatprep.subr.mxu0 0.0
  %3537 = vmatpush2.msra.mxu0 0.0
  %3538 = vmatprep.subr.mxu0 0.0
  %3539 = vmatpush2.msra.mxu0 0.0
  %3540 = vmatprep.subr.mxu0 0.0
  %3541 = vmatpush2.msra.mxu0 0.0
  %3542 = vmatprep.subr.mxu0 0.0
  %3543 = vmatpush2.msra.mxu0 0.0
  %3544 = vmatprep.subr.mxu0 0.0
  %3545 = vmatpush2.msra.mxu0 0.0
  %3546 = vmatprep.subr.mxu0 0.0
  %3547 = vmatpush2.msra.mxu0 0.0
  %3548 = vmatprep.subr.mxu0 0.0
  %3549 = vmatpush2.msra.mxu0 0.0
  %3550 = vmatprep.subr.mxu0 0.0
  %3551 = vmatpush2.msra.mxu0 0.0
  %3552 = vmatprep.subr.mxu0 0.0
  %3553 = vmatpush2.msra.mxu0 0.0
  %3554 = vmatprep.subr.mxu0 0.0
  %3555 = vmatpush2.msra.mxu0 0.0
  %3556 = vmatprep.subr.mxu0 0.0
  %3557 = vmatpush2.msra.mxu0 %v3305
  %3558 = vmatprep.subr.mxu0 0.0
  %3559 = vmatpush2.msra.mxu0 %v3304
  %3560 = vmatprep.subr.mxu0 0.0
  %3561 = vmatpush2.msra.mxu0 %v3303
  %3562 = vmatprep.subr.mxu0 0.0
  %3563 = vmatpush2.msra.mxu0 %v3302
  %3564 = vmatprep.mubr.f32.mxu0 %v3495
  %3565 = vmatmul.mubr.f32.gmra.mxu0 %v3276
  %v3566 = vpop.f32.mrf.mxu0
  %v3567 = vadd.f32 %v3486, %v3566
  %v3568 = vpop.f32.mrf.mxu0
  %3569 = vmatprep.mubr.f32.mxu0 %v3498
  %3570 = vmatmul.mubr.f32.gmra.mxu0 %v3282
  %v3571 = vpop.f32.mrf.mxu0
  %v3572 = vadd.f32 %v3491, %v3571
  %v3573 = vpop.f32.mrf.mxu0
  %3574 = vdwg.mxu0
  %v3575 = vld [vmem:[%s15] sm:$0x1]
  %v3577 = vlaneseq
  %v3578 = vshrl.u32 %v3577, 7
  %v3579 = vsub.s32 0, %v3578
  %v3580 = vrot.slane %v3575, %v3579
  %v3582 = vadd.f32 %v3567, %v3580
  %v3583 = vadd.f32 %v3572, %v3580
  %v3584 = vld [vmem:[%s16] sm:$0xff]
  %v3585 = vld [vmem:[%s16 + $0x8] sm:$0xf]
  %vm3586 = vcmask 97280
  %v3588 = vsel %vm3586, %v3584, 0
  %v3591 = vsel %vm3586, %v3585, 0
  %v3594 = vsel %vm3009, %v3198, 0
  %3596 = vmatprep.subr.mxu0 0.0
  %3597 = vmatpush1.msra.mxu0 0.0
  %3598 = vmatprep.subr.mxu0 0.0
  %3599 = vmatpush1.msra.mxu0 0.0
  %3600 = vmatprep.subr.mxu0 0.0
  %3601 = vmatpush1.msra.mxu0 0.0
  %3602 = vmatprep.subr.mxu0 0.0
  %3603 = vmatpush1.msra.mxu0 0.0
  %3604 = vmatprep.subr.mxu0 0.0
  %3605 = vmatpush1.msra.mxu0 0.0
  %3606 = vmatprep.subr.mxu0 0.0
  %3607 = vmatpush1.msra.mxu0 0.0
  %3608 = vmatprep.subr.mxu0 0.0
  %3609 = vmatpush1.msra.mxu0 0.0
  %3610 = vmatprep.subr.mxu0 0.0
  %3611 = vmatpush1.msra.mxu0 0.0
  %3612 = vmatprep.subr.mxu0 0.0
  %3613 = vmatpush1.msra.mxu0 0.0
  %3614 = vmatprep.subr.mxu0 0.0
  %3615 = vmatpush1.msra.mxu0 0.0
  %3616 = vmatprep.subr.mxu0 0.0
  %3617 = vmatpush1.msra.mxu0 0.0
  %3618 = vmatprep.subr.mxu0 0.0
  %3619 = vmatpush1.msra.mxu0 0.0
  %3620 = vmatprep.subr.mxu0 0.0
  %3621 = vmatpush1.msra.mxu0 0.0
  %3622 = vmatprep.subr.mxu0 0.0
  %3623 = vmatpush1.msra.mxu0 0.0
  %3624 = vmatprep.subr.mxu0 0.0
  %3625 = vmatpush1.msra.mxu0 %v3594
  %3626 = vmatprep.subr.mxu0 0.0
  %3627 = vmatpush1.msra.mxu0 %v3193
  %3628 = vmatprep.subr.mxu0 0.0
  %3629 = vmatpush2.msra.mxu0 0.0
  %3630 = vmatprep.subr.mxu0 0.0
  %3631 = vmatpush2.msra.mxu0 0.0
  %3632 = vmatprep.subr.mxu0 0.0
  %3633 = vmatpush2.msra.mxu0 0.0
  %3634 = vmatprep.subr.mxu0 0.0
  %3635 = vmatpush2.msra.mxu0 0.0
  %3636 = vmatprep.subr.mxu0 0.0
  %3637 = vmatpush2.msra.mxu0 0.0
  %3638 = vmatprep.subr.mxu0 0.0
  %3639 = vmatpush2.msra.mxu0 0.0
  %3640 = vmatprep.subr.mxu0 0.0
  %3641 = vmatpush2.msra.mxu0 0.0
  %3642 = vmatprep.subr.mxu0 0.0
  %3643 = vmatpush2.msra.mxu0 0.0
  %3644 = vmatprep.subr.mxu0 0.0
  %3645 = vmatpush2.msra.mxu0 0.0
  %3646 = vmatprep.subr.mxu0 0.0
  %3647 = vmatpush2.msra.mxu0 0.0
  %3648 = vmatprep.subr.mxu0 0.0
  %3649 = vmatpush2.msra.mxu0 0.0
  %3650 = vmatprep.subr.mxu0 0.0
  %3651 = vmatpush2.msra.mxu0 0.0
  %3652 = vmatprep.subr.mxu0 0.0
  %3653 = vmatpush2.msra.mxu0 0.0
  %3654 = vmatprep.subr.mxu0 0.0
  %3655 = vmatpush2.msra.mxu0 0.0
  %3656 = vmatprep.subr.mxu0 0.0
  %3657 = vmatpush2.msra.mxu0 0.0
  %3658 = vmatprep.subr.mxu0 0.0
  %3659 = vmatpush2.msra.mxu0 0.0
  %3660 = vmatprep.mubr.f32.mxu0 0.0
  %3661 = vmatmul.mubr.f32.gmra.mxu0 %v3588
  %v3662 = vpop.f32.mrf.mxu0
  %v3663 = vadd.f32 0.0, %v3662
  %v3664 = vpop.f32.mrf.mxu0
  %3665 = vmatprep.mubr.f32.mxu0 0.0
  %3666 = vmatmul.mubr.f32.gmra.mxu0 %v3591
  %v3667 = vpop.f32.mrf.mxu0
  %v3668 = vadd.f32 0.0, %v3667
  %v3669 = vpop.f32.mrf.mxu0
  %3670 = vdwg.mxu0
  %v3671 = vld [vmem:[%s17] sm:$0xff]
  %v3672 = vld [vmem:[%s17 + $0x8] sm:$0xff]
  %v3673 = vld [vmem:[%s17 + $0x10] sm:$0xff]
  %s3674 = scalar_lea.vmem %s16, 16
  %v3675 = vld [vmem:[%s3674] sm:$0xff]
  %v3676 = vld [vmem:[%s3674 + $0x8] sm:$0xf]
  %v3678 = vsel %vm3586, %v3675, 0
  %v3681 = vsel %vm3586, %v3676, 0
  %3683 = vmatprep.subr.mxu0 0.0
  %3684 = vmatpush1.msra.mxu0 0.0
  %3685 = vmatprep.subr.mxu0 0.0
  %3686 = vmatpush1.msra.mxu0 0.0
  %3687 = vmatprep.subr.mxu0 0.0
  %3688 = vmatpush1.msra.mxu0 0.0
  %3689 = vmatprep.subr.mxu0 0.0
  %3690 = vmatpush1.msra.mxu0 0.0
  %3691 = vmatprep.subr.mxu0 0.0
  %3692 = vmatpush1.msra.mxu0 0.0
  %3693 = vmatprep.subr.mxu0 0.0
  %3694 = vmatpush1.msra.mxu0 0.0
  %3695 = vmatprep.subr.mxu0 0.0
  %3696 = vmatpush1.msra.mxu0 0.0
  %3697 = vmatprep.subr.mxu0 0.0
  %3698 = vmatpush1.msra.mxu0 0.0
  %3699 = vmatprep.subr.mxu0 0.0
  %3700 = vmatpush1.msra.mxu0 0.0
  %3701 = vmatprep.subr.mxu0 0.0
  %3702 = vmatpush1.msra.mxu0 0.0
  %3703 = vmatprep.subr.mxu0 0.0
  %3704 = vmatpush1.msra.mxu0 0.0
  %3705 = vmatprep.subr.mxu0 0.0
  %3706 = vmatpush1.msra.mxu0 0.0
  %3707 = vmatprep.subr.mxu0 0.0
  %3708 = vmatpush1.msra.mxu0 0.0
  %3709 = vmatprep.subr.mxu0 0.0
  %3710 = vmatpush1.msra.mxu0 0.0
  %3711 = vmatprep.subr.mxu0 0.0
  %3712 = vmatpush1.msra.mxu0 %v3594
  %3713 = vmatprep.subr.mxu0 0.0
  %3714 = vmatpush1.msra.mxu0 %v3193
  %3715 = vmatprep.subr.mxu0 0.0
  %3716 = vmatpush2.msra.mxu0 0.0
  %3717 = vmatprep.subr.mxu0 0.0
  %3718 = vmatpush2.msra.mxu0 0.0
  %3719 = vmatprep.subr.mxu0 0.0
  %3720 = vmatpush2.msra.mxu0 0.0
  %3721 = vmatprep.subr.mxu0 0.0
  %3722 = vmatpush2.msra.mxu0 0.0
  %3723 = vmatprep.subr.mxu0 0.0
  %3724 = vmatpush2.msra.mxu0 0.0
  %3725 = vmatprep.subr.mxu0 0.0
  %3726 = vmatpush2.msra.mxu0 0.0
  %3727 = vmatprep.subr.mxu0 0.0
  %3728 = vmatpush2.msra.mxu0 0.0
  %3729 = vmatprep.subr.mxu0 0.0
  %3730 = vmatpush2.msra.mxu0 0.0
  %3731 = vmatprep.subr.mxu0 0.0
  %3732 = vmatpush2.msra.mxu0 0.0
  %3733 = vmatprep.subr.mxu0 0.0
  %3734 = vmatpush2.msra.mxu0 0.0
  %3735 = vmatprep.subr.mxu0 0.0
  %3736 = vmatpush2.msra.mxu0 0.0
  %3737 = vmatprep.subr.mxu0 0.0
  %3738 = vmatpush2.msra.mxu0 0.0
  %3739 = vmatprep.subr.mxu0 0.0
  %3740 = vmatpush2.msra.mxu0 0.0
  %3741 = vmatprep.subr.mxu0 0.0
  %3742 = vmatpush2.msra.mxu0 0.0
  %3743 = vmatprep.subr.mxu0 0.0
  %3744 = vmatpush2.msra.mxu0 0.0
  %3745 = vmatprep.subr.mxu0 0.0
  %3746 = vmatpush2.msra.mxu0 0.0
  %3747 = vmatprep.mubr.f32.mxu0 0.0
  %3748 = vmatmul.mubr.f32.gmra.mxu0 %v3678
  %v3749 = vpop.f32.mrf.mxu0
  %v3750 = vadd.f32 0.0, %v3749
  %v3751 = vpop.f32.mrf.mxu0
  %3752 = vmatprep.mubr.f32.mxu0 0.0
  %3753 = vmatmul.mubr.f32.gmra.mxu0 %v3681
  %v3754 = vpop.f32.mrf.mxu0
  %v3755 = vadd.f32 0.0, %v3754
  %v3756 = vpop.f32.mrf.mxu0
  %3757 = vdwg.mxu0
  %s3758 = scalar_lea.vmem %s17, 24
  %v3759 = vld [vmem:[%s3758] sm:$0xff]
  %v3760 = vld [vmem:[%s3758 + $0x8] sm:$0xff]
  %v3761 = vld [vmem:[%s3758 + $0x10] sm:$0xff]
  %vm3762 = vcmask 195584
  %v3764 = vsel %vm3762, %v3750, 0
  %v3767 = vsel %vm3762, %v3755, 0
  %3769 = vmatprep.subr.mxu0 0.0
  %3770 = vmatpush1.msra.mxu0 0.0
  %3771 = vmatprep.subr.mxu0 0.0
  %3772 = vmatpush1.msra.mxu0 0.0
  %3773 = vmatprep.subr.mxu0 0.0
  %3774 = vmatpush1.msra.mxu0 0.0
  %3775 = vmatprep.subr.mxu0 0.0
  %3776 = vmatpush1.msra.mxu0 0.0
  %3777 = vmatprep.subr.mxu0 0.0
  %3778 = vmatpush1.msra.mxu0 0.0
  %3779 = vmatprep.subr.mxu0 0.0
  %3780 = vmatpush1.msra.mxu0 0.0
  %3781 = vmatprep.subr.mxu0 0.0
  %3782 = vmatpush1.msra.mxu0 0.0
  %3783 = vmatprep.subr.mxu0 0.0
  %3784 = vmatpush1.msra.mxu0 0.0
  %3785 = vmatprep.subr.mxu0 0.0
  %3786 = vmatpush1.msra.mxu0 0.0
  %3787 = vmatprep.subr.mxu0 0.0
  %3788 = vmatpush1.msra.mxu0 0.0
  %3789 = vmatprep.subr.mxu0 0.0
  %3790 = vmatpush1.msra.mxu0 0.0
  %3791 = vmatprep.subr.mxu0 0.0
  %3792 = vmatpush1.msra.mxu0 0.0
  %3793 = vmatprep.subr.mxu0 0.0
  %3794 = vmatpush1.msra.mxu0 0.0
  %3795 = vmatprep.subr.mxu0 0.0
  %3796 = vmatpush1.msra.mxu0 %v3761
  %3797 = vmatprep.subr.mxu0 0.0
  %3798 = vmatpush1.msra.mxu0 %v3760
  %3799 = vmatprep.subr.mxu0 0.0
  %3800 = vmatpush1.msra.mxu0 %v3759
  %3801 = vmatprep.subr.mxu0 0.0
  %3802 = vmatpush2.msra.mxu0 0.0
  %3803 = vmatprep.subr.mxu0 0.0
  %3804 = vmatpush2.msra.mxu0 0.0
  %3805 = vmatprep.subr.mxu0 0.0
  %3806 = vmatpush2.msra.mxu0 0.0
  %3807 = vmatprep.subr.mxu0 0.0
  %3808 = vmatpush2.msra.mxu0 0.0
  %3809 = vmatprep.subr.mxu0 0.0
  %3810 = vmatpush2.msra.mxu0 0.0
  %3811 = vmatprep.subr.mxu0 0.0
  %3812 = vmatpush2.msra.mxu0 0.0
  %3813 = vmatprep.subr.mxu0 0.0
  %3814 = vmatpush2.msra.mxu0 0.0
  %3815 = vmatprep.subr.mxu0 0.0
  %3816 = vmatpush2.msra.mxu0 0.0
  %3817 = vmatprep.subr.mxu0 0.0
  %3818 = vmatpush2.msra.mxu0 0.0
  %3819 = vmatprep.subr.mxu0 0.0
  %3820 = vmatpush2.msra.mxu0 0.0
  %3821 = vmatprep.subr.mxu0 0.0
  %3822 = vmatpush2.msra.mxu0 0.0
  %3823 = vmatprep.subr.mxu0 0.0
  %3824 = vmatpush2.msra.mxu0 0.0
  %3825 = vmatprep.subr.mxu0 0.0
  %3826 = vmatpush2.msra.mxu0 0.0
  %3827 = vmatprep.subr.mxu0 0.0
  %3828 = vmatpush2.msra.mxu0 0.0
  %3829 = vmatprep.subr.mxu0 0.0
  %3830 = vmatpush2.msra.mxu0 0.0
  %3831 = vmatprep.subr.mxu0 0.0
  %3832 = vmatpush2.msra.mxu0 0.0
  %3833 = vmatprep.mubr.f32.mxu0 0.0
  %3834 = vmatmul.mubr.f32.gmra.mxu0 %v3764
  %v3835 = vpop.f32.mrf.mxu0
  %v3836 = vadd.f32 0.0, %v3835
  %v3837 = vpop.f32.mrf.mxu0
  %3838 = vmatprep.mubr.f32.mxu0 0.0
  %3839 = vmatmul.mubr.f32.gmra.mxu0 %v3767
  %v3840 = vpop.f32.mrf.mxu0
  %v3841 = vadd.f32 0.0, %v3840
  %v3842 = vpop.f32.mrf.mxu0
  %3843 = vdwg.mxu0
  %v3845 = vsel %vm3762, %v3663, 0
  %v3848 = vsel %vm3762, %v3668, 0
  %3850 = vmatprep.subr.mxu0 0.0
  %3851 = vmatpush1.msra.mxu0 0.0
  %3852 = vmatprep.subr.mxu0 0.0
  %3853 = vmatpush1.msra.mxu0 0.0
  %3854 = vmatprep.subr.mxu0 0.0
  %3855 = vmatpush1.msra.mxu0 0.0
  %3856 = vmatprep.subr.mxu0 0.0
  %3857 = vmatpush1.msra.mxu0 0.0
  %3858 = vmatprep.subr.mxu0 0.0
  %3859 = vmatpush1.msra.mxu0 0.0
  %3860 = vmatprep.subr.mxu0 0.0
  %3861 = vmatpush1.msra.mxu0 0.0
  %3862 = vmatprep.subr.mxu0 0.0
  %3863 = vmatpush1.msra.mxu0 0.0
  %3864 = vmatprep.subr.mxu0 0.0
  %3865 = vmatpush1.msra.mxu0 0.0
  %3866 = vmatprep.subr.mxu0 0.0
  %3867 = vmatpush1.msra.mxu0 0.0
  %3868 = vmatprep.subr.mxu0 0.0
  %3869 = vmatpush1.msra.mxu0 0.0
  %3870 = vmatprep.subr.mxu0 0.0
  %3871 = vmatpush1.msra.mxu0 0.0
  %3872 = vmatprep.subr.mxu0 0.0
  %3873 = vmatpush1.msra.mxu0 0.0
  %3874 = vmatprep.subr.mxu0 0.0
  %3875 = vmatpush1.msra.mxu0 0.0
  %3876 = vmatprep.subr.mxu0 0.0
  %3877 = vmatpush1.msra.mxu0 %v3673
  %3878 = vmatprep.subr.mxu0 0.0
  %3879 = vmatpush1.msra.mxu0 %v3672
  %3880 = vmatprep.subr.mxu0 0.0
  %3881 = vmatpush1.msra.mxu0 %v3671
  %3882 = vmatprep.subr.mxu0 0.0
  %3883 = vmatpush2.msra.mxu0 0.0
  %3884 = vmatprep.subr.mxu0 0.0
  %3885 = vmatpush2.msra.mxu0 0.0
  %3886 = vmatprep.subr.mxu0 0.0
  %3887 = vmatpush2.msra.mxu0 0.0
  %3888 = vmatprep.subr.mxu0 0.0
  %3889 = vmatpush2.msra.mxu0 0.0
  %3890 = vmatprep.subr.mxu0 0.0
  %3891 = vmatpush2.msra.mxu0 0.0
  %3892 = vmatprep.subr.mxu0 0.0
  %3893 = vmatpush2.msra.mxu0 0.0
  %3894 = vmatprep.subr.mxu0 0.0
  %3895 = vmatpush2.msra.mxu0 0.0
  %3896 = vmatprep.subr.mxu0 0.0
  %3897 = vmatpush2.msra.mxu0 0.0
  %3898 = vmatprep.subr.mxu0 0.0
  %3899 = vmatpush2.msra.mxu0 0.0
  %3900 = vmatprep.subr.mxu0 0.0
  %3901 = vmatpush2.msra.mxu0 0.0
  %3902 = vmatprep.subr.mxu0 0.0
  %3903 = vmatpush2.msra.mxu0 0.0
  %3904 = vmatprep.subr.mxu0 0.0
  %3905 = vmatpush2.msra.mxu0 0.0
  %3906 = vmatprep.subr.mxu0 0.0
  %3907 = vmatpush2.msra.mxu0 0.0
  %3908 = vmatprep.subr.mxu0 0.0
  %3909 = vmatpush2.msra.mxu0 0.0
  %3910 = vmatprep.subr.mxu0 0.0
  %3911 = vmatpush2.msra.mxu0 0.0
  %3912 = vmatprep.subr.mxu0 0.0
  %3913 = vmatpush2.msra.mxu0 0.0
  %3914 = vmatprep.mubr.f32.mxu0 0.0
  %3915 = vmatmul.mubr.f32.gmra.mxu0 %v3845
  %v3916 = vpop.f32.mrf.mxu0
  %v3917 = vadd.f32 %v3836, %v3916
  %v3918 = vpop.f32.mrf.mxu0
  %3919 = vmatprep.mubr.f32.mxu0 0.0
  %3920 = vmatmul.mubr.f32.gmra.mxu0 %v3848
  %v3921 = vpop.f32.mrf.mxu0
  %v3922 = vadd.f32 %v3841, %v3921
  %v3923 = vpop.f32.mrf.mxu0
  %3924 = vdwg.mxu0
  %s3925 = scalar_lea.vmem %s16, 32
  %v3926 = vld [vmem:[%s3925] sm:$0xff]
  %v3927 = vld [vmem:[%s3925 + $0x8] sm:$0xf]
  %v3929 = vsel %vm3586, %v3926, 0
  %v3932 = vsel %vm3586, %v3927, 0
  %3934 = vmatprep.subr.mxu0 0.0
  %3935 = vmatpush1.msra.mxu0 0.0
  %3936 = vmatprep.subr.mxu0 0.0
  %3937 = vmatpush1.msra.mxu0 0.0
  %3938 = vmatprep.subr.mxu0 0.0
  %3939 = vmatpush1.msra.mxu0 0.0
  %3940 = vmatprep.subr.mxu0 0.0
  %3941 = vmatpush1.msra.mxu0 0.0
  %3942 = vmatprep.subr.mxu0 0.0
  %3943 = vmatpush1.msra.mxu0 0.0
  %3944 = vmatprep.subr.mxu0 0.0
  %3945 = vmatpush1.msra.mxu0 0.0
  %3946 = vmatprep.subr.mxu0 0.0
  %3947 = vmatpush1.msra.mxu0 0.0
  %3948 = vmatprep.subr.mxu0 0.0
  %3949 = vmatpush1.msra.mxu0 0.0
  %3950 = vmatprep.subr.mxu0 0.0
  %3951 = vmatpush1.msra.mxu0 0.0
  %3952 = vmatprep.subr.mxu0 0.0
  %3953 = vmatpush1.msra.mxu0 0.0
  %3954 = vmatprep.subr.mxu0 0.0
  %3955 = vmatpush1.msra.mxu0 0.0
  %3956 = vmatprep.subr.mxu0 0.0
  %3957 = vmatpush1.msra.mxu0 0.0
  %3958 = vmatprep.subr.mxu0 0.0
  %3959 = vmatpush1.msra.mxu0 0.0
  %3960 = vmatprep.subr.mxu0 0.0
  %3961 = vmatpush1.msra.mxu0 0.0
  %3962 = vmatprep.subr.mxu0 0.0
  %3963 = vmatpush1.msra.mxu0 %v3594
  %3964 = vmatprep.subr.mxu0 0.0
  %3965 = vmatpush1.msra.mxu0 %v3193
  %3966 = vmatprep.subr.mxu0 0.0
  %3967 = vmatpush2.msra.mxu0 0.0
  %3968 = vmatprep.subr.mxu0 0.0
  %3969 = vmatpush2.msra.mxu0 0.0
  %3970 = vmatprep.subr.mxu0 0.0
  %3971 = vmatpush2.msra.mxu0 0.0
  %3972 = vmatprep.subr.mxu0 0.0
  %3973 = vmatpush2.msra.mxu0 0.0
  %3974 = vmatprep.subr.mxu0 0.0
  %3975 = vmatpush2.msra.mxu0 0.0
  %3976 = vmatprep.subr.mxu0 0.0
  %3977 = vmatpush2.msra.mxu0 0.0
  %3978 = vmatprep.subr.mxu0 0.0
  %3979 = vmatpush2.msra.mxu0 0.0
  %3980 = vmatprep.subr.mxu0 0.0
  %3981 = vmatpush2.msra.mxu0 0.0
  %3982 = vmatprep.subr.mxu0 0.0
  %3983 = vmatpush2.msra.mxu0 0.0
  %3984 = vmatprep.subr.mxu0 0.0
  %3985 = vmatpush2.msra.mxu0 0.0
  %3986 = vmatprep.subr.mxu0 0.0
  %3987 = vmatpush2.msra.mxu0 0.0
  %3988 = vmatprep.subr.mxu0 0.0
  %3989 = vmatpush2.msra.mxu0 0.0
  %3990 = vmatprep.subr.mxu0 0.0
  %3991 = vmatpush2.msra.mxu0 0.0
  %3992 = vmatprep.subr.mxu0 0.0
  %3993 = vmatpush2.msra.mxu0 0.0
  %3994 = vmatprep.subr.mxu0 0.0
  %3995 = vmatpush2.msra.mxu0 0.0
  %3996 = vmatprep.subr.mxu0 0.0
  %3997 = vmatpush2.msra.mxu0 0.0
  %3998 = vmatprep.mubr.f32.mxu0 0.0
  %3999 = vmatmul.mubr.f32.gmra.mxu0 %v3929
  %v4000 = vpop.f32.mrf.mxu0
  %v4001 = vadd.f32 0.0, %v4000
  %v4002 = vpop.f32.mrf.mxu0
  %4003 = vmatprep.mubr.f32.mxu0 0.0
  %4004 = vmatmul.mubr.f32.gmra.mxu0 %v3932
  %v4005 = vpop.f32.mrf.mxu0
  %v4006 = vadd.f32 0.0, %v4005
  %v4007 = vpop.f32.mrf.mxu0
  %4008 = vdwg.mxu0
  %s4009 = scalar_lea.vmem %s17, 48
  %v4010 = vld [vmem:[%s4009] sm:$0xff]
  %v4011 = vld [vmem:[%s4009 + $0x8] sm:$0xff]
  %v4012 = vld [vmem:[%s4009 + $0x10] sm:$0xff]
  %v4014 = vsel %vm3762, %v4001, 0
  %v4017 = vsel %vm3762, %v4006, 0
  %4019 = vmatprep.subr.mxu0 0.0
  %4020 = vmatpush1.msra.mxu0 0.0
  %4021 = vmatprep.subr.mxu0 0.0
  %4022 = vmatpush1.msra.mxu0 0.0
  %4023 = vmatprep.subr.mxu0 0.0
  %4024 = vmatpush1.msra.mxu0 0.0
  %4025 = vmatprep.subr.mxu0 0.0
  %4026 = vmatpush1.msra.mxu0 0.0
  %4027 = vmatprep.subr.mxu0 0.0
  %4028 = vmatpush1.msra.mxu0 0.0
  %4029 = vmatprep.subr.mxu0 0.0
  %4030 = vmatpush1.msra.mxu0 0.0
  %4031 = vmatprep.subr.mxu0 0.0
  %4032 = vmatpush1.msra.mxu0 0.0
  %4033 = vmatprep.subr.mxu0 0.0
  %4034 = vmatpush1.msra.mxu0 0.0
  %4035 = vmatprep.subr.mxu0 0.0
  %4036 = vmatpush1.msra.mxu0 0.0
  %4037 = vmatprep.subr.mxu0 0.0
  %4038 = vmatpush1.msra.mxu0 0.0
  %4039 = vmatprep.subr.mxu0 0.0
  %4040 = vmatpush1.msra.mxu0 0.0
  %4041 = vmatprep.subr.mxu0 0.0
  %4042 = vmatpush1.msra.mxu0 0.0
  %4043 = vmatprep.subr.mxu0 0.0
  %4044 = vmatpush1.msra.mxu0 0.0
  %4045 = vmatprep.subr.mxu0 0.0
  %4046 = vmatpush1.msra.mxu0 %v4012
  %4047 = vmatprep.subr.mxu0 0.0
  %4048 = vmatpush1.msra.mxu0 %v4011
  %4049 = vmatprep.subr.mxu0 0.0
  %4050 = vmatpush1.msra.mxu0 %v4010
  %4051 = vmatprep.subr.mxu0 0.0
  %4052 = vmatpush2.msra.mxu0 0.0
  %4053 = vmatprep.subr.mxu0 0.0
  %4054 = vmatpush2.msra.mxu0 0.0
  %4055 = vmatprep.subr.mxu0 0.0
  %4056 = vmatpush2.msra.mxu0 0.0
  %4057 = vmatprep.subr.mxu0 0.0
  %4058 = vmatpush2.msra.mxu0 0.0
  %4059 = vmatprep.subr.mxu0 0.0
  %4060 = vmatpush2.msra.mxu0 0.0
  %4061 = vmatprep.subr.mxu0 0.0
  %4062 = vmatpush2.msra.mxu0 0.0
  %4063 = vmatprep.subr.mxu0 0.0
  %4064 = vmatpush2.msra.mxu0 0.0
  %4065 = vmatprep.subr.mxu0 0.0
  %4066 = vmatpush2.msra.mxu0 0.0
  %4067 = vmatprep.subr.mxu0 0.0
  %4068 = vmatpush2.msra.mxu0 0.0
  %4069 = vmatprep.subr.mxu0 0.0
  %4070 = vmatpush2.msra.mxu0 0.0
  %4071 = vmatprep.subr.mxu0 0.0
  %4072 = vmatpush2.msra.mxu0 0.0
  %4073 = vmatprep.subr.mxu0 0.0
  %4074 = vmatpush2.msra.mxu0 0.0
  %4075 = vmatprep.subr.mxu0 0.0
  %4076 = vmatpush2.msra.mxu0 0.0
  %4077 = vmatprep.subr.mxu0 0.0
  %4078 = vmatpush2.msra.mxu0 0.0
  %4079 = vmatprep.subr.mxu0 0.0
  %4080 = vmatpush2.msra.mxu0 0.0
  %4081 = vmatprep.subr.mxu0 0.0
  %4082 = vmatpush2.msra.mxu0 0.0
  %4083 = vmatprep.mubr.f32.mxu0 0.0
  %4084 = vmatmul.mubr.f32.gmra.mxu0 %v4014
  %v4085 = vpop.f32.mrf.mxu0
  %v4086 = vadd.f32 0.0, %v4085
  %v4087 = vpop.f32.mrf.mxu0
  %4088 = vmatprep.mubr.f32.mxu0 0.0
  %4089 = vmatmul.mubr.f32.gmra.mxu0 %v4017
  %v4090 = vpop.f32.mrf.mxu0
  %v4091 = vadd.f32 0.0, %v4090
  %v4092 = vpop.f32.mrf.mxu0
  %4093 = vdwg.mxu0
  %v4094 = vadd.f32 %v3917, %v4086
  %v4095 = vadd.f32 %v3922, %v4091
  %v4096 = vld [vmem:[%s18] sm:$0x1]
  %v4098 = vlaneseq
  %v4099 = vshrl.u32 %v4098, 7
  %v4100 = vsub.s32 0, %v4099
  %v4101 = vrot.slane %v4096, %v4100
  %v4103 = vadd.f32 %v4094, %v4101
  %v4104 = vadd.f32 %v4095, %v4101
  %v4105 = vld [vmem:[%s19] sm:$0xff]
  %v4106 = vld [vmem:[%s19 + $0x8] sm:$0xf]
  %v4108 = vsel %vm3586, %v4105, 0
  %v4111 = vsel %vm3586, %v4106, 0
  %v4114 = vsel %vm3009, %v3583, 0
  %4116 = vmatprep.subr.mxu0 0.0
  %4117 = vmatpush1.msra.mxu0 0.0
  %4118 = vmatprep.subr.mxu0 0.0
  %4119 = vmatpush1.msra.mxu0 0.0
  %4120 = vmatprep.subr.mxu0 0.0
  %4121 = vmatpush1.msra.mxu0 0.0
  %4122 = vmatprep.subr.mxu0 0.0
  %4123 = vmatpush1.msra.mxu0 0.0
  %4124 = vmatprep.subr.mxu0 0.0
  %4125 = vmatpush1.msra.mxu0 0.0
  %4126 = vmatprep.subr.mxu0 0.0
  %4127 = vmatpush1.msra.mxu0 0.0
  %4128 = vmatprep.subr.mxu0 0.0
  %4129 = vmatpush1.msra.mxu0 0.0
  %4130 = vmatprep.subr.mxu0 0.0
  %4131 = vmatpush1.msra.mxu0 0.0
  %4132 = vmatprep.subr.mxu0 0.0
  %4133 = vmatpush1.msra.mxu0 0.0
  %4134 = vmatprep.subr.mxu0 0.0
  %4135 = vmatpush1.msra.mxu0 0.0
  %4136 = vmatprep.subr.mxu0 0.0
  %4137 = vmatpush1.msra.mxu0 0.0
  %4138 = vmatprep.subr.mxu0 0.0
  %4139 = vmatpush1.msra.mxu0 0.0
  %4140 = vmatprep.subr.mxu0 0.0
  %4141 = vmatpush1.msra.mxu0 0.0
  %4142 = vmatprep.subr.mxu0 0.0
  %4143 = vmatpush1.msra.mxu0 0.0
  %4144 = vmatprep.subr.mxu0 0.0
  %4145 = vmatpush1.msra.mxu0 %v4114
  %4146 = vmatprep.subr.mxu0 0.0
  %4147 = vmatpush1.msra.mxu0 %v3582
  %4148 = vmatprep.subr.mxu0 0.0
  %4149 = vmatpush2.msra.mxu0 0.0
  %4150 = vmatprep.subr.mxu0 0.0
  %4151 = vmatpush2.msra.mxu0 0.0
  %4152 = vmatprep.subr.mxu0 0.0
  %4153 = vmatpush2.msra.mxu0 0.0
  %4154 = vmatprep.subr.mxu0 0.0
  %4155 = vmatpush2.msra.mxu0 0.0
  %4156 = vmatprep.subr.mxu0 0.0
  %4157 = vmatpush2.msra.mxu0 0.0
  %4158 = vmatprep.subr.mxu0 0.0
  %4159 = vmatpush2.msra.mxu0 0.0
  %4160 = vmatprep.subr.mxu0 0.0
  %4161 = vmatpush2.msra.mxu0 0.0
  %4162 = vmatprep.subr.mxu0 0.0
  %4163 = vmatpush2.msra.mxu0 0.0
  %4164 = vmatprep.subr.mxu0 0.0
  %4165 = vmatpush2.msra.mxu0 0.0
  %4166 = vmatprep.subr.mxu0 0.0
  %4167 = vmatpush2.msra.mxu0 0.0
  %4168 = vmatprep.subr.mxu0 0.0
  %4169 = vmatpush2.msra.mxu0 0.0
  %4170 = vmatprep.subr.mxu0 0.0
  %4171 = vmatpush2.msra.mxu0 0.0
  %4172 = vmatprep.subr.mxu0 0.0
  %4173 = vmatpush2.msra.mxu0 0.0
  %4174 = vmatprep.subr.mxu0 0.0
  %4175 = vmatpush2.msra.mxu0 0.0
  %4176 = vmatprep.subr.mxu0 0.0
  %4177 = vmatpush2.msra.mxu0 0.0
  %4178 = vmatprep.subr.mxu0 0.0
  %4179 = vmatpush2.msra.mxu0 0.0
  %4180 = vmatprep.mubr.f32.mxu0 0.0
  %4181 = vmatmul.mubr.f32.gmra.mxu0 %v4108
  %v4182 = vpop.f32.mrf.mxu0
  %v4183 = vadd.f32 0.0, %v4182
  %v4184 = vpop.f32.mrf.mxu0
  %4185 = vmatprep.mubr.f32.mxu0 0.0
  %4186 = vmatmul.mubr.f32.gmra.mxu0 %v4111
  %v4187 = vpop.f32.mrf.mxu0
  %v4188 = vadd.f32 0.0, %v4187
  %v4189 = vpop.f32.mrf.mxu0
  %4190 = vdwg.mxu0
  %v4191 = vld [vmem:[%s20] sm:$0xff]
  %v4192 = vld [vmem:[%s20 + $0x8] sm:$0xff]
  %v4193 = vld [vmem:[%s20 + $0x10] sm:$0xff]
  %v4194 = vld [vmem:[%s20 + $0x18] sm:$0xff]
  %v4195 = vld [vmem:[%s20 + $0x20] sm:$0xff]
  %v4196 = vld [vmem:[%s20 + $0x28] sm:$0xff]
  %v4197 = vld [vmem:[%s20 + $0x30] sm:$0xff]
  %v4198 = vld [vmem:[%s20 + $0x38] sm:$0xff]
  %v4199 = vld [vmem:[%s20 + $0x40] sm:$0xff]
  %v4200 = vld [vmem:[%s20 + $0x48] sm:$0xff]
  %v4201 = vld [vmem:[%s20 + $0x50] sm:$0xff]
  %v4202 = vld [vmem:[%s20 + $0x58] sm:$0xff]
  %s4203 = scalar_lea.vmem %s19, 16
  %v4204 = vld [vmem:[%s4203] sm:$0xff]
  %v4205 = vld [vmem:[%s4203 + $0x8] sm:$0xf]
  %v4207 = vsel %vm3586, %v4204, 0
  %v4210 = vsel %vm3586, %v4205, 0
  %4212 = vmatprep.subr.mxu0 0.0
  %4213 = vmatpush1.msra.mxu0 0.0
  %4214 = vmatprep.subr.mxu0 0.0
  %4215 = vmatpush1.msra.mxu0 0.0
  %4216 = vmatprep.subr.mxu0 0.0
  %4217 = vmatpush1.msra.mxu0 0.0
  %4218 = vmatprep.subr.mxu0 0.0
  %4219 = vmatpush1.msra.mxu0 0.0
  %4220 = vmatprep.subr.mxu0 0.0
  %4221 = vmatpush1.msra.mxu0 0.0
  %4222 = vmatprep.subr.mxu0 0.0
  %4223 = vmatpush1.msra.mxu0 0.0
  %4224 = vmatprep.subr.mxu0 0.0
  %4225 = vmatpush1.msra.mxu0 0.0
  %4226 = vmatprep.subr.mxu0 0.0
  %4227 = vmatpush1.msra.mxu0 0.0
  %4228 = vmatprep.subr.mxu0 0.0
  %4229 = vmatpush1.msra.mxu0 0.0
  %4230 = vmatprep.subr.mxu0 0.0
  %4231 = vmatpush1.msra.mxu0 0.0
  %4232 = vmatprep.subr.mxu0 0.0
  %4233 = vmatpush1.msra.mxu0 0.0
  %4234 = vmatprep.subr.mxu0 0.0
  %4235 = vmatpush1.msra.mxu0 0.0
  %4236 = vmatprep.subr.mxu0 0.0
  %4237 = vmatpush1.msra.mxu0 0.0
  %4238 = vmatprep.subr.mxu0 0.0
  %4239 = vmatpush1.msra.mxu0 0.0
  %4240 = vmatprep.subr.mxu0 0.0
  %4241 = vmatpush1.msra.mxu0 %v4114
  %4242 = vmatprep.subr.mxu0 0.0
  %4243 = vmatpush1.msra.mxu0 %v3582
  %4244 = vmatprep.subr.mxu0 0.0
  %4245 = vmatpush2.msra.mxu0 0.0
  %4246 = vmatprep.subr.mxu0 0.0
  %4247 = vmatpush2.msra.mxu0 0.0
  %4248 = vmatprep.subr.mxu0 0.0
  %4249 = vmatpush2.msra.mxu0 0.0
  %4250 = vmatprep.subr.mxu0 0.0
  %4251 = vmatpush2.msra.mxu0 0.0
  %4252 = vmatprep.subr.mxu0 0.0
  %4253 = vmatpush2.msra.mxu0 0.0
  %4254 = vmatprep.subr.mxu0 0.0
  %4255 = vmatpush2.msra.mxu0 0.0
  %4256 = vmatprep.subr.mxu0 0.0
  %4257 = vmatpush2.msra.mxu0 0.0
  %4258 = vmatprep.subr.mxu0 0.0
  %4259 = vmatpush2.msra.mxu0 0.0
  %4260 = vmatprep.subr.mxu0 0.0
  %4261 = vmatpush2.msra.mxu0 0.0
  %4262 = vmatprep.subr.mxu0 0.0
  %4263 = vmatpush2.msra.mxu0 0.0
  %4264 = vmatprep.subr.mxu0 0.0
  %4265 = vmatpush2.msra.mxu0 0.0
  %4266 = vmatprep.subr.mxu0 0.0
  %4267 = vmatpush2.msra.mxu0 0.0
  %4268 = vmatprep.subr.mxu0 0.0
  %4269 = vmatpush2.msra.mxu0 0.0
  %4270 = vmatprep.subr.mxu0 0.0
  %4271 = vmatpush2.msra.mxu0 0.0
  %4272 = vmatprep.subr.mxu0 0.0
  %4273 = vmatpush2.msra.mxu0 0.0
  %4274 = vmatprep.subr.mxu0 0.0
  %4275 = vmatpush2.msra.mxu0 0.0
  %4276 = vmatprep.mubr.f32.mxu0 0.0
  %4277 = vmatmul.mubr.f32.gmra.mxu0 %v4207
  %v4278 = vpop.f32.mrf.mxu0
  %v4279 = vadd.f32 0.0, %v4278
  %v4280 = vpop.f32.mrf.mxu0
  %4281 = vmatprep.mubr.f32.mxu0 0.0
  %4282 = vmatmul.mubr.f32.gmra.mxu0 %v4210
  %v4283 = vpop.f32.mrf.mxu0
  %v4284 = vadd.f32 0.0, %v4283
  %v4285 = vpop.f32.mrf.mxu0
  %4286 = vdwg.mxu0
  %s4287 = scalar_lea.vmem %s20, 96
  %v4288 = vld [vmem:[%s4287] sm:$0xff]
  %v4289 = vld [vmem:[%s4287 + $0x8] sm:$0xff]
  %v4290 = vld [vmem:[%s4287 + $0x10] sm:$0xff]
  %v4291 = vld [vmem:[%s4287 + $0x18] sm:$0xff]
  %v4292 = vld [vmem:[%s4287 + $0x20] sm:$0xff]
  %v4293 = vld [vmem:[%s4287 + $0x28] sm:$0xff]
  %v4294 = vld [vmem:[%s4287 + $0x30] sm:$0xff]
  %v4295 = vld [vmem:[%s4287 + $0x38] sm:$0xff]
  %v4296 = vld [vmem:[%s4287 + $0x40] sm:$0xff]
  %v4297 = vld [vmem:[%s4287 + $0x48] sm:$0xff]
  %v4298 = vld [vmem:[%s4287 + $0x50] sm:$0xff]
  %v4299 = vld [vmem:[%s4287 + $0x58] sm:$0xff]
  %v4301 = vsel %vm277, %v4279, 0
  %v4304 = vsel %vm277, %v4284, 0
  %4306 = vmatprep.subr.mxu0 0.0
  %4307 = vmatpush1.msra.mxu0 0.0
  %4308 = vmatprep.subr.mxu0 0.0
  %4309 = vmatpush1.msra.mxu0 0.0
  %4310 = vmatprep.subr.mxu0 0.0
  %4311 = vmatpush1.msra.mxu0 0.0
  %4312 = vmatprep.subr.mxu0 0.0
  %4313 = vmatpush1.msra.mxu0 0.0
  %4314 = vmatprep.subr.mxu0 0.0
  %4315 = vmatpush1.msra.mxu0 %v4299
  %4316 = vmatprep.subr.mxu0 0.0
  %4317 = vmatpush1.msra.mxu0 %v4298
  %4318 = vmatprep.subr.mxu0 0.0
  %4319 = vmatpush1.msra.mxu0 %v4297
  %4320 = vmatprep.subr.mxu0 0.0
  %4321 = vmatpush1.msra.mxu0 %v4296
  %4322 = vmatprep.subr.mxu0 0.0
  %4323 = vmatpush1.msra.mxu0 %v4295
  %4324 = vmatprep.subr.mxu0 0.0
  %4325 = vmatpush1.msra.mxu0 %v4294
  %4326 = vmatprep.subr.mxu0 0.0
  %4327 = vmatpush1.msra.mxu0 %v4293
  %4328 = vmatprep.subr.mxu0 0.0
  %4329 = vmatpush1.msra.mxu0 %v4292
  %4330 = vmatprep.subr.mxu0 0.0
  %4331 = vmatpush1.msra.mxu0 %v4291
  %4332 = vmatprep.subr.mxu0 0.0
  %4333 = vmatpush1.msra.mxu0 %v4290
  %4334 = vmatprep.subr.mxu0 0.0
  %4335 = vmatpush1.msra.mxu0 %v4289
  %4336 = vmatprep.subr.mxu0 0.0
  %4337 = vmatpush1.msra.mxu0 %v4288
  %4338 = vmatprep.subr.mxu0 0.0
  %4339 = vmatpush2.msra.mxu0 0.0
  %4340 = vmatprep.subr.mxu0 0.0
  %4341 = vmatpush2.msra.mxu0 0.0
  %4342 = vmatprep.subr.mxu0 0.0
  %4343 = vmatpush2.msra.mxu0 0.0
  %4344 = vmatprep.subr.mxu0 0.0
  %4345 = vmatpush2.msra.mxu0 0.0
  %4346 = vmatprep.subr.mxu0 0.0
  %4347 = vmatpush2.msra.mxu0 0.0
  %4348 = vmatprep.subr.mxu0 0.0
  %4349 = vmatpush2.msra.mxu0 0.0
  %4350 = vmatprep.subr.mxu0 0.0
  %4351 = vmatpush2.msra.mxu0 0.0
  %4352 = vmatprep.subr.mxu0 0.0
  %4353 = vmatpush2.msra.mxu0 0.0
  %4354 = vmatprep.subr.mxu0 0.0
  %4355 = vmatpush2.msra.mxu0 0.0
  %4356 = vmatprep.subr.mxu0 0.0
  %4357 = vmatpush2.msra.mxu0 0.0
  %4358 = vmatprep.subr.mxu0 0.0
  %4359 = vmatpush2.msra.mxu0 0.0
  %4360 = vmatprep.subr.mxu0 0.0
  %4361 = vmatpush2.msra.mxu0 0.0
  %4362 = vmatprep.subr.mxu0 0.0
  %4363 = vmatpush2.msra.mxu0 0.0
  %4364 = vmatprep.subr.mxu0 0.0
  %4365 = vmatpush2.msra.mxu0 0.0
  %4366 = vmatprep.subr.mxu0 0.0
  %4367 = vmatpush2.msra.mxu0 0.0
  %4368 = vmatprep.subr.mxu0 0.0
  %4369 = vmatpush2.msra.mxu0 0.0
  %4370 = vmatprep.mubr.f32.mxu0 0.0
  %4371 = vmatmul.mubr.f32.gmra.mxu0 %v4301
  %v4372 = vpop.f32.mrf.mxu0
  %v4373 = vadd.f32 0.0, %v4372
  %v4374 = vpop.f32.mrf.mxu0
  %4375 = vmatprep.mubr.f32.mxu0 0.0
  %4376 = vmatmul.mubr.f32.gmra.mxu0 %v4304
  %v4377 = vpop.f32.mrf.mxu0
  %v4378 = vadd.f32 0.0, %v4377
  %v4379 = vpop.f32.mrf.mxu0
  %4380 = vdwg.mxu0
  %v4382 = vsel %vm277, %v4183, 0
  %v4385 = vsel %vm277, %v4188, 0
  %4387 = vmatprep.subr.mxu0 0.0
  %4388 = vmatpush1.msra.mxu0 0.0
  %4389 = vmatprep.subr.mxu0 0.0
  %4390 = vmatpush1.msra.mxu0 0.0
  %4391 = vmatprep.subr.mxu0 0.0
  %4392 = vmatpush1.msra.mxu0 0.0
  %4393 = vmatprep.subr.mxu0 0.0
  %4394 = vmatpush1.msra.mxu0 0.0
  %4395 = vmatprep.subr.mxu0 0.0
  %4396 = vmatpush1.msra.mxu0 %v4202
  %4397 = vmatprep.subr.mxu0 0.0
  %4398 = vmatpush1.msra.mxu0 %v4201
  %4399 = vmatprep.subr.mxu0 0.0
  %4400 = vmatpush1.msra.mxu0 %v4200
  %4401 = vmatprep.subr.mxu0 0.0
  %4402 = vmatpush1.msra.mxu0 %v4199
  %4403 = vmatprep.subr.mxu0 0.0
  %4404 = vmatpush1.msra.mxu0 %v4198
  %4405 = vmatprep.subr.mxu0 0.0
  %4406 = vmatpush1.msra.mxu0 %v4197
  %4407 = vmatprep.subr.mxu0 0.0
  %4408 = vmatpush1.msra.mxu0 %v4196
  %4409 = vmatprep.subr.mxu0 0.0
  %4410 = vmatpush1.msra.mxu0 %v4195
  %4411 = vmatprep.subr.mxu0 0.0
  %4412 = vmatpush1.msra.mxu0 %v4194
  %4413 = vmatprep.subr.mxu0 0.0
  %4414 = vmatpush1.msra.mxu0 %v4193
  %4415 = vmatprep.subr.mxu0 0.0
  %4416 = vmatpush1.msra.mxu0 %v4192
  %4417 = vmatprep.subr.mxu0 0.0
  %4418 = vmatpush1.msra.mxu0 %v4191
  %4419 = vmatprep.subr.mxu0 0.0
  %4420 = vmatpush2.msra.mxu0 0.0
  %4421 = vmatprep.subr.mxu0 0.0
  %4422 = vmatpush2.msra.mxu0 0.0
  %4423 = vmatprep.subr.mxu0 0.0
  %4424 = vmatpush2.msra.mxu0 0.0
  %4425 = vmatprep.subr.mxu0 0.0
  %4426 = vmatpush2.msra.mxu0 0.0
  %4427 = vmatprep.subr.mxu0 0.0
  %4428 = vmatpush2.msra.mxu0 0.0
  %4429 = vmatprep.subr.mxu0 0.0
  %4430 = vmatpush2.msra.mxu0 0.0
  %4431 = vmatprep.subr.mxu0 0.0
  %4432 = vmatpush2.msra.mxu0 0.0
  %4433 = vmatprep.subr.mxu0 0.0
  %4434 = vmatpush2.msra.mxu0 0.0
  %4435 = vmatprep.subr.mxu0 0.0
  %4436 = vmatpush2.msra.mxu0 0.0
  %4437 = vmatprep.subr.mxu0 0.0
  %4438 = vmatpush2.msra.mxu0 0.0
  %4439 = vmatprep.subr.mxu0 0.0
  %4440 = vmatpush2.msra.mxu0 0.0
  %4441 = vmatprep.subr.mxu0 0.0
  %4442 = vmatpush2.msra.mxu0 0.0
  %4443 = vmatprep.subr.mxu0 0.0
  %4444 = vmatpush2.msra.mxu0 0.0
  %4445 = vmatprep.subr.mxu0 0.0
  %4446 = vmatpush2.msra.mxu0 0.0
  %4447 = vmatprep.subr.mxu0 0.0
  %4448 = vmatpush2.msra.mxu0 0.0
  %4449 = vmatprep.subr.mxu0 0.0
  %4450 = vmatpush2.msra.mxu0 0.0
  %4451 = vmatprep.mubr.f32.mxu0 0.0
  %4452 = vmatmul.mubr.f32.gmra.mxu0 %v4382
  %v4453 = vpop.f32.mrf.mxu0
  %v4454 = vadd.f32 %v4373, %v4453
  %v4455 = vpop.f32.mrf.mxu0
  %4456 = vmatprep.mubr.f32.mxu0 0.0
  %4457 = vmatmul.mubr.f32.gmra.mxu0 %v4385
  %v4458 = vpop.f32.mrf.mxu0
  %v4459 = vadd.f32 %v4378, %v4458
  %v4460 = vpop.f32.mrf.mxu0
  %4461 = vdwg.mxu0
  %s4462 = scalar_lea.vmem %s19, 32
  %v4463 = vld [vmem:[%s4462] sm:$0xff]
  %v4464 = vld [vmem:[%s4462 + $0x8] sm:$0xf]
  %v4466 = vsel %vm3586, %v4463, 0
  %v4469 = vsel %vm3586, %v4464, 0
  %4471 = vmatprep.subr.mxu0 0.0
  %4472 = vmatpush1.msra.mxu0 0.0
  %4473 = vmatprep.subr.mxu0 0.0
  %4474 = vmatpush1.msra.mxu0 0.0
  %4475 = vmatprep.subr.mxu0 0.0
  %4476 = vmatpush1.msra.mxu0 0.0
  %4477 = vmatprep.subr.mxu0 0.0
  %4478 = vmatpush1.msra.mxu0 0.0
  %4479 = vmatprep.subr.mxu0 0.0
  %4480 = vmatpush1.msra.mxu0 0.0
  %4481 = vmatprep.subr.mxu0 0.0
  %4482 = vmatpush1.msra.mxu0 0.0
  %4483 = vmatprep.subr.mxu0 0.0
  %4484 = vmatpush1.msra.mxu0 0.0
  %4485 = vmatprep.subr.mxu0 0.0
  %4486 = vmatpush1.msra.mxu0 0.0
  %4487 = vmatprep.subr.mxu0 0.0
  %4488 = vmatpush1.msra.mxu0 0.0
  %4489 = vmatprep.subr.mxu0 0.0
  %4490 = vmatpush1.msra.mxu0 0.0
  %4491 = vmatprep.subr.mxu0 0.0
  %4492 = vmatpush1.msra.mxu0 0.0
  %4493 = vmatprep.subr.mxu0 0.0
  %4494 = vmatpush1.msra.mxu0 0.0
  %4495 = vmatprep.subr.mxu0 0.0
  %4496 = vmatpush1.msra.mxu0 0.0
  %4497 = vmatprep.subr.mxu0 0.0
  %4498 = vmatpush1.msra.mxu0 0.0
  %4499 = vmatprep.subr.mxu0 0.0
  %4500 = vmatpush1.msra.mxu0 %v4114
  %4501 = vmatprep.subr.mxu0 0.0
  %4502 = vmatpush1.msra.mxu0 %v3582
  %4503 = vmatprep.subr.mxu0 0.0
  %4504 = vmatpush2.msra.mxu0 0.0
  %4505 = vmatprep.subr.mxu0 0.0
  %4506 = vmatpush2.msra.mxu0 0.0
  %4507 = vmatprep.subr.mxu0 0.0
  %4508 = vmatpush2.msra.mxu0 0.0
  %4509 = vmatprep.subr.mxu0 0.0
  %4510 = vmatpush2.msra.mxu0 0.0
  %4511 = vmatprep.subr.mxu0 0.0
  %4512 = vmatpush2.msra.mxu0 0.0
  %4513 = vmatprep.subr.mxu0 0.0
  %4514 = vmatpush2.msra.mxu0 0.0
  %4515 = vmatprep.subr.mxu0 0.0
  %4516 = vmatpush2.msra.mxu0 0.0
  %4517 = vmatprep.subr.mxu0 0.0
  %4518 = vmatpush2.msra.mxu0 0.0
  %4519 = vmatprep.subr.mxu0 0.0
  %4520 = vmatpush2.msra.mxu0 0.0
  %4521 = vmatprep.subr.mxu0 0.0
  %4522 = vmatpush2.msra.mxu0 0.0
  %4523 = vmatprep.subr.mxu0 0.0
  %4524 = vmatpush2.msra.mxu0 0.0
  %4525 = vmatprep.subr.mxu0 0.0
  %4526 = vmatpush2.msra.mxu0 0.0
  %4527 = vmatprep.subr.mxu0 0.0
  %4528 = vmatpush2.msra.mxu0 0.0
  %4529 = vmatprep.subr.mxu0 0.0
  %4530 = vmatpush2.msra.mxu0 0.0
  %4531 = vmatprep.subr.mxu0 0.0
  %4532 = vmatpush2.msra.mxu0 0.0
  %4533 = vmatprep.subr.mxu0 0.0
  %4534 = vmatpush2.msra.mxu0 0.0
  %4535 = vmatprep.mubr.f32.mxu0 0.0
  %4536 = vmatmul.mubr.f32.gmra.mxu0 %v4466
  %v4537 = vpop.f32.mrf.mxu0
  %v4538 = vadd.f32 0.0, %v4537
  %v4539 = vpop.f32.mrf.mxu0
  %4540 = vmatprep.mubr.f32.mxu0 0.0
  %4541 = vmatmul.mubr.f32.gmra.mxu0 %v4469
  %v4542 = vpop.f32.mrf.mxu0
  %v4543 = vadd.f32 0.0, %v4542
  %v4544 = vpop.f32.mrf.mxu0
  %4545 = vdwg.mxu0
  %s4546 = scalar_lea.vmem %s20, 192
  %v4547 = vld [vmem:[%s4546] sm:$0xff]
  %v4548 = vld [vmem:[%s4546 + $0x8] sm:$0xff]
  %v4549 = vld [vmem:[%s4546 + $0x10] sm:$0xff]
  %v4550 = vld [vmem:[%s4546 + $0x18] sm:$0xff]
  %v4551 = vld [vmem:[%s4546 + $0x20] sm:$0xff]
  %v4552 = vld [vmem:[%s4546 + $0x28] sm:$0xff]
  %v4553 = vld [vmem:[%s4546 + $0x30] sm:$0xff]
  %v4554 = vld [vmem:[%s4546 + $0x38] sm:$0xff]
  %v4555 = vld [vmem:[%s4546 + $0x40] sm:$0xff]
  %v4556 = vld [vmem:[%s4546 + $0x48] sm:$0xff]
  %v4557 = vld [vmem:[%s4546 + $0x50] sm:$0xff]
  %v4558 = vld [vmem:[%s4546 + $0x58] sm:$0xff]
  %v4560 = vsel %vm277, %v4538, 0
  %v4563 = vsel %vm277, %v4543, 0
  %4565 = vmatprep.subr.mxu0 0.0
  %4566 = vmatpush1.msra.mxu0 0.0
  %4567 = vmatprep.subr.mxu0 0.0
  %4568 = vmatpush1.msra.mxu0 0.0
  %4569 = vmatprep.subr.mxu0 0.0
  %4570 = vmatpush1.msra.mxu0 0.0
  %4571 = vmatprep.subr.mxu0 0.0
  %4572 = vmatpush1.msra.mxu0 0.0
  %4573 = vmatprep.subr.mxu0 0.0
  %4574 = vmatpush1.msra.mxu0 %v4558
  %4575 = vmatprep.subr.mxu0 0.0
  %4576 = vmatpush1.msra.mxu0 %v4557
  %4577 = vmatprep.subr.mxu0 0.0
  %4578 = vmatpush1.msra.mxu0 %v4556
  %4579 = vmatprep.subr.mxu0 0.0
  %4580 = vmatpush1.msra.mxu0 %v4555
  %4581 = vmatprep.subr.mxu0 0.0
  %4582 = vmatpush1.msra.mxu0 %v4554
  %4583 = vmatprep.subr.mxu0 0.0
  %4584 = vmatpush1.msra.mxu0 %v4553
  %4585 = vmatprep.subr.mxu0 0.0
  %4586 = vmatpush1.msra.mxu0 %v4552
  %4587 = vmatprep.subr.mxu0 0.0
  %4588 = vmatpush1.msra.mxu0 %v4551
  %4589 = vmatprep.subr.mxu0 0.0
  %4590 = vmatpush1.msra.mxu0 %v4550
  %4591 = vmatprep.subr.mxu0 0.0
  %4592 = vmatpush1.msra.mxu0 %v4549
  %4593 = vmatprep.subr.mxu0 0.0
  %4594 = vmatpush1.msra.mxu0 %v4548
  %4595 = vmatprep.subr.mxu0 0.0
  %4596 = vmatpush1.msra.mxu0 %v4547
  %4597 = vmatprep.subr.mxu0 0.0
  %4598 = vmatpush2.msra.mxu0 0.0
  %4599 = vmatprep.subr.mxu0 0.0
  %4600 = vmatpush2.msra.mxu0 0.0
  %4601 = vmatprep.subr.mxu0 0.0
  %4602 = vmatpush2.msra.mxu0 0.0
  %4603 = vmatprep.subr.mxu0 0.0
  %4604 = vmatpush2.msra.mxu0 0.0
  %4605 = vmatprep.subr.mxu0 0.0
  %4606 = vmatpush2.msra.mxu0 0.0
  %4607 = vmatprep.subr.mxu0 0.0
  %4608 = vmatpush2.msra.mxu0 0.0
  %4609 = vmatprep.subr.mxu0 0.0
  %4610 = vmatpush2.msra.mxu0 0.0
  %4611 = vmatprep.subr.mxu0 0.0
  %4612 = vmatpush2.msra.mxu0 0.0
  %4613 = vmatprep.subr.mxu0 0.0
  %4614 = vmatpush2.msra.mxu0 0.0
  %4615 = vmatprep.subr.mxu0 0.0
  %4616 = vmatpush2.msra.mxu0 0.0
  %4617 = vmatprep.subr.mxu0 0.0
  %4618 = vmatpush2.msra.mxu0 0.0
  %4619 = vmatprep.subr.mxu0 0.0
  %4620 = vmatpush2.msra.mxu0 0.0
  %4621 = vmatprep.subr.mxu0 0.0
  %4622 = vmatpush2.msra.mxu0 0.0
  %4623 = vmatprep.subr.mxu0 0.0
  %4624 = vmatpush2.msra.mxu0 0.0
  %4625 = vmatprep.subr.mxu0 0.0
  %4626 = vmatpush2.msra.mxu0 0.0
  %4627 = vmatprep.subr.mxu0 0.0
  %4628 = vmatpush2.msra.mxu0 0.0
  %4629 = vmatprep.mubr.f32.mxu0 0.0
  %4630 = vmatmul.mubr.f32.gmra.mxu0 %v4560
  %v4631 = vpop.f32.mrf.mxu0
  %v4632 = vadd.f32 0.0, %v4631
  %v4633 = vpop.f32.mrf.mxu0
  %4634 = vmatprep.mubr.f32.mxu0 0.0
  %4635 = vmatmul.mubr.f32.gmra.mxu0 %v4563
  %v4636 = vpop.f32.mrf.mxu0
  %v4637 = vadd.f32 0.0, %v4636
  %v4638 = vpop.f32.mrf.mxu0
  %4639 = vdwg.mxu0
  %v4640 = vadd.f32 %v4454, %v4632
  %v4641 = vadd.f32 %v4459, %v4637
  %v4642 = vld [vmem:[%s21] sm:$0x1]
  %v4644 = vlaneseq
  %v4645 = vshrl.u32 %v4644, 7
  %v4646 = vsub.s32 0, %v4645
  %v4647 = vrot.slane %v4642, %v4646
  %v4649 = vadd.f32 %v4640, %v4647
  %v4650 = vadd.f32 %v4641, %v4647
  %v4651 = vadd.f32 %v4103, %v4649
  %v4652 = vadd.f32 %v4104, %v4650
  %4653 = vst.msk [vmem:[%s22] sm:$0xff] %vm277, %v4651
  %vm4654 = vcmask 781312
  %4655 = vst.msk [vmem:[%s22 + $0x8] sm:$0xf] %vm4654, %v4652
  // Predicated region
  $region90: #{_fused_forward.1} parent=0 // pred_check
    _
  $region91: #{_fused_forward.1} parent=0 // pred_check_branch
    %4657 = sbr.rel (0) target = $region93
  $region92: #{_fused_forward.1} parent=0 // pred_region
    _
  $region93: #{_fused_forward.1} parent=0 // pred_fallthru
    _
  // Predicated region
  $region94: #{_fused_forward.1} parent=0 // pred_check
    _
  $region95: #{_fused_forward.1} parent=0 // pred_check_branch
    %4659 = sbr.rel (0) target = $region97
  $region96: #{_fused_forward.1} parent=0 // pred_region
    _
  $region97: #{_fused_forward.1} parent=0 // pred_fallthru
    _

</llo_original>
